<compile_context>
chip_gen: v7x
topology: tpu7x:2x2x1
jax: 0.10.0
libtpu: 0.0.40
codegen_flags: <defaults>
</compile_context>

<pallas_src>
import jax
import jax.numpy as jnp
from jax.experimental import pallas as pl
from jax.experimental.pallas import tpu as pltpu


def _pick_d_tile(D, H, W):
    """Largest divisor of D with TD*H*W <= 256 rows (keeps the f32 accumulator
    (TD*H*W, 128) within ~32 vregs)."""
    cap = max(1, 256 // max(1, H * W))
    best = 1
    for cand in range(1, min(D, cap) + 1):
        if D % cand == 0:
            best = cand
    return best


def _conv3d_bn_relu_kernel(x_main_ref, x_prev_ref, x_next_ref, w_ref,
                           scale_ref, bias_ref, out_ref, xw_ref):
    # x_main_ref : (1, TD, H, W, C)    current depth tile
    # x_prev_ref : (1, 1,  H, W, C)    depth slice just above the tile (clamped)
    # x_next_ref : (1, 1,  H, W, C)    depth slice just below the tile (clamped)
    # w_ref      : (9, 3*C, Cp)        (kd,kh) taps; K axis folds (kw, cin)
    # scale_ref  : (1, Cp) f32         gamma / sqrt(var + eps)      (0 in pad)
    # bias_ref   : (1, Cp) f32         beta + (conv_b - mean)*scale (0 in pad)
    # out_ref    : (1, TD, H, W, Cp)
    # xw_ref     : (TD+2, H+2, W, 3*C) VMEM scratch (kw-folded padded slab)
    _, TD, H, W, C = x_main_ref.shape
    Cp = out_ref.shape[-1]
    dt = pl.program_id(1)
    n_dt = pl.num_programs(1)

    main = x_main_ref[0]                                    # (TD, H, W, C)
    prev = x_prev_ref[0]                                    # (1,  H, W, C)
    nxt = x_next_ref[0]                                     # (1,  H, W, C)
    # The halo index maps clamp at the volume boundary; zero-mask here.
    prev = jnp.where(dt > 0, prev, jnp.zeros_like(prev))
    nxt = jnp.where(dt < n_dt - 1, nxt, jnp.zeros_like(nxt))

    # D halo + H padding are concats on major (untiled) axes -> cheap.
    slab = jnp.concatenate([prev, main, nxt], axis=0)       # (TD+2, H,   W, C)
    zrow = jnp.zeros((TD + 2, 1, W, C), main.dtype)
    slab = jnp.concatenate([zrow, slab, zrow], axis=1)      # (TD+2, H+2, W, C)

    # Fold the kw window into the contraction axis:
    #   xw[a, b, w, kw*C + c] = x[d0+a-1, b-1, w+kw-1, c]  (zero outside).
    zcol = jnp.zeros((TD + 2, H + 2, 1, C), main.dtype)
    x_m1 = jnp.concatenate([zcol, slab[:, :, :W - 1, :]], axis=2)   # w-1
    x_p1 = jnp.concatenate([slab[:, :, 1:, :], zcol], axis=2)       # w+1
    xw_ref[...] = jnp.concatenate([x_m1, slab, x_p1], axis=-1)

    # 9 MXU contractions with K = 3*C, f32 accumulation in vregs.  Per-tap
    # slices only touch the two major axes of xw_ref (no relayout copies).
    M = TD * H * W
    acc = jnp.zeros((M, Cp), jnp.float32)
    for kd in range(3):
        for kh in range(3):
            lhs = xw_ref[kd:kd + TD, kh:kh + H, :, :].reshape(M, 3 * C)
            acc = acc + jnp.dot(lhs, w_ref[kd * 3 + kh],
                                preferred_element_type=jnp.float32)

    y = acc * scale_ref[...] + bias_ref[...]     # folded conv-bias + batchnorm
    y = jnp.maximum(y, 0.0)                      # ReLU
    out_ref[...] = y.reshape(1, TD, H, W, Cp).astype(out_ref.dtype)


def conv3d_bn_relu(x_ndhwc, w_oidhw, conv_b, gamma, beta, run_mean, run_var,
                   *, eps=1e-5, d_tile=None):
    """Conv3d(k=3, pad=1) + BatchNorm3d(eval) + ReLU as one Pallas call.

    x_ndhwc may carry zero-padded trailing channels (Cx >= Cin of the weights);
    the weights are zero-padded on Cin to match.  Returns (N, D, H, W, Cp)
    with Cp = round_up(Cout, 128); channels >= Cout are zero (lane-dense).
    """
    N, D, H, W, Cx = x_ndhwc.shape
    Cout, Cin = w_oidhw.shape[0], w_oidhw.shape[1]
    assert Cin <= Cx, (Cin, Cx)
    Cp = 128 * pl.cdiv(Cout, 128)          # lane-dense / MXU-wide output chans
    cdt = x_ndhwc.dtype                    # compute dtype (f32 or bf16)

    # (Cout, Cin, 3,3,3) -> (kd,kh,kw,Cin,Cout); zero-pad Cin->Cx, Cout->Cp;
    # group (kd,kh) as the 9 taps and (kw,cin) as the contraction axis.
    wt = jnp.transpose(w_oidhw, (2, 3, 4, 1, 0))
    wt = jnp.pad(wt, ((0, 0), (0, 0), (0, 0), (0, Cx - Cin), (0, Cp - Cout)))
    w9 = wt.reshape(9, 3 * Cx, Cp).astype(cdt)

    scale = gamma / jnp.sqrt(run_var + eps)
    bias = beta + (conv_b - run_mean) * scale
    scale = jnp.pad(scale, (0, Cp - Cout)).astype(jnp.float32).reshape(1, Cp)
    bias = jnp.pad(bias, (0, Cp - Cout)).astype(jnp.float32).reshape(1, Cp)

    TD = d_tile if d_tile is not None else _pick_d_tile(D, H, W)
    assert D % TD == 0, (D, TD)
    nD = D // TD
    # TODO(synk): for very large H*W planes (or Cout >> 128) an extra H-tile /
    #             Cout-tile grid axis would be needed to bound VMEM further.

    grid_spec = pltpu.PrefetchScalarGridSpec(
        num_scalar_prefetch=0,
        grid=(N, nD),
        in_specs=[
            # current depth tile
            pl.BlockSpec((1, TD, H, W, Cx), lambda n, d: (n, d, 0, 0, 0)),
            # one-slice halo above / below (clamped; zero-masked in-kernel)
            pl.BlockSpec((1, 1, H, W, Cx),
                         lambda n, d: (n, jnp.maximum(d * TD - 1, 0), 0, 0, 0)),
            pl.BlockSpec((1, 1, H, W, Cx),
                         lambda n, d: (n, jnp.minimum((d + 1) * TD, D - 1),
                                       0, 0, 0)),
            # weights / folded BN params: constant block index -> DMA'd once
            pl.BlockSpec((9, 3 * Cx, Cp), lambda n, d: (0, 0, 0)),
            pl.BlockSpec((1, Cp), lambda n, d: (0, 0)),
            pl.BlockSpec((1, Cp), lambda n, d: (0, 0)),
        ],
        out_specs=pl.BlockSpec((1, TD, H, W, Cp), lambda n, d: (n, d, 0, 0, 0)),
        scratch_shapes=[pltpu.VMEM((TD + 2, H + 2, W, 3 * Cx), cdt)],
    )
    return pl.pallas_call(
        _conv3d_bn_relu_kernel,
        out_shape=jax.ShapeDtypeStruct((N, D, H, W, Cp), cdt),
        grid_spec=grid_spec,
        compiler_params=pltpu.CompilerParams(
            dimension_semantics=("parallel", "parallel"),
            vmem_limit_bytes=32 * 1024 * 1024),
    )(x_ndhwc, x_ndhwc, x_ndhwc, w9, scale, bias)


def conv_block_forward(x_ncdhw, params, *, compute_dtype=None):
    """ConvBlock.forward (eval mode).  Input/output in PyTorch NCDHW layout.

    compute_dtype=jnp.bfloat16 runs both convs in bf16 with f32 accumulation
    (recommended on v6e/v7x); the result is cast back to the input dtype.
    """
    orig_dtype = x_ncdhw.dtype
    x = jnp.transpose(x_ncdhw, (0, 2, 3, 4, 1))             # NCDHW -> NDHWC
    if compute_dtype is not None:
        x = x.astype(compute_dtype)
    (w1, b1, g1, be1, m1, v1), (w2, b2, g2, be2, m2, v2) = params
    # dropout_1 / dropout_2 are identity in eval mode (p = 0.001).
    x = conv3d_bn_relu(x, w1, b1, g1, be1, m1, v1)
    # x is (N, D, H, W, 128) with zero-padded channels past out_ch; layer 2
    # consumes it directly (its weights are zero-padded on Cin), keeping the
    # intermediate lane-dense with no extra HBM slice/copy between layers.
    # TODO(synk): fusing both layers into one pallas_call (intermediate tile
    #             kept in VMEM with a 2-voxel halo) would remove the remaining
    #             intermediate HBM round trip.
    x = conv3d_bn_relu(x, w2, b2, g2, be2, m2, v2)
    out_ch = w2.shape[0]
    x = x[..., :out_ch].astype(orig_dtype)
    return jnp.transpose(x, (0, 4, 1, 2, 3))                # NDHWC -> NCDHW


# ---------- pure-JAX reference for the correctness check ----------
def _ref_layer(x_ndhwc, w_oidhw, b, gamma, beta, mean, var, eps=1e-5):
    w_dhwio = jnp.transpose(w_oidhw, (2, 3, 4, 1, 0))
    y = jax.lax.conv_general_dilated(
        x_ndhwc, w_dhwio, window_strides=(1, 1, 1),
        padding=((1, 1), (1, 1), (1, 1)),
        dimension_numbers=('NDHWC', 'DHWIO', 'NDHWC'))
    y = y + b
    y = (y - mean) / jnp.sqrt(var + eps) * gamma + beta
    return jnp.maximum(y, 0.0)


def _ref_forward(x_ncdhw, params):
    x = jnp.transpose(x_ncdhw, (0, 2, 3, 4, 1))
    for (w, b, g, be, m, v) in params:
        x = _ref_layer(x, w, b, g, be, m, v)
    return jnp.transpose(x, (0, 4, 1, 2, 3))


def _init_layer(key, in_ch, out_ch):
    kw, kb, kg, kbe, km, kv = jax.random.split(key, 6)
    fan_in = in_ch * 27
    w = jax.random.normal(kw, (out_ch, in_ch, 3, 3, 3), jnp.float32) / jnp.sqrt(fan_in)
    b = 0.05 * jax.random.normal(kb, (out_ch,), jnp.float32)
    gamma = 1.0 + 0.1 * jax.random.normal(kg, (out_ch,), jnp.float32)
    beta = 0.1 * jax.random.normal(kbe, (out_ch,), jnp.float32)
    run_mean = 0.1 * jax.random.normal(km, (out_ch,), jnp.float32)
    run_var = 1.0 + 0.1 * jnp.abs(jax.random.normal(kv, (out_ch,), jnp.float32))
    return (w, b, gamma, beta, run_mean, run_var)


if __name__ == "__main__":
    key = jax.random.PRNGKey(0)
    k_x, k_l1, k_l2 = jax.random.split(key, 3)

    N, in_ch, out_ch, D, H, W = 2, 4, 8, 8, 8, 8
    x = jax.random.normal(k_x, (N, in_ch, D, H, W), jnp.float32)   # NCDHW

    params = (_init_layer(k_l1, in_ch, out_ch),
              _init_layer(k_l2, out_ch, out_ch))

    # f32 path: tight check against the pure-JAX reference.
    out = jax.block_until_ready(conv_block_forward(x, params))
    ref = jax.block_until_ready(_ref_forward(x, params))
    assert out.shape == (N, out_ch, D, H, W), out.shape
    err = float(jnp.max(jnp.abs(out - ref)))
    assert jnp.allclose(out, ref, atol=1e-3, rtol=1e-3), err

    # bf16 compute with f32 accumulation (v6e/v7x fast path): loose check.
    out_bf16 = jax.block_until_ready(
        conv_block_forward(x, params, compute_dtype=jnp.bfloat16))
    assert out_bf16.shape == (N, out_ch, D, H, W), out_bf16.shape
    err_bf16 = float(jnp.max(jnp.abs(out_bf16 - ref)))
    assert err_bf16 < 0.1, err_bf16

    print("KERNEL_OK")
</pallas_src>

<mosaic_0001>
module attributes {stable_mosaic.version = 11 : i64} {
  func.func @_conv3d_bn_relu_kernel(%arg0: i32, %arg1: i32, %arg2: memref<1x4x8x8x4xf32, #tpu.memory_space<vmem>>, %arg3: memref<1x1x8x8x4xf32, #tpu.memory_space<vmem>>, %arg4: memref<1x1x8x8x4xf32, #tpu.memory_space<vmem>>, %arg5: memref<9x12x128xf32, #tpu.memory_space<vmem>>, %arg6: memref<1x128xf32, #tpu.memory_space<vmem>>, %arg7: memref<1x128xf32, #tpu.memory_space<vmem>>, %arg8: memref<1x4x8x8x128xf32, #tpu.memory_space<vmem>>, %arg9: memref<6x10x8x12xf32, #tpu.memory_space<vmem>>) attributes {dimension_semantics = [#tpu.dimension_semantics<parallel>, #tpu.dimension_semantics<parallel>], iteration_bounds = array<i64: 2, 2>, scalar_prefetch = 0 : i64, scratch_operands = 1 : i64, tpu.core_type = #tpu.core_type<tc>, window_params = [{transform_indices = @transform_0, window_bounds = array<i64: 1, 4, 8, 8, 4>}, {transform_indices = @transform_1, window_bounds = array<i64: 1, 1, 8, 8, 4>}, {transform_indices = @transform_2, window_bounds = array<i64: 1, 1, 8, 8, 4>}, {pipeline_mode = #tpu.pipeline_mode<synchronous>, transform_indices = @transform_3, window_bounds = array<i64: 9, 12, 128>}, {pipeline_mode = #tpu.pipeline_mode<synchronous>, transform_indices = @transform_4, window_bounds = array<i64: 1, 128>}, {pipeline_mode = #tpu.pipeline_mode<synchronous>, transform_indices = @transform_5, window_bounds = array<i64: 1, 128>}, {transform_indices = @transform_6, window_bounds = array<i64: 1, 4, 8, 8, 128>}]} {
    %c0 = arith.constant 0 : index
    %c0_0 = arith.constant 0 : index
    %c0_1 = arith.constant 0 : index
    %c0_2 = arith.constant 0 : index
    %c0_3 = arith.constant 0 : index
    %0 = vector.load %arg2[%c0, %c0_0, %c0_1, %c0_2, %c0_3] : memref<1x4x8x8x4xf32, #tpu.memory_space<vmem>>, vector<1x4x8x8x4xf32>
    %1 = vector.shape_cast %0 : vector<1x4x8x8x4xf32> to vector<4x8x8x4xf32>
    %c0_4 = arith.constant 0 : index
    %c0_5 = arith.constant 0 : index
    %c0_6 = arith.constant 0 : index
    %c0_7 = arith.constant 0 : index
    %c0_8 = arith.constant 0 : index
    %2 = vector.load %arg3[%c0_4, %c0_5, %c0_6, %c0_7, %c0_8] : memref<1x1x8x8x4xf32, #tpu.memory_space<vmem>>, vector<1x1x8x8x4xf32>
    %3 = vector.shape_cast %2 : vector<1x1x8x8x4xf32> to vector<1x8x8x4xf32>
    %c0_9 = arith.constant 0 : index
    %c0_10 = arith.constant 0 : index
    %c0_11 = arith.constant 0 : index
    %c0_12 = arith.constant 0 : index
    %c0_13 = arith.constant 0 : index
    %4 = vector.load %arg4[%c0_9, %c0_10, %c0_11, %c0_12, %c0_13] : memref<1x1x8x8x4xf32, #tpu.memory_space<vmem>>, vector<1x1x8x8x4xf32>
    %5 = vector.shape_cast %4 : vector<1x1x8x8x4xf32> to vector<1x8x8x4xf32>
    %c0_i32 = arith.constant 0 : i32
    %6 = arith.cmpi sgt, %arg1, %c0_i32 : i32
    %cst = arith.constant 0.000000e+00 : f32
    %7 = vector.broadcast %cst : f32 to vector<1x8x8x4xf32>
    %8 = arith.select %6, %3, %7 : vector<1x8x8x4xf32>
    %c1_i32 = arith.constant 1 : i32
    %9 = arith.cmpi slt, %arg1, %c1_i32 : i32
    %cst_14 = arith.constant 0.000000e+00 : f32
    %10 = vector.broadcast %cst_14 : f32 to vector<1x8x8x4xf32>
    %11 = arith.select %9, %5, %10 : vector<1x8x8x4xf32>
    %12 = tpu.concatenate %8, %1, %11 in 0 : vector<1x8x8x4xf32>, vector<4x8x8x4xf32>, vector<1x8x8x4xf32> -> vector<6x8x8x4xf32>
    %cst_15 = arith.constant 0.000000e+00 : f32
    %13 = vector.broadcast %cst_15 : f32 to vector<6x1x8x4xf32>
    %14 = tpu.concatenate %13, %12, %13 in 1 : vector<6x1x8x4xf32>, vector<6x8x8x4xf32>, vector<6x1x8x4xf32> -> vector<6x10x8x4xf32>
    %cst_16 = arith.constant 0.000000e+00 : f32
    %15 = vector.broadcast %cst_16 : f32 to vector<6x10x1x4xf32>
    %16 = vector.extract_strided_slice %14 {offsets = [0, 0, 0, 0], sizes = [6, 10, 7, 4], strides = [1, 1, 1, 1]} : vector<6x10x8x4xf32> to vector<6x10x7x4xf32>
    %17 = tpu.concatenate %15, %16 in 2 : vector<6x10x1x4xf32>, vector<6x10x7x4xf32> -> vector<6x10x8x4xf32>
    %18 = vector.extract_strided_slice %14 {offsets = [0, 0, 1, 0], sizes = [6, 10, 7, 4], strides = [1, 1, 1, 1]} : vector<6x10x8x4xf32> to vector<6x10x7x4xf32>
    %19 = tpu.concatenate %18, %15 in 2 : vector<6x10x7x4xf32>, vector<6x10x1x4xf32> -> vector<6x10x8x4xf32>
    %20 = tpu.concatenate %17, %14, %19 in 3 : vector<6x10x8x4xf32>, vector<6x10x8x4xf32>, vector<6x10x8x4xf32> -> vector<6x10x8x12xf32>
    %c0_17 = arith.constant 0 : index
    %c0_18 = arith.constant 0 : index
    %c0_19 = arith.constant 0 : index
    %c0_20 = arith.constant 0 : index
    %21 = vector.load %arg9[%c0_17, %c0_18, %c0_19, %c0_20] : memref<6x10x8x12xf32, #tpu.memory_space<vmem>>, vector<6x10x8x12xf32>
    tpu.vector_store %arg9[%c0_17, %c0_18, %c0_19, %c0_20], %20 {strides = array<i32>} : memref<6x10x8x12xf32, #tpu.memory_space<vmem>>, vector<6x10x8x12xf32>,
    %cst_21 = arith.constant 0.000000e+00 : f32
    %22 = vector.broadcast %cst_21 : f32 to vector<256x128xf32>
    %c0_22 = arith.constant 0 : index
    %c0_23 = arith.constant 0 : index
    %c0_24 = arith.constant 0 : index
    %c0_25 = arith.constant 0 : index
    %23 = vector.load %arg9[%c0_22, %c0_23, %c0_24, %c0_25] : memref<6x10x8x12xf32, #tpu.memory_space<vmem>>, vector<4x8x8x12xf32>
    %24 = vector.shape_cast %23 : vector<4x8x8x12xf32> to vector<256x12xf32>
    %c0_26 = arith.constant 0 : index
    %c0_27 = arith.constant 0 : index
    %c0_28 = arith.constant 0 : index
    %25 = vector.load %arg5[%c0_26, %c0_27, %c0_28] : memref<9x12x128xf32, #tpu.memory_space<vmem>>, vector<1x12x128xf32>
    %26 = vector.shape_cast %25 : vector<1x12x128xf32> to vector<12x128xf32>
    %cst_29 = arith.constant dense<0.000000e+00> : vector<256x128xf32>
    %27 = tpu.matmul %24, %26, %cst_29 {dimension_numbers = #tpu.dot_dimension_numbers<[1], [0], [0], [1], [0, 0, 1, 1], [], []>} : vector<256x12xf32>, vector<12x128xf32>, vector<256x128xf32> -> vector<256x128xf32>
    %28 = arith.addf %22, %27 : vector<256x128xf32>
    %c0_30 = arith.constant 0 : index
    %c1 = arith.constant 1 : index
    %c0_31 = arith.constant 0 : index
    %c0_32 = arith.constant 0 : index
    %29 = vector.load %arg9[%c0_30, %c1, %c0_31, %c0_32] : memref<6x10x8x12xf32, #tpu.memory_space<vmem>>, vector<4x8x8x12xf32>
    %30 = vector.shape_cast %29 : vector<4x8x8x12xf32> to vector<256x12xf32>
    %c1_33 = arith.constant 1 : index
    %c0_34 = arith.constant 0 : index
    %c0_35 = arith.constant 0 : index
    %31 = vector.load %arg5[%c1_33, %c0_34, %c0_35] : memref<9x12x128xf32, #tpu.memory_space<vmem>>, vector<1x12x128xf32>
    %32 = vector.shape_cast %31 : vector<1x12x128xf32> to vector<12x128xf32>
    %cst_36 = arith.constant dense<0.000000e+00> : vector<256x128xf32>
    %33 = tpu.matmul %30, %32, %cst_36 {dimension_numbers = #tpu.dot_dimension_numbers<[1], [0], [0], [1], [0, 0, 1, 1], [], []>} : vector<256x12xf32>, vector<12x128xf32>, vector<256x128xf32> -> vector<256x128xf32>
    %34 = arith.addf %28, %33 : vector<256x128xf32>
    %c0_37 = arith.constant 0 : index
    %c2 = arith.constant 2 : index
    %c0_38 = arith.constant 0 : index
    %c0_39 = arith.constant 0 : index
    %35 = vector.load %arg9[%c0_37, %c2, %c0_38, %c0_39] : memref<6x10x8x12xf32, #tpu.memory_space<vmem>>, vector<4x8x8x12xf32>
    %36 = vector.shape_cast %35 : vector<4x8x8x12xf32> to vector<256x12xf32>
    %c2_40 = arith.constant 2 : index
    %c0_41 = arith.constant 0 : index
    %c0_42 = arith.constant 0 : index
    %37 = vector.load %arg5[%c2_40, %c0_41, %c0_42] : memref<9x12x128xf32, #tpu.memory_space<vmem>>, vector<1x12x128xf32>
    %38 = vector.shape_cast %37 : vector<1x12x128xf32> to vector<12x128xf32>
    %cst_43 = arith.constant dense<0.000000e+00> : vector<256x128xf32>
    %39 = tpu.matmul %36, %38, %cst_43 {dimension_numbers = #tpu.dot_dimension_numbers<[1], [0], [0], [1], [0, 0, 1, 1], [], []>} : vector<256x12xf32>, vector<12x128xf32>, vector<256x128xf32> -> vector<256x128xf32>
    %40 = arith.addf %34, %39 : vector<256x128xf32>
    %c1_44 = arith.constant 1 : index
    %c0_45 = arith.constant 0 : index
    %c0_46 = arith.constant 0 : index
    %c0_47 = arith.constant 0 : index
    %41 = vector.load %arg9[%c1_44, %c0_45, %c0_46, %c0_47] : memref<6x10x8x12xf32, #tpu.memory_space<vmem>>, vector<4x8x8x12xf32>
    %42 = vector.shape_cast %41 : vector<4x8x8x12xf32> to vector<256x12xf32>
    %c3 = arith.constant 3 : index
    %c0_48 = arith.constant 0 : index
    %c0_49 = arith.constant 0 : index
    %43 = vector.load %arg5[%c3, %c0_48, %c0_49] : memref<9x12x128xf32, #tpu.memory_space<vmem>>, vector<1x12x128xf32>
    %44 = vector.shape_cast %43 : vector<1x12x128xf32> to vector<12x128xf32>
    %cst_50 = arith.constant dense<0.000000e+00> : vector<256x128xf32>
    %45 = tpu.matmul %42, %44, %cst_50 {dimension_numbers = #tpu.dot_dimension_numbers<[1], [0], [0], [1], [0, 0, 1, 1], [], []>} : vector<256x12xf32>, vector<12x128xf32>, vector<256x128xf32> -> vector<256x128xf32>
    %46 = arith.addf %40, %45 : vector<256x128xf32>
    %c1_51 = arith.constant 1 : index
    %c1_52 = arith.constant 1 : index
    %c0_53 = arith.constant 0 : index
    %c0_54 = arith.constant 0 : index
    %47 = vector.load %arg9[%c1_51, %c1_52, %c0_53, %c0_54] : memref<6x10x8x12xf32, #tpu.memory_space<vmem>>, vector<4x8x8x12xf32>
    %48 = vector.shape_cast %47 : vector<4x8x8x12xf32> to vector<256x12xf32>
    %c4 = arith.constant 4 : index
    %c0_55 = arith.constant 0 : index
    %c0_56 = arith.constant 0 : index
    %49 = vector.load %arg5[%c4, %c0_55, %c0_56] : memref<9x12x128xf32, #tpu.memory_space<vmem>>, vector<1x12x128xf32>
    %50 = vector.shape_cast %49 : vector<1x12x128xf32> to vector<12x128xf32>
    %cst_57 = arith.constant dense<0.000000e+00> : vector<256x128xf32>
    %51 = tpu.matmul %48, %50, %cst_57 {dimension_numbers = #tpu.dot_dimension_numbers<[1], [0], [0], [1], [0, 0, 1, 1], [], []>} : vector<256x12xf32>, vector<12x128xf32>, vector<256x128xf32> -> vector<256x128xf32>
    %52 = arith.addf %46, %51 : vector<256x128xf32>
    %c1_58 = arith.constant 1 : index
    %c2_59 = arith.constant 2 : index
    %c0_60 = arith.constant 0 : index
    %c0_61 = arith.constant 0 : index
    %53 = vector.load %arg9[%c1_58, %c2_59, %c0_60, %c0_61] : memref<6x10x8x12xf32, #tpu.memory_space<vmem>>, vector<4x8x8x12xf32>
    %54 = vector.shape_cast %53 : vector<4x8x8x12xf32> to vector<256x12xf32>
    %c5 = arith.constant 5 : index
    %c0_62 = arith.constant 0 : index
    %c0_63 = arith.constant 0 : index
    %55 = vector.load %arg5[%c5, %c0_62, %c0_63] : memref<9x12x128xf32, #tpu.memory_space<vmem>>, vector<1x12x128xf32>
    %56 = vector.shape_cast %55 : vector<1x12x128xf32> to vector<12x128xf32>
    %cst_64 = arith.constant dense<0.000000e+00> : vector<256x128xf32>
    %57 = tpu.matmul %54, %56, %cst_64 {dimension_numbers = #tpu.dot_dimension_numbers<[1], [0], [0], [1], [0, 0, 1, 1], [], []>} : vector<256x12xf32>, vector<12x128xf32>, vector<256x128xf32> -> vector<256x128xf32>
    %58 = arith.addf %52, %57 : vector<256x128xf32>
    %c2_65 = arith.constant 2 : index
    %c0_66 = arith.constant 0 : index
    %c0_67 = arith.constant 0 : index
    %c0_68 = arith.constant 0 : index
    %59 = vector.load %arg9[%c2_65, %c0_66, %c0_67, %c0_68] : memref<6x10x8x12xf32, #tpu.memory_space<vmem>>, vector<4x8x8x12xf32>
    %60 = vector.shape_cast %59 : vector<4x8x8x12xf32> to vector<256x12xf32>
    %c6 = arith.constant 6 : index
    %c0_69 = arith.constant 0 : index
    %c0_70 = arith.constant 0 : index
    %61 = vector.load %arg5[%c6, %c0_69, %c0_70] : memref<9x12x128xf32, #tpu.memory_space<vmem>>, vector<1x12x128xf32>
    %62 = vector.shape_cast %61 : vector<1x12x128xf32> to vector<12x128xf32>
    %cst_71 = arith.constant dense<0.000000e+00> : vector<256x128xf32>
    %63 = tpu.matmul %60, %62, %cst_71 {dimension_numbers = #tpu.dot_dimension_numbers<[1], [0], [0], [1], [0, 0, 1, 1], [], []>} : vector<256x12xf32>, vector<12x128xf32>, vector<256x128xf32> -> vector<256x128xf32>
    %64 = arith.addf %58, %63 : vector<256x128xf32>
    %c2_72 = arith.constant 2 : index
    %c1_73 = arith.constant 1 : index
    %c0_74 = arith.constant 0 : index
    %c0_75 = arith.constant 0 : index
    %65 = vector.load %arg9[%c2_72, %c1_73, %c0_74, %c0_75] : memref<6x10x8x12xf32, #tpu.memory_space<vmem>>, vector<4x8x8x12xf32>
    %66 = vector.shape_cast %65 : vector<4x8x8x12xf32> to vector<256x12xf32>
    %c7 = arith.constant 7 : index
    %c0_76 = arith.constant 0 : index
    %c0_77 = arith.constant 0 : index
    %67 = vector.load %arg5[%c7, %c0_76, %c0_77] : memref<9x12x128xf32, #tpu.memory_space<vmem>>, vector<1x12x128xf32>
    %68 = vector.shape_cast %67 : vector<1x12x128xf32> to vector<12x128xf32>
    %cst_78 = arith.constant dense<0.000000e+00> : vector<256x128xf32>
    %69 = tpu.matmul %66, %68, %cst_78 {dimension_numbers = #tpu.dot_dimension_numbers<[1], [0], [0], [1], [0, 0, 1, 1], [], []>} : vector<256x12xf32>, vector<12x128xf32>, vector<256x128xf32> -> vector<256x128xf32>
    %70 = arith.addf %64, %69 : vector<256x128xf32>
    %c2_79 = arith.constant 2 : index
    %c2_80 = arith.constant 2 : index
    %c0_81 = arith.constant 0 : index
    %c0_82 = arith.constant 0 : index
    %71 = vector.load %arg9[%c2_79, %c2_80, %c0_81, %c0_82] : memref<6x10x8x12xf32, #tpu.memory_space<vmem>>, vector<4x8x8x12xf32>
    %72 = vector.shape_cast %71 : vector<4x8x8x12xf32> to vector<256x12xf32>
    %c8 = arith.constant 8 : index
    %c0_83 = arith.constant 0 : index
    %c0_84 = arith.constant 0 : index
    %73 = vector.load %arg5[%c8, %c0_83, %c0_84] : memref<9x12x128xf32, #tpu.memory_space<vmem>>, vector<1x12x128xf32>
    %74 = vector.shape_cast %73 : vector<1x12x128xf32> to vector<12x128xf32>
    %cst_85 = arith.constant dense<0.000000e+00> : vector<256x128xf32>
    %75 = tpu.matmul %72, %74, %cst_85 {dimension_numbers = #tpu.dot_dimension_numbers<[1], [0], [0], [1], [0, 0, 1, 1], [], []>} : vector<256x12xf32>, vector<12x128xf32>, vector<256x128xf32> -> vector<256x128xf32>
    %76 = arith.addf %70, %75 : vector<256x128xf32>
    %c0_86 = arith.constant 0 : index
    %c0_87 = arith.constant 0 : index
    %77 = vector.load %arg6[%c0_86, %c0_87] : memref<1x128xf32, #tpu.memory_space<vmem>>, vector<1x128xf32>
    %78 = vector.broadcast %77 : vector<1x128xf32> to vector<256x128xf32>
    %79 = arith.mulf %76, %78 : vector<256x128xf32>
    %c0_88 = arith.constant 0 : index
    %c0_89 = arith.constant 0 : index
    %80 = vector.load %arg7[%c0_88, %c0_89] : memref<1x128xf32, #tpu.memory_space<vmem>>, vector<1x128xf32>
    %81 = vector.broadcast %80 : vector<1x128xf32> to vector<256x128xf32>
    %82 = arith.addf %79, %81 : vector<256x128xf32>
    %cst_90 = arith.constant 0.000000e+00 : f32
    %83 = vector.broadcast %cst_90 : f32 to vector<256x128xf32>
    %84 = arith.maximumf %82, %83 : vector<256x128xf32>
    %85 = vector.shape_cast %84 : vector<256x128xf32> to vector<1x4x8x8x128xf32>
    %c0_91 = arith.constant 0 : index
    %c0_92 = arith.constant 0 : index
    %c0_93 = arith.constant 0 : index
    %c0_94 = arith.constant 0 : index
    %c0_95 = arith.constant 0 : index
    %86 = vector.load %arg8[%c0_91, %c0_92, %c0_93, %c0_94, %c0_95] : memref<1x4x8x8x128xf32, #tpu.memory_space<vmem>>, vector<1x4x8x8x128xf32>
    tpu.vector_store %arg8[%c0_91, %c0_92, %c0_93, %c0_94, %c0_95], %85 {strides = array<i32>} : memref<1x4x8x8x128xf32, #tpu.memory_space<vmem>>, vector<1x4x8x8x128xf32>,
    return
  }
  func.func @transform_0(%arg0: i32, %arg1: i32) -> (i32, i32, i32, i32, i32) {
    %c0_i32 = arith.constant 0 : i32
    %c0_i32_0 = arith.constant 0 : i32
    %c0_i32_1 = arith.constant 0 : i32
    %c0_i32_2 = arith.constant 0 : i32
    return %arg0, %arg1, %c0_i32, %c0_i32_0, %c0_i32_1 : i32, i32, i32, i32, i32
  }
  func.func @transform_1(%arg0: i32, %arg1: i32) -> (i32, i32, i32, i32, i32) {
    %c4_i32 = arith.constant 4 : i32
    %0 = arith.muli %arg1, %c4_i32 : i32
    %c1_i32 = arith.constant 1 : i32
    %1 = arith.subi %0, %c1_i32 : i32
    %c0_i32 = arith.constant 0 : i32
    %2 = arith.maxsi %1, %c0_i32 : i32
    %c0_i32_0 = arith.constant 0 : i32
    %c0_i32_1 = arith.constant 0 : i32
    %c0_i32_2 = arith.constant 0 : i32
    %c0_i32_3 = arith.constant 0 : i32
    return %arg0, %2, %c0_i32_0, %c0_i32_1, %c0_i32_2 : i32, i32, i32, i32, i32
  }
  func.func @transform_2(%arg0: i32, %arg1: i32) -> (i32, i32, i32, i32, i32) {
    %c1_i32 = arith.constant 1 : i32
    %0 = arith.addi %arg1, %c1_i32 : i32
    %c4_i32 = arith.constant 4 : i32
    %1 = arith.muli %0, %c4_i32 : i32
    %c7_i32 = arith.constant 7 : i32
    %2 = arith.minsi %1, %c7_i32 : i32
    %c0_i32 = arith.constant 0 : i32
    %c0_i32_0 = arith.constant 0 : i32
    %c0_i32_1 = arith.constant 0 : i32
    %c0_i32_2 = arith.constant 0 : i32
    return %arg0, %2, %c0_i32, %c0_i32_0, %c0_i32_1 : i32, i32, i32, i32, i32
  }
  func.func @transform_3(%arg0: i32, %arg1: i32) -> (i32, i32, i32) {
    %c0_i32 = arith.constant 0 : i32
    %c0_i32_0 = arith.constant 0 : i32
    %c0_i32_1 = arith.constant 0 : i32
    %c0_i32_2 = arith.constant 0 : i32
    return %c0_i32, %c0_i32_0, %c0_i32_1 : i32, i32, i32
  }
  func.func @transform_4(%arg0: i32, %arg1: i32) -> (i32, i32) {
    %c0_i32 = arith.constant 0 : i32
    %c0_i32_0 = arith.constant 0 : i32
    %c0_i32_1 = arith.constant 0 : i32
    return %c0_i32, %c0_i32_0 : i32, i32
  }
  func.func @transform_5(%arg0: i32, %arg1: i32) -> (i32, i32) {
    %c0_i32 = arith.constant 0 : i32
    %c0_i32_0 = arith.constant 0 : i32
    %c0_i32_1 = arith.constant 0 : i32
    return %c0_i32, %c0_i32_0 : i32, i32
  }
  func.func @transform_6(%arg0: i32, %arg1: i32) -> (i32, i32, i32, i32, i32) {
    %c0_i32 = arith.constant 0 : i32
    %c0_i32_0 = arith.constant 0 : i32
    %c0_i32_1 = arith.constant 0 : i32
    %c0_i32_2 = arith.constant 0 : i32
    return %arg0, %arg1, %c0_i32, %c0_i32_0, %c0_i32_1 : i32, i32, i32, i32, i32
  }
}

</mosaic_0001>

<llo_original>
// kernel: tpu_custom_call.1
$region0: #{tpu_custom_call.1}
  #allocation0 [shape = 'u32[]', space=smem, size = 0x4, offset = 0x4, fixed_abs, tag = 'smem constant byte address 0x4 - core index']
  #allocation1 [shape = 'u32[144,128]{1,0:T(1,128)}', space=vmem, size = 0x12000, scoped, tag = 'internal scratch']
  #allocation2 [shape = 'f32[6,10,8,12]{3,2,1,0:T(8,128)}', space=vmem, size = 0x3c000, scoped, tag = 'scratch operand']
  %s0 = inlined_call_operand.vmem [shape: f32[2,8,8,8,4], index: 0, kind: input, shape index: {}]
  %s1 = inlined_call_operand.vmem [shape: f32[2,8,8,8,4], index: 1, kind: input, shape index: {}]
  %s2 = inlined_call_operand.vmem [shape: f32[2,8,8,8,4], index: 2, kind: input, shape index: {}]
  %s3 = inlined_call_operand.vmem [shape: f32[9,12,128], index: 3, kind: input, shape index: {}]
  %s4 = inlined_call_operand.vmem [shape: f32[1,128], index: 4, kind: input, shape index: {}]
  %s5 = inlined_call_operand.vmem [shape: f32[1,128], index: 5, kind: input, shape index: {}]
  %s6 = inlined_call_operand.hbm [shape: f32[2,8,8,8,128], index: 6, kind: output, shape index: {}]
  %s7 = sld [smem:[#allocation0]]
  $region57: #{tpu_custom_call.1} parent=0
    _
  %s9 = ssub.s32 1, %s7
  %s10 = scalar_select 0, %s9, %s7
  $region1: #{tpu_custom_call.1} parent=0
    #allocation3 [shape = 'u8[262144]{0}', space=vmem, size = 0x40000, scoped, tag = 'output window, operand 0']
    #allocation4 [shape = 's32[2]{0}', space=sflag, size = 0x8, scoped, tag = 'scoped memory for tpu_custom_call.1']
    %11 = vsyncpa [#allocation4], 0
    %s12 = scalar_lea.sflag [#allocation4], 1
    %13 = vsyncpa %s12, 0
    loop: start=0, step=1, limit=6
    $region2: #{tpu_custom_call.1} parent=1 // loop_pre_header
      _
    $region3: #{tpu_custom_call.1} parent=1 // loop_header
      %s15 = sphi 0, %s19
      %p16 = scmp.ge.s32.totalorder %s15, 6
      %s22 = sphi 0, %s34
      %s23 = sphi 0, %s30
      %s24 = sphi 0, %s22
      %s25 = sphi 0, %s23
      %s26 = sphi 0, %s24
      %s27 = sphi 0, %s25
      %s39 = sphi 0, %s41
      %s42 = sphi 0, %s39
      %s43 = sphi 0, %s42
      %s59 = sphi 0, %s43
      %s75 = sphi 0, %s77
      %s78 = sphi 0, %s75
      %s79 = sphi 0, %s78
      %s95 = sphi 0, %s79
      %s111 = sphi 0, %s113
      %s114 = sphi 0, %s111
      %s115 = sphi 0, %s114
      %s131 = sphi 0, %s115
      %s135 = sphi 0, %s135
      %s137 = sphi 0, %s135
      %s138 = sphi 0, %s137
      %s152 = sphi 0, %s138
      %s156 = sphi 0, %s156
      %s158 = sphi 0, %s156
      %s159 = sphi 0, %s158
      %s173 = sphi 0, %s159
      %s177 = sphi 0, %s177
      %s179 = sphi 0, %s177
      %s180 = sphi 0, %s179
      %s194 = sphi 0, %s180
      %s202 = sphi 0, %s204
      %s205 = sphi 0, %s202
      %s206 = sphi 0, %s205
      %s222 = sphi 0, %s206
    $region4: #{tpu_custom_call.1} parent=1 // loop_header_branch
      %18 = sbr.rel (%p16) target = $region8
    $region5: #{tpu_custom_call.1} parent=1 // loop_body
      %s20 = ssub.s32 %s15, 1
      %s21 = ssub.s32 %s15, 2
      %s28 = sadd.s32 1, %s23
      %p29 = scmp.ge.s32.totalorder %s28, 2
      %s30 = scalar_select %p29, 0, %s28
      %s31 = sadd.s32 1, %s22
      %s32 = scalar_select %p29, %s31, %s22
      %p33 = scmp.ge.s32.totalorder %s32, 2
      %s34 = scalar_select %p33, 0, %s32
      %s35 = ssub.s32 %s22, %s34
      %s36 = ssub.s32 %s23, %s30
      %s37 = sor.u32 %s35, %s36
      %p38 = scmp.eq.s32.totalorder %s37, 0
      %s40 = sadd.s32 %s39, 1
      %s41 = scalar_select %p38, %s39, %s40
      %p44 = pneg %p38
      %p45 = scmp.eq.s32.totalorder %s15, 3
      %p46 = por %p44, %p45
      %p47 = scmp.ne.s32.totalorder %s39, %s42
      %p48 = scmp.eq.s32.totalorder %s15, 0
      %p49 = por %p47, %p48
      %p50 = scmp.ne.s32.totalorder %s39, %s42
      %p51 = scmp.eq.s32.totalorder %s20, 3
      %p52 = por %p50, %p51
      %p53 = scmp.ne.s32.totalorder %s42, %s43
      %p54 = scmp.eq.s32.totalorder %s20, 0
      %p55 = por %p53, %p54
      %p56 = scmp.ne.s32.totalorder %s42, %s43
      %p57 = scmp.eq.s32.totalorder %s21, 3
      %p58 = por %p56, %p57
      %p60 = scmp.ne.s32.totalorder %s43, %s59
      %p61 = scmp.eq.s32.totalorder %s21, 0
      %p62 = por %p60, %p61
      %s63 = smul.u32 %s23, 4
      %s64 = ssub.s32 %s63, 1
      %p65 = scmp.gt.s32.totalorder %s64, 0
      %s66 = scalar_select %p65, %s64, 0
      %s67 = smul.u32 %s30, 4
      %s68 = ssub.s32 %s67, 1
      %p69 = scmp.gt.s32.totalorder %s68, 0
      %s70 = scalar_select %p69, %s68, 0
      %s71 = ssub.s32 %s22, %s34
      %s72 = ssub.s32 %s66, %s70
      %s73 = sor.u32 %s71, %s72
      %p74 = scmp.eq.s32.totalorder %s73, 0
      %s76 = sadd.s32 %s75, 1
      %s77 = scalar_select %p74, %s75, %s76
      %p80 = pneg %p74
      %p81 = scmp.eq.s32.totalorder %s15, 3
      %p82 = por %p80, %p81
      %p83 = scmp.ne.s32.totalorder %s75, %s78
      %p84 = scmp.eq.s32.totalorder %s15, 0
      %p85 = por %p83, %p84
      %p86 = scmp.ne.s32.totalorder %s75, %s78
      %p87 = scmp.eq.s32.totalorder %s20, 3
      %p88 = por %p86, %p87
      %p89 = scmp.ne.s32.totalorder %s78, %s79
      %p90 = scmp.eq.s32.totalorder %s20, 0
      %p91 = por %p89, %p90
      %p92 = scmp.ne.s32.totalorder %s78, %s79
      %p93 = scmp.eq.s32.totalorder %s21, 3
      %p94 = por %p92, %p93
      %p96 = scmp.ne.s32.totalorder %s79, %s95
      %p97 = scmp.eq.s32.totalorder %s21, 0
      %p98 = por %p96, %p97
      %s99 = sadd.s32 %s23, 1
      %s100 = smul.u32 %s99, 4
      %p101 = scmp.lt.s32.totalorder %s100, 7
      %s102 = scalar_select %p101, %s100, 7
      %s103 = sadd.s32 %s30, 1
      %s104 = smul.u32 %s103, 4
      %p105 = scmp.lt.s32.totalorder %s104, 7
      %s106 = scalar_select %p105, %s104, 7
      %s107 = ssub.s32 %s22, %s34
      %s108 = ssub.s32 %s102, %s106
      %s109 = sor.u32 %s107, %s108
      %p110 = scmp.eq.s32.totalorder %s109, 0
      %s112 = sadd.s32 %s111, 1
      %s113 = scalar_select %p110, %s111, %s112
      %p116 = pneg %p110
      %p117 = scmp.eq.s32.totalorder %s15, 3
      %p118 = por %p116, %p117
      %p119 = scmp.ne.s32.totalorder %s111, %s114
      %p120 = scmp.eq.s32.totalorder %s15, 0
      %p121 = por %p119, %p120
      %p122 = scmp.ne.s32.totalorder %s111, %s114
      %p123 = scmp.eq.s32.totalorder %s20, 3
      %p124 = por %p122, %p123
      %p125 = scmp.ne.s32.totalorder %s114, %s115
      %p126 = scmp.eq.s32.totalorder %s20, 0
      %p127 = por %p125, %p126
      %p128 = scmp.ne.s32.totalorder %s114, %s115
      %p129 = scmp.eq.s32.totalorder %s21, 3
      %p130 = por %p128, %p129
      %p132 = scmp.ne.s32.totalorder %s115, %s131
      %p133 = scmp.eq.s32.totalorder %s21, 0
      %p134 = por %p132, %p133
      %s136 = sadd.s32 %s135, 1
      %p139 = scmp.eq.s32.totalorder %s15, 3
      %p140 = scmp.ne.s32.totalorder %s135, %s137
      %p141 = scmp.eq.s32.totalorder %s15, 0
      %p142 = por %p140, %p141
      %p143 = scmp.ne.s32.totalorder %s135, %s137
      %p144 = scmp.eq.s32.totalorder %s20, 3
      %p145 = por %p143, %p144
      %p146 = scmp.ne.s32.totalorder %s137, %s138
      %p147 = scmp.eq.s32.totalorder %s20, 0
      %p148 = por %p146, %p147
      %p149 = scmp.ne.s32.totalorder %s137, %s138
      %p150 = scmp.eq.s32.totalorder %s21, 3
      %p151 = por %p149, %p150
      %p153 = scmp.ne.s32.totalorder %s138, %s152
      %p154 = scmp.eq.s32.totalorder %s21, 0
      %p155 = por %p153, %p154
      %s157 = sadd.s32 %s156, 1
      %p160 = scmp.eq.s32.totalorder %s15, 3
      %p161 = scmp.ne.s32.totalorder %s156, %s158
      %p162 = scmp.eq.s32.totalorder %s15, 0
      %p163 = por %p161, %p162
      %p164 = scmp.ne.s32.totalorder %s156, %s158
      %p165 = scmp.eq.s32.totalorder %s20, 3
      %p166 = por %p164, %p165
      %p167 = scmp.ne.s32.totalorder %s158, %s159
      %p168 = scmp.eq.s32.totalorder %s20, 0
      %p169 = por %p167, %p168
      %p170 = scmp.ne.s32.totalorder %s158, %s159
      %p171 = scmp.eq.s32.totalorder %s21, 3
      %p172 = por %p170, %p171
      %p174 = scmp.ne.s32.totalorder %s159, %s173
      %p175 = scmp.eq.s32.totalorder %s21, 0
      %p176 = por %p174, %p175
      %s178 = sadd.s32 %s177, 1
      %p181 = scmp.eq.s32.totalorder %s15, 3
      %p182 = scmp.ne.s32.totalorder %s177, %s179
      %p183 = scmp.eq.s32.totalorder %s15, 0
      %p184 = por %p182, %p183
      %p185 = scmp.ne.s32.totalorder %s177, %s179
      %p186 = scmp.eq.s32.totalorder %s20, 3
      %p187 = por %p185, %p186
      %p188 = scmp.ne.s32.totalorder %s179, %s180
      %p189 = scmp.eq.s32.totalorder %s20, 0
      %p190 = por %p188, %p189
      %p191 = scmp.ne.s32.totalorder %s179, %s180
      %p192 = scmp.eq.s32.totalorder %s21, 3
      %p193 = por %p191, %p192
      %p195 = scmp.ne.s32.totalorder %s180, %s194
      %p196 = scmp.eq.s32.totalorder %s21, 0
      %p197 = por %p195, %p196
      %s198 = ssub.s32 %s22, %s34
      %s199 = ssub.s32 %s23, %s30
      %s200 = sor.u32 %s198, %s199
      %p201 = scmp.eq.s32.totalorder %s200, 0
      %s203 = sadd.s32 %s202, 1
      %s204 = scalar_select %p201, %s202, %s203
      %p207 = pneg %p201
      %p208 = scmp.eq.s32.totalorder %s15, 3
      %p209 = por %p207, %p208
      %p210 = scmp.ne.s32.totalorder %s202, %s205
      %p211 = scmp.eq.s32.totalorder %s15, 0
      %p212 = por %p210, %p211
      %p213 = scmp.ne.s32.totalorder %s202, %s205
      %p214 = scmp.eq.s32.totalorder %s20, 3
      %p215 = por %p213, %p214
      %p216 = scmp.ne.s32.totalorder %s205, %s206
      %p217 = scmp.eq.s32.totalorder %s20, 0
      %p218 = por %p216, %p217
      %p219 = scmp.ne.s32.totalorder %s205, %s206
      %p220 = scmp.eq.s32.totalorder %s21, 3
      %p221 = por %p219, %p220
      %p223 = scmp.ne.s32.totalorder %s206, %s222
      %p224 = scmp.eq.s32.totalorder %s21, 0
      %p225 = por %p223, %p224
      %p226 = scmp.le.s32.totalorder 1, %s15
      %p227 = scmp.lt.s32.totalorder %s15, 5
      %p228 = pnand %p226, %p227
      %p229 = pneg %p228
      // Predicated region
      $region9: #{tpu_custom_call.1} parent=5 // pred_check
        _
      $region10: #{tpu_custom_call.1} parent=5 // pred_check_branch
        %231 = sbr.rel (%p228) target = $region12
      $region11: #{tpu_custom_call.1} parent=5 // pred_region
        %s232 = ssub.s32 %s15, 1
        // Predicated region
        $region13: #{tpu_custom_call.1} parent=11 // pred_check
          %p233 = pneg %p148
        $region14: #{tpu_custom_call.1} parent=11 // pred_check_branch
          %235 = sbr.rel (%p233) target = $region16
        $region15: #{tpu_custom_call.1} parent=11 // pred_region
          _
        $region16: #{tpu_custom_call.1} parent=11 // pred_fallthru
          _
        // Predicated region
        $region17: #{tpu_custom_call.1} parent=11 // pred_check
          %p236 = pneg %p169
        $region18: #{tpu_custom_call.1} parent=11 // pred_check_branch
          %238 = sbr.rel (%p236) target = $region20
        $region19: #{tpu_custom_call.1} parent=11 // pred_region
          _
        $region20: #{tpu_custom_call.1} parent=11 // pred_fallthru
          _
        // Predicated region
        $region21: #{tpu_custom_call.1} parent=11 // pred_check
          %p239 = pneg %p190
        $region22: #{tpu_custom_call.1} parent=11 // pred_check_branch
          %241 = sbr.rel (%p239) target = $region24
        $region23: #{tpu_custom_call.1} parent=11 // pred_region
          _
        $region24: #{tpu_custom_call.1} parent=11 // pred_fallthru
          _
      $region12: #{tpu_custom_call.1} parent=5 // pred_fallthru
        _
      %p242 = scmp.lt.s32.totalorder %s15, 4
      // Predicated region
      $region25: #{tpu_custom_call.1} parent=5 // pred_check
        %p243 = pneg %p242
      $region26: #{tpu_custom_call.1} parent=5 // pred_check_branch
        %245 = sbr.rel (%p243) target = $region28
      $region27: #{tpu_custom_call.1} parent=5 // pred_region
        // Predicated region
        $region29: #{tpu_custom_call.1} parent=27 // pred_check
          %p246 = pneg %p49
        $region30: #{tpu_custom_call.1} parent=27 // pred_check_branch
          %248 = sbr.rel (%p246) target = $region32
        $region31: #{tpu_custom_call.1} parent=27 // pred_region
          %s249 = smul.u32 4, %s23
          %p250 = scmp.lt.s32.totalorder %s22, 1
          %s251 = scalar_select %p250, %s22, 1
          %p252 = scmp.lt.s32.totalorder %s249, 7
          %s253 = scalar_select %p252, %s249, 7
          %s254 = smul.addr %s253, 8
          %s255 = smul.addr %s251, 64
          %s256 = sadd.s32 %s254, %s255
          %s257 = smul.addr %s256, 8
          %s258 = scalar_lea.vmem %s0, %s257
          %s259 = smul.u32 4, %s23
        $region32: #{tpu_custom_call.1} parent=27 // pred_fallthru
          _
        // Predicated region
        $region33: #{tpu_custom_call.1} parent=27 // pred_check
          %p260 = pneg %p85
        $region34: #{tpu_custom_call.1} parent=27 // pred_check_branch
          %262 = sbr.rel (%p260) target = $region36
        $region35: #{tpu_custom_call.1} parent=27 // pred_region
          %s263 = smul.u32 %s23, 4
          %s264 = ssub.s32 %s263, 1
          %p265 = scmp.gt.s32.totalorder %s264, 0
          %s266 = scalar_select %p265, %s264, 0
          %p267 = scmp.lt.s32.totalorder %s22, 1
          %s268 = scalar_select %p267, %s22, 1
          %p269 = scmp.lt.s32.totalorder %s266, 7
          %s270 = scalar_select %p269, %s266, 7
          %s271 = smul.addr %s270, 8
          %s272 = smul.addr %s268, 64
          %s273 = sadd.s32 %s271, %s272
          %s274 = smul.addr %s273, 8
          %s275 = scalar_lea.vmem %s1, %s274
          %s276 = smul.u32 %s23, 4
          %s277 = ssub.s32 %s276, 1
          %p278 = scmp.gt.s32.totalorder %s277, 0
          %s279 = scalar_select %p278, %s277, 0
        $region36: #{tpu_custom_call.1} parent=27 // pred_fallthru
          _
        // Predicated region
        $region37: #{tpu_custom_call.1} parent=27 // pred_check
          %p280 = pneg %p121
        $region38: #{tpu_custom_call.1} parent=27 // pred_check_branch
          %282 = sbr.rel (%p280) target = $region40
        $region39: #{tpu_custom_call.1} parent=27 // pred_region
          %s283 = sadd.s32 %s23, 1
          %s284 = smul.u32 %s283, 4
          %p285 = scmp.lt.s32.totalorder %s284, 7
          %s286 = scalar_select %p285, %s284, 7
          %p287 = scmp.lt.s32.totalorder %s22, 1
          %s288 = scalar_select %p287, %s22, 1
          %p289 = scmp.lt.s32.totalorder %s286, 7
          %s290 = scalar_select %p289, %s286, 7
          %s291 = smul.addr %s290, 8
          %s292 = smul.addr %s288, 64
          %s293 = sadd.s32 %s291, %s292
          %s294 = smul.addr %s293, 8
          %s295 = scalar_lea.vmem %s2, %s294
          %s296 = sadd.s32 %s23, 1
          %s297 = smul.u32 %s296, 4
          %p298 = scmp.lt.s32.totalorder %s297, 7
          %s299 = scalar_select %p298, %s297, 7
        $region40: #{tpu_custom_call.1} parent=27 // pred_fallthru
          _
      $region28: #{tpu_custom_call.1} parent=5 // pred_fallthru
        _
      %p300 = scmp.le.s32.totalorder 1, %s15
      %p301 = scmp.lt.s32.totalorder %s15, 5
      %p302 = pnand %p300, %p301
      %p303 = pneg %p302
      // Predicated region
      $region41: #{tpu_custom_call.1} parent=5 // pred_check
        _
      $region42: #{tpu_custom_call.1} parent=5 // pred_check_branch
        %305 = sbr.rel (%p302) target = $region44
      $region43: #{tpu_custom_call.1} parent=5 // pred_region
        %s306 = ssub.s32 %s15, 1
        %s307 = smul.u32 4, %s25
        %p308 = scmp.lt.s32.totalorder %s24, 1
        %s309 = scalar_select %p308, %s24, 1
        %p310 = scmp.lt.s32.totalorder %s307, 7
        %s311 = scalar_select %p310, %s307, 7
        %s312 = smul.addr %s311, 8
        %s313 = smul.addr %s309, 64
        %s314 = sadd.s32 %s312, %s313
        %s315 = smul.addr %s314, 8
        %s316 = scalar_lea.vmem %s0, %s315
        %p317 = pneg %p55
        %p318 = pneg %p52
        %s319 = smul.u32 %s25, 4
        %s320 = ssub.s32 %s319, 1
        %p321 = scmp.gt.s32.totalorder %s320, 0
        %s322 = scalar_select %p321, %s320, 0
        %p323 = scmp.lt.s32.totalorder %s24, 1
        %s324 = scalar_select %p323, %s24, 1
        %p325 = scmp.lt.s32.totalorder %s322, 7
        %s326 = scalar_select %p325, %s322, 7
        %s327 = smul.addr %s326, 8
        %s328 = smul.addr %s324, 64
        %s329 = sadd.s32 %s327, %s328
        %s330 = smul.addr %s329, 8
        %s331 = scalar_lea.vmem %s1, %s330
        %p332 = pneg %p91
        %p333 = pneg %p88
        %s334 = sadd.s32 %s25, 1
        %s335 = smul.u32 %s334, 4
        %p336 = scmp.lt.s32.totalorder %s335, 7
        %s337 = scalar_select %p336, %s335, 7
        %p338 = scmp.lt.s32.totalorder %s24, 1
        %s339 = scalar_select %p338, %s24, 1
        %p340 = scmp.lt.s32.totalorder %s337, 7
        %s341 = scalar_select %p340, %s337, 7
        %s342 = smul.addr %s341, 8
        %s343 = smul.addr %s339, 64
        %s344 = sadd.s32 %s342, %s343
        %s345 = smul.addr %s344, 8
        %s346 = scalar_lea.vmem %s2, %s345
        %p347 = pneg %p127
        %p348 = pneg %p124
        %p349 = pneg %p148
        %p350 = pneg %p145
        %p351 = pneg %p169
        %p352 = pneg %p166
        %p353 = pneg %p190
        %p354 = pneg %p187
        %p355 = pneg %p218
        %p356 = pneg %p215
        %s357 = sand.u32 %s205, 1
        %s358 = scalar_lea.sflag [#allocation4], %s357
        %s359 = sand.u32 %s205, 1
        %s360 = smul.addr %s359, 256
        %s361 = scalar_lea.vmem [#allocation3], %s360
        %s362 = smul.u32 4, %s25
        %p363 = scmp.lt.s32.totalorder %s24, 1
        %s364 = scalar_select %p363, %s24, 1
        %p365 = scmp.lt.s32.totalorder %s362, 7
        %s366 = scalar_select %p365, %s362, 7
        %s367 = smul.addr %s366, 8
        %s368 = smul.addr %s364, 64
        %s369 = sadd.s32 %s367, %s368
        %s370 = smul.addr %s369, 8
        %s371 = scalar_lea.vmem %s0, %s370
        %s372 = smul.u32 4, %s25
        %s373 = smul.u32 %s25, 4
        %s374 = ssub.s32 %s373, 1
        %p375 = scmp.gt.s32.totalorder %s374, 0
        %s376 = scalar_select %p375, %s374, 0
        %p377 = scmp.lt.s32.totalorder %s24, 1
        %s378 = scalar_select %p377, %s24, 1
        %p379 = scmp.lt.s32.totalorder %s376, 7
        %s380 = scalar_select %p379, %s376, 7
        %s381 = smul.addr %s380, 8
        %s382 = smul.addr %s378, 64
        %s383 = sadd.s32 %s381, %s382
        %s384 = smul.addr %s383, 8
        %s385 = scalar_lea.vmem %s1, %s384
        %s386 = smul.u32 %s25, 4
        %s387 = ssub.s32 %s386, 1
        %p388 = scmp.gt.s32.totalorder %s387, 0
        %s389 = scalar_select %p388, %s387, 0
        %s390 = sadd.s32 %s25, 1
        %s391 = smul.u32 %s390, 4
        %p392 = scmp.lt.s32.totalorder %s391, 7
        %s393 = scalar_select %p392, %s391, 7
        %p394 = scmp.lt.s32.totalorder %s24, 1
        %s395 = scalar_select %p394, %s24, 1
        %p396 = scmp.lt.s32.totalorder %s393, 7
        %s397 = scalar_select %p396, %s393, 7
        %s398 = smul.addr %s397, 8
        %s399 = smul.addr %s395, 64
        %s400 = sadd.s32 %s398, %s399
        %s401 = smul.addr %s400, 8
        %s402 = scalar_lea.vmem %s2, %s401
        %s403 = sadd.s32 %s25, 1
        %s404 = smul.u32 %s403, 4
        %p405 = scmp.lt.s32.totalorder %s404, 7
        %s406 = scalar_select %p405, %s404, 7
        %s407 = smul.u32 4, %s25
        %v408 = vld [vmem:[%s371] sm:$0xff]
        %v409 = vld [vmem:[%s371 + $0x8] sm:$0xff]
        %v410 = vld [vmem:[%s371 + $0x10] sm:$0xff]
        %v411 = vld [vmem:[%s371 + $0x18] sm:$0xff]
        %v412 = vld [vmem:[%s371 + $0x20] sm:$0xff]
        %v413 = vld [vmem:[%s371 + $0x28] sm:$0xff]
        %v414 = vld [vmem:[%s371 + $0x30] sm:$0xff]
        %v415 = vld [vmem:[%s371 + $0x38] sm:$0xff]
        %v416 = vld [vmem:[%s371 + $0x40] sm:$0xff]
        %v417 = vld [vmem:[%s371 + $0x48] sm:$0xff]
        %v418 = vld [vmem:[%s371 + $0x50] sm:$0xff]
        %v419 = vld [vmem:[%s371 + $0x58] sm:$0xff]
        %v420 = vld [vmem:[%s371 + $0x60] sm:$0xff]
        %v421 = vld [vmem:[%s371 + $0x68] sm:$0xff]
        %v422 = vld [vmem:[%s371 + $0x70] sm:$0xff]
        %v423 = vld [vmem:[%s371 + $0x78] sm:$0xff]
        %v424 = vld [vmem:[%s371 + $0x80] sm:$0xff]
        %v425 = vld [vmem:[%s371 + $0x88] sm:$0xff]
        %v426 = vld [vmem:[%s371 + $0x90] sm:$0xff]
        %v427 = vld [vmem:[%s371 + $0x98] sm:$0xff]
        %v428 = vld [vmem:[%s371 + $0xa0] sm:$0xff]
        %v429 = vld [vmem:[%s371 + $0xa8] sm:$0xff]
        %v430 = vld [vmem:[%s371 + $0xb0] sm:$0xff]
        %v431 = vld [vmem:[%s371 + $0xb8] sm:$0xff]
        %v432 = vld [vmem:[%s371 + $0xc0] sm:$0xff]
        %v433 = vld [vmem:[%s371 + $0xc8] sm:$0xff]
        %v434 = vld [vmem:[%s371 + $0xd0] sm:$0xff]
        %v435 = vld [vmem:[%s371 + $0xd8] sm:$0xff]
        %v436 = vld [vmem:[%s371 + $0xe0] sm:$0xff]
        %v437 = vld [vmem:[%s371 + $0xe8] sm:$0xff]
        %v438 = vld [vmem:[%s371 + $0xf0] sm:$0xff]
        %v439 = vld [vmem:[%s371 + $0xf8] sm:$0xff]
        %v440 = vld [vmem:[%s385] sm:$0xff]
        %v441 = vld [vmem:[%s385 + $0x8] sm:$0xff]
        %v442 = vld [vmem:[%s385 + $0x10] sm:$0xff]
        %v443 = vld [vmem:[%s385 + $0x18] sm:$0xff]
        %v444 = vld [vmem:[%s385 + $0x20] sm:$0xff]
        %v445 = vld [vmem:[%s385 + $0x28] sm:$0xff]
        %v446 = vld [vmem:[%s385 + $0x30] sm:$0xff]
        %v447 = vld [vmem:[%s385 + $0x38] sm:$0xff]
        %v448 = vld [vmem:[%s402] sm:$0xff]
        %v449 = vld [vmem:[%s402 + $0x8] sm:$0xff]
        %v450 = vld [vmem:[%s402 + $0x10] sm:$0xff]
        %v451 = vld [vmem:[%s402 + $0x18] sm:$0xff]
        %v452 = vld [vmem:[%s402 + $0x20] sm:$0xff]
        %v453 = vld [vmem:[%s402 + $0x28] sm:$0xff]
        %v454 = vld [vmem:[%s402 + $0x30] sm:$0xff]
        %v455 = vld [vmem:[%s402 + $0x38] sm:$0xff]
        %p456 = scmp.gt.s32.totalorder %s25, 0
        %s457 = scalar_select %p456, 1, 0
        %v458 = vstv %s457
        %vm459 = vcmp.eq.s32.totalorder %v458, 1
        %v460 = vsel %vm459, %v440, 0.0
        %v461 = vsel %vm459, %v441, 0.0
        %v462 = vsel %vm459, %v442, 0.0
        %v463 = vsel %vm459, %v443, 0.0
        %v464 = vsel %vm459, %v444, 0.0
        %v465 = vsel %vm459, %v445, 0.0
        %v466 = vsel %vm459, %v446, 0.0
        %v467 = vsel %vm459, %v447, 0.0
        %p468 = scmp.lt.s32.totalorder %s25, 1
        %s469 = scalar_select %p468, 1, 0
        %v470 = vstv %s469
        %vm471 = vcmp.eq.s32.totalorder %v470, 1
        %v472 = vsel %vm471, %v448, 0.0
        %v473 = vsel %vm471, %v449, 0.0
        %v474 = vsel %vm471, %v450, 0.0
        %v475 = vsel %vm471, %v451, 0.0
        %v476 = vsel %vm471, %v452, 0.0
        %v477 = vsel %vm471, %v453, 0.0
        %v478 = vsel %vm471, %v454, 0.0
        %v479 = vsel %vm471, %v455, 0.0
        %v529 = vrot.slane 0.0, 7
        %v530 = vrot.slane %v460, 7
        %v531 = vrot.slane %v461, 7
        %v532 = vrot.slane %v462, 7
        %v533 = vrot.slane %v463, 7
        %v534 = vrot.slane %v464, 7
        %v535 = vrot.slane %v465, 7
        %v536 = vrot.slane %v466, 7
        %v537 = vrot.slane %v467, 7
        %v538 = vrot.slane %v408, 7
        %v539 = vrot.slane %v409, 7
        %v540 = vrot.slane %v410, 7
        %v541 = vrot.slane %v411, 7
        %v542 = vrot.slane %v412, 7
        %v543 = vrot.slane %v413, 7
        %v544 = vrot.slane %v414, 7
        %v545 = vrot.slane %v415, 7
        %v546 = vrot.slane %v416, 7
        %v547 = vrot.slane %v417, 7
        %v548 = vrot.slane %v418, 7
        %v549 = vrot.slane %v419, 7
        %v550 = vrot.slane %v420, 7
        %v551 = vrot.slane %v421, 7
        %v552 = vrot.slane %v422, 7
        %v553 = vrot.slane %v423, 7
        %v554 = vrot.slane %v424, 7
        %v555 = vrot.slane %v425, 7
        %v556 = vrot.slane %v426, 7
        %v557 = vrot.slane %v427, 7
        %v558 = vrot.slane %v428, 7
        %v559 = vrot.slane %v429, 7
        %v560 = vrot.slane %v430, 7
        %v561 = vrot.slane %v431, 7
        %v562 = vrot.slane %v432, 7
        %v563 = vrot.slane %v433, 7
        %v564 = vrot.slane %v434, 7
        %v565 = vrot.slane %v435, 7
        %v566 = vrot.slane %v436, 7
        %v567 = vrot.slane %v437, 7
        %v568 = vrot.slane %v438, 7
        %v569 = vrot.slane %v439, 7
        %v570 = vrot.slane %v472, 7
        %v571 = vrot.slane %v473, 7
        %v572 = vrot.slane %v474, 7
        %v573 = vrot.slane %v475, 7
        %v574 = vrot.slane %v476, 7
        %v575 = vrot.slane %v477, 7
        %v576 = vrot.slane %v478, 7
        %v577 = vrot.slane %v479, 7
        %vm627 = vcmask 1040384
        %v628 = vsel %vm627, 0.0, %v529
        %v629 = vsel %vm627, 0.0, %v530
        %v630 = vsel %vm627, 0.0, %v531
        %v631 = vsel %vm627, 0.0, %v532
        %v632 = vsel %vm627, 0.0, %v533
        %v633 = vsel %vm627, 0.0, %v534
        %v634 = vsel %vm627, 0.0, %v535
        %v635 = vsel %vm627, 0.0, %v536
        %v636 = vsel %vm627, 0.0, %v537
        %v637 = vsel %vm627, 0.0, %v538
        %v638 = vsel %vm627, 0.0, %v539
        %v639 = vsel %vm627, 0.0, %v540
        %v640 = vsel %vm627, 0.0, %v541
        %v641 = vsel %vm627, 0.0, %v542
        %v642 = vsel %vm627, 0.0, %v543
        %v643 = vsel %vm627, 0.0, %v544
        %v644 = vsel %vm627, 0.0, %v545
        %v645 = vsel %vm627, 0.0, %v546
        %v646 = vsel %vm627, 0.0, %v547
        %v647 = vsel %vm627, 0.0, %v548
        %v648 = vsel %vm627, 0.0, %v549
        %v649 = vsel %vm627, 0.0, %v550
        %v650 = vsel %vm627, 0.0, %v551
        %v651 = vsel %vm627, 0.0, %v552
        %v652 = vsel %vm627, 0.0, %v553
        %v653 = vsel %vm627, 0.0, %v554
        %v654 = vsel %vm627, 0.0, %v555
        %v655 = vsel %vm627, 0.0, %v556
        %v656 = vsel %vm627, 0.0, %v557
        %v657 = vsel %vm627, 0.0, %v558
        %v658 = vsel %vm627, 0.0, %v559
        %v659 = vsel %vm627, 0.0, %v560
        %v660 = vsel %vm627, 0.0, %v561
        %v661 = vsel %vm627, 0.0, %v562
        %v662 = vsel %vm627, 0.0, %v563
        %v663 = vsel %vm627, 0.0, %v564
        %v664 = vsel %vm627, 0.0, %v565
        %v665 = vsel %vm627, 0.0, %v566
        %v666 = vsel %vm627, 0.0, %v567
        %v667 = vsel %vm627, 0.0, %v568
        %v668 = vsel %vm627, 0.0, %v569
        %v669 = vsel %vm627, 0.0, %v570
        %v670 = vsel %vm627, 0.0, %v571
        %v671 = vsel %vm627, 0.0, %v572
        %v672 = vsel %vm627, 0.0, %v573
        %v673 = vsel %vm627, 0.0, %v574
        %v674 = vsel %vm627, 0.0, %v575
        %v675 = vsel %vm627, 0.0, %v576
        %v676 = vsel %vm627, 0.0, %v577
        %v677 = vrot.slane 0.0, 1
        %v678 = vrot.slane %v460, 1
        %v679 = vrot.slane %v461, 1
        %v680 = vrot.slane %v462, 1
        %v681 = vrot.slane %v463, 1
        %v682 = vrot.slane %v464, 1
        %v683 = vrot.slane %v465, 1
        %v684 = vrot.slane %v466, 1
        %v685 = vrot.slane %v467, 1
        %v686 = vrot.slane %v408, 1
        %v687 = vrot.slane %v409, 1
        %v688 = vrot.slane %v410, 1
        %v689 = vrot.slane %v411, 1
        %v690 = vrot.slane %v412, 1
        %v691 = vrot.slane %v413, 1
        %v692 = vrot.slane %v414, 1
        %v693 = vrot.slane %v415, 1
        %v694 = vrot.slane %v416, 1
        %v695 = vrot.slane %v417, 1
        %v696 = vrot.slane %v418, 1
        %v697 = vrot.slane %v419, 1
        %v698 = vrot.slane %v420, 1
        %v699 = vrot.slane %v421, 1
        %v700 = vrot.slane %v422, 1
        %v701 = vrot.slane %v423, 1
        %v702 = vrot.slane %v424, 1
        %v703 = vrot.slane %v425, 1
        %v704 = vrot.slane %v426, 1
        %v705 = vrot.slane %v427, 1
        %v706 = vrot.slane %v428, 1
        %v707 = vrot.slane %v429, 1
        %v708 = vrot.slane %v430, 1
        %v709 = vrot.slane %v431, 1
        %v710 = vrot.slane %v432, 1
        %v711 = vrot.slane %v433, 1
        %v712 = vrot.slane %v434, 1
        %v713 = vrot.slane %v435, 1
        %v714 = vrot.slane %v436, 1
        %v715 = vrot.slane %v437, 1
        %v716 = vrot.slane %v438, 1
        %v717 = vrot.slane %v439, 1
        %v718 = vrot.slane %v472, 1
        %v719 = vrot.slane %v473, 1
        %v720 = vrot.slane %v474, 1
        %v721 = vrot.slane %v475, 1
        %v722 = vrot.slane %v476, 1
        %v723 = vrot.slane %v477, 1
        %v724 = vrot.slane %v478, 1
        %v725 = vrot.slane %v479, 1
        %vm775 = vcmask 1046528
        %v776 = vsel %vm775, %v677, 0.0
        %v777 = vsel %vm775, %v678, 0.0
        %v778 = vsel %vm775, %v679, 0.0
        %v779 = vsel %vm775, %v680, 0.0
        %v780 = vsel %vm775, %v681, 0.0
        %v781 = vsel %vm775, %v682, 0.0
        %v782 = vsel %vm775, %v683, 0.0
        %v783 = vsel %vm775, %v684, 0.0
        %v784 = vsel %vm775, %v685, 0.0
        %v785 = vsel %vm775, %v686, 0.0
        %v786 = vsel %vm775, %v687, 0.0
        %v787 = vsel %vm775, %v688, 0.0
        %v788 = vsel %vm775, %v689, 0.0
        %v789 = vsel %vm775, %v690, 0.0
        %v790 = vsel %vm775, %v691, 0.0
        %v791 = vsel %vm775, %v692, 0.0
        %v792 = vsel %vm775, %v693, 0.0
        %v793 = vsel %vm775, %v694, 0.0
        %v794 = vsel %vm775, %v695, 0.0
        %v795 = vsel %vm775, %v696, 0.0
        %v796 = vsel %vm775, %v697, 0.0
        %v797 = vsel %vm775, %v698, 0.0
        %v798 = vsel %vm775, %v699, 0.0
        %v799 = vsel %vm775, %v700, 0.0
        %v800 = vsel %vm775, %v701, 0.0
        %v801 = vsel %vm775, %v702, 0.0
        %v802 = vsel %vm775, %v703, 0.0
        %v803 = vsel %vm775, %v704, 0.0
        %v804 = vsel %vm775, %v705, 0.0
        %v805 = vsel %vm775, %v706, 0.0
        %v806 = vsel %vm775, %v707, 0.0
        %v807 = vsel %vm775, %v708, 0.0
        %v808 = vsel %vm775, %v709, 0.0
        %v809 = vsel %vm775, %v710, 0.0
        %v810 = vsel %vm775, %v711, 0.0
        %v811 = vsel %vm775, %v712, 0.0
        %v812 = vsel %vm775, %v713, 0.0
        %v813 = vsel %vm775, %v714, 0.0
        %v814 = vsel %vm775, %v715, 0.0
        %v815 = vsel %vm775, %v716, 0.0
        %v816 = vsel %vm775, %v717, 0.0
        %v817 = vsel %vm775, %v718, 0.0
        %v818 = vsel %vm775, %v719, 0.0
        %v819 = vsel %vm775, %v720, 0.0
        %v820 = vsel %vm775, %v721, 0.0
        %v821 = vsel %vm775, %v722, 0.0
        %v822 = vsel %vm775, %v723, 0.0
        %v823 = vsel %vm775, %v724, 0.0
        %v824 = vsel %vm775, %v725, 0.0
        %825 = vrot.lane.b32.xlu0 0.0, 4
        %v826 = vpop.permute.xlu0 %825
        %827 = vrot.lane.b32.xlu0 %v460, 4
        %v828 = vpop.permute.xlu0 %827
        %829 = vrot.lane.b32.xlu0 %v461, 4
        %v830 = vpop.permute.xlu0 %829
        %831 = vrot.lane.b32.xlu0 %v462, 4
        %v832 = vpop.permute.xlu0 %831
        %833 = vrot.lane.b32.xlu0 %v463, 4
        %v834 = vpop.permute.xlu0 %833
        %835 = vrot.lane.b32.xlu0 %v464, 4
        %v836 = vpop.permute.xlu0 %835
        %837 = vrot.lane.b32.xlu0 %v465, 4
        %v838 = vpop.permute.xlu0 %837
        %839 = vrot.lane.b32.xlu0 %v466, 4
        %v840 = vpop.permute.xlu0 %839
        %841 = vrot.lane.b32.xlu0 %v467, 4
        %v842 = vpop.permute.xlu0 %841
        %843 = vrot.lane.b32.xlu0 %v408, 4
        %v844 = vpop.permute.xlu0 %843
        %845 = vrot.lane.b32.xlu0 %v409, 4
        %v846 = vpop.permute.xlu0 %845
        %847 = vrot.lane.b32.xlu0 %v410, 4
        %v848 = vpop.permute.xlu0 %847
        %849 = vrot.lane.b32.xlu0 %v411, 4
        %v850 = vpop.permute.xlu0 %849
        %851 = vrot.lane.b32.xlu0 %v412, 4
        %v852 = vpop.permute.xlu0 %851
        %853 = vrot.lane.b32.xlu0 %v413, 4
        %v854 = vpop.permute.xlu0 %853
        %855 = vrot.lane.b32.xlu0 %v414, 4
        %v856 = vpop.permute.xlu0 %855
        %857 = vrot.lane.b32.xlu0 %v415, 4
        %v858 = vpop.permute.xlu0 %857
        %859 = vrot.lane.b32.xlu0 %v416, 4
        %v860 = vpop.permute.xlu0 %859
        %861 = vrot.lane.b32.xlu0 %v417, 4
        %v862 = vpop.permute.xlu0 %861
        %863 = vrot.lane.b32.xlu0 %v418, 4
        %v864 = vpop.permute.xlu0 %863
        %865 = vrot.lane.b32.xlu0 %v419, 4
        %v866 = vpop.permute.xlu0 %865
        %867 = vrot.lane.b32.xlu0 %v420, 4
        %v868 = vpop.permute.xlu0 %867
        %869 = vrot.lane.b32.xlu0 %v421, 4
        %v870 = vpop.permute.xlu0 %869
        %871 = vrot.lane.b32.xlu0 %v422, 4
        %v872 = vpop.permute.xlu0 %871
        %873 = vrot.lane.b32.xlu0 %v423, 4
        %v874 = vpop.permute.xlu0 %873
        %875 = vrot.lane.b32.xlu0 %v424, 4
        %v876 = vpop.permute.xlu0 %875
        %877 = vrot.lane.b32.xlu0 %v425, 4
        %v878 = vpop.permute.xlu0 %877
        %879 = vrot.lane.b32.xlu0 %v426, 4
        %v880 = vpop.permute.xlu0 %879
        %881 = vrot.lane.b32.xlu0 %v427, 4
        %v882 = vpop.permute.xlu0 %881
        %883 = vrot.lane.b32.xlu0 %v428, 4
        %v884 = vpop.permute.xlu0 %883
        %885 = vrot.lane.b32.xlu0 %v429, 4
        %v886 = vpop.permute.xlu0 %885
        %887 = vrot.lane.b32.xlu0 %v430, 4
        %v888 = vpop.permute.xlu0 %887
        %889 = vrot.lane.b32.xlu0 %v431, 4
        %v890 = vpop.permute.xlu0 %889
        %891 = vrot.lane.b32.xlu0 %v432, 4
        %v892 = vpop.permute.xlu0 %891
        %893 = vrot.lane.b32.xlu0 %v433, 4
        %v894 = vpop.permute.xlu0 %893
        %895 = vrot.lane.b32.xlu0 %v434, 4
        %v896 = vpop.permute.xlu0 %895
        %897 = vrot.lane.b32.xlu0 %v435, 4
        %v898 = vpop.permute.xlu0 %897
        %899 = vrot.lane.b32.xlu0 %v436, 4
        %v900 = vpop.permute.xlu0 %899
        %901 = vrot.lane.b32.xlu0 %v437, 4
        %v902 = vpop.permute.xlu0 %901
        %903 = vrot.lane.b32.xlu0 %v438, 4
        %v904 = vpop.permute.xlu0 %903
        %905 = vrot.lane.b32.xlu0 %v439, 4
        %v906 = vpop.permute.xlu0 %905
        %907 = vrot.lane.b32.xlu0 %v472, 4
        %v908 = vpop.permute.xlu0 %907
        %909 = vrot.lane.b32.xlu0 %v473, 4
        %v910 = vpop.permute.xlu0 %909
        %911 = vrot.lane.b32.xlu0 %v474, 4
        %v912 = vpop.permute.xlu0 %911
        %913 = vrot.lane.b32.xlu0 %v475, 4
        %v914 = vpop.permute.xlu0 %913
        %915 = vrot.lane.b32.xlu0 %v476, 4
        %v916 = vpop.permute.xlu0 %915
        %917 = vrot.lane.b32.xlu0 %v477, 4
        %v918 = vpop.permute.xlu0 %917
        %919 = vrot.lane.b32.xlu0 %v478, 4
        %v920 = vpop.permute.xlu0 %919
        %921 = vrot.lane.b32.xlu0 %v479, 4
        %v922 = vpop.permute.xlu0 %921
        %1021 = vrot.lane.b32.xlu0 %v776, 8
        %v1022 = vpop.permute.xlu0 %1021
        %1023 = vrot.lane.b32.xlu0 %v777, 8
        %v1024 = vpop.permute.xlu0 %1023
        %1025 = vrot.lane.b32.xlu0 %v778, 8
        %v1026 = vpop.permute.xlu0 %1025
        %1027 = vrot.lane.b32.xlu0 %v779, 8
        %v1028 = vpop.permute.xlu0 %1027
        %1029 = vrot.lane.b32.xlu0 %v780, 8
        %v1030 = vpop.permute.xlu0 %1029
        %1031 = vrot.lane.b32.xlu0 %v781, 8
        %v1032 = vpop.permute.xlu0 %1031
        %1033 = vrot.lane.b32.xlu0 %v782, 8
        %v1034 = vpop.permute.xlu0 %1033
        %1035 = vrot.lane.b32.xlu0 %v783, 8
        %v1036 = vpop.permute.xlu0 %1035
        %1037 = vrot.lane.b32.xlu0 %v784, 8
        %v1038 = vpop.permute.xlu0 %1037
        %1039 = vrot.lane.b32.xlu0 %v785, 8
        %v1040 = vpop.permute.xlu0 %1039
        %1041 = vrot.lane.b32.xlu0 %v786, 8
        %v1042 = vpop.permute.xlu0 %1041
        %1043 = vrot.lane.b32.xlu0 %v787, 8
        %v1044 = vpop.permute.xlu0 %1043
        %1045 = vrot.lane.b32.xlu0 %v788, 8
        %v1046 = vpop.permute.xlu0 %1045
        %1047 = vrot.lane.b32.xlu0 %v789, 8
        %v1048 = vpop.permute.xlu0 %1047
        %1049 = vrot.lane.b32.xlu0 %v790, 8
        %v1050 = vpop.permute.xlu0 %1049
        %1051 = vrot.lane.b32.xlu0 %v791, 8
        %v1052 = vpop.permute.xlu0 %1051
        %1053 = vrot.lane.b32.xlu0 %v792, 8
        %v1054 = vpop.permute.xlu0 %1053
        %1055 = vrot.lane.b32.xlu0 %v793, 8
        %v1056 = vpop.permute.xlu0 %1055
        %1057 = vrot.lane.b32.xlu0 %v794, 8
        %v1058 = vpop.permute.xlu0 %1057
        %1059 = vrot.lane.b32.xlu0 %v795, 8
        %v1060 = vpop.permute.xlu0 %1059
        %1061 = vrot.lane.b32.xlu0 %v796, 8
        %v1062 = vpop.permute.xlu0 %1061
        %1063 = vrot.lane.b32.xlu0 %v797, 8
        %v1064 = vpop.permute.xlu0 %1063
        %1065 = vrot.lane.b32.xlu0 %v798, 8
        %v1066 = vpop.permute.xlu0 %1065
        %1067 = vrot.lane.b32.xlu0 %v799, 8
        %v1068 = vpop.permute.xlu0 %1067
        %1069 = vrot.lane.b32.xlu0 %v800, 8
        %v1070 = vpop.permute.xlu0 %1069
        %1071 = vrot.lane.b32.xlu0 %v801, 8
        %v1072 = vpop.permute.xlu0 %1071
        %1073 = vrot.lane.b32.xlu0 %v802, 8
        %v1074 = vpop.permute.xlu0 %1073
        %1075 = vrot.lane.b32.xlu0 %v803, 8
        %v1076 = vpop.permute.xlu0 %1075
        %1077 = vrot.lane.b32.xlu0 %v804, 8
        %v1078 = vpop.permute.xlu0 %1077
        %1079 = vrot.lane.b32.xlu0 %v805, 8
        %v1080 = vpop.permute.xlu0 %1079
        %1081 = vrot.lane.b32.xlu0 %v806, 8
        %v1082 = vpop.permute.xlu0 %1081
        %1083 = vrot.lane.b32.xlu0 %v807, 8
        %v1084 = vpop.permute.xlu0 %1083
        %1085 = vrot.lane.b32.xlu0 %v808, 8
        %v1086 = vpop.permute.xlu0 %1085
        %1087 = vrot.lane.b32.xlu0 %v809, 8
        %v1088 = vpop.permute.xlu0 %1087
        %1089 = vrot.lane.b32.xlu0 %v810, 8
        %v1090 = vpop.permute.xlu0 %1089
        %1091 = vrot.lane.b32.xlu0 %v811, 8
        %v1092 = vpop.permute.xlu0 %1091
        %1093 = vrot.lane.b32.xlu0 %v812, 8
        %v1094 = vpop.permute.xlu0 %1093
        %1095 = vrot.lane.b32.xlu0 %v813, 8
        %v1096 = vpop.permute.xlu0 %1095
        %1097 = vrot.lane.b32.xlu0 %v814, 8
        %v1098 = vpop.permute.xlu0 %1097
        %1099 = vrot.lane.b32.xlu0 %v815, 8
        %v1100 = vpop.permute.xlu0 %1099
        %1101 = vrot.lane.b32.xlu0 %v816, 8
        %v1102 = vpop.permute.xlu0 %1101
        %1103 = vrot.lane.b32.xlu0 %v817, 8
        %v1104 = vpop.permute.xlu0 %1103
        %1105 = vrot.lane.b32.xlu0 %v818, 8
        %v1106 = vpop.permute.xlu0 %1105
        %1107 = vrot.lane.b32.xlu0 %v819, 8
        %v1108 = vpop.permute.xlu0 %1107
        %1109 = vrot.lane.b32.xlu0 %v820, 8
        %v1110 = vpop.permute.xlu0 %1109
        %1111 = vrot.lane.b32.xlu0 %v821, 8
        %v1112 = vpop.permute.xlu0 %1111
        %1113 = vrot.lane.b32.xlu0 %v822, 8
        %v1114 = vpop.permute.xlu0 %1113
        %1115 = vrot.lane.b32.xlu0 %v823, 8
        %v1116 = vpop.permute.xlu0 %1115
        %1117 = vrot.lane.b32.xlu0 %v824, 8
        %v1118 = vpop.permute.xlu0 %1117
        %vm1168 = vcmask 31744
        %v1169 = vsel %vm1168, %v628, %v826
        %v1170 = vsel %vm1168, %v629, %v828
        %v1171 = vsel %vm1168, %v630, %v830
        %v1172 = vsel %vm1168, %v631, %v832
        %v1173 = vsel %vm1168, %v632, %v834
        %v1174 = vsel %vm1168, %v633, %v836
        %v1175 = vsel %vm1168, %v634, %v838
        %v1176 = vsel %vm1168, %v635, %v840
        %v1177 = vsel %vm1168, %v636, %v842
        %v1178 = vsel %vm1168, %v637, %v844
        %v1179 = vsel %vm1168, %v638, %v846
        %v1180 = vsel %vm1168, %v639, %v848
        %v1181 = vsel %vm1168, %v640, %v850
        %v1182 = vsel %vm1168, %v641, %v852
        %v1183 = vsel %vm1168, %v642, %v854
        %v1184 = vsel %vm1168, %v643, %v856
        %v1185 = vsel %vm1168, %v644, %v858
        %v1186 = vsel %vm1168, %v645, %v860
        %v1187 = vsel %vm1168, %v646, %v862
        %v1188 = vsel %vm1168, %v647, %v864
        %v1189 = vsel %vm1168, %v648, %v866
        %v1190 = vsel %vm1168, %v649, %v868
        %v1191 = vsel %vm1168, %v650, %v870
        %v1192 = vsel %vm1168, %v651, %v872
        %v1193 = vsel %vm1168, %v652, %v874
        %v1194 = vsel %vm1168, %v653, %v876
        %v1195 = vsel %vm1168, %v654, %v878
        %v1196 = vsel %vm1168, %v655, %v880
        %v1197 = vsel %vm1168, %v656, %v882
        %v1198 = vsel %vm1168, %v657, %v884
        %v1199 = vsel %vm1168, %v658, %v886
        %v1200 = vsel %vm1168, %v659, %v888
        %v1201 = vsel %vm1168, %v660, %v890
        %v1202 = vsel %vm1168, %v661, %v892
        %v1203 = vsel %vm1168, %v662, %v894
        %v1204 = vsel %vm1168, %v663, %v896
        %v1205 = vsel %vm1168, %v664, %v898
        %v1206 = vsel %vm1168, %v665, %v900
        %v1207 = vsel %vm1168, %v666, %v902
        %v1208 = vsel %vm1168, %v667, %v904
        %v1209 = vsel %vm1168, %v668, %v906
        %v1210 = vsel %vm1168, %v669, %v908
        %v1211 = vsel %vm1168, %v670, %v910
        %v1212 = vsel %vm1168, %v671, %v912
        %v1213 = vsel %vm1168, %v672, %v914
        %v1214 = vsel %vm1168, %v673, %v916
        %v1215 = vsel %vm1168, %v674, %v918
        %v1216 = vsel %vm1168, %v675, %v920
        %v1217 = vsel %vm1168, %v676, %v922
        %vm1218 = vcmask 64512
        %v1219 = vsel %vm1218, %v1169, %v1022
        %v1220 = vsel %vm1218, %v1170, %v1024
        %v1221 = vsel %vm1218, %v1171, %v1026
        %v1222 = vsel %vm1218, %v1172, %v1028
        %v1223 = vsel %vm1218, %v1173, %v1030
        %v1224 = vsel %vm1218, %v1174, %v1032
        %v1225 = vsel %vm1218, %v1175, %v1034
        %v1226 = vsel %vm1218, %v1176, %v1036
        %v1227 = vsel %vm1218, %v1177, %v1038
        %v1228 = vsel %vm1218, %v1178, %v1040
        %v1229 = vsel %vm1218, %v1179, %v1042
        %v1230 = vsel %vm1218, %v1180, %v1044
        %v1231 = vsel %vm1218, %v1181, %v1046
        %v1232 = vsel %vm1218, %v1182, %v1048
        %v1233 = vsel %vm1218, %v1183, %v1050
        %v1234 = vsel %vm1218, %v1184, %v1052
        %v1235 = vsel %vm1218, %v1185, %v1054
        %v1236 = vsel %vm1218, %v1186, %v1056
        %v1237 = vsel %vm1218, %v1187, %v1058
        %v1238 = vsel %vm1218, %v1188, %v1060
        %v1239 = vsel %vm1218, %v1189, %v1062
        %v1240 = vsel %vm1218, %v1190, %v1064
        %v1241 = vsel %vm1218, %v1191, %v1066
        %v1242 = vsel %vm1218, %v1192, %v1068
        %v1243 = vsel %vm1218, %v1193, %v1070
        %v1244 = vsel %vm1218, %v1194, %v1072
        %v1245 = vsel %vm1218, %v1195, %v1074
        %v1246 = vsel %vm1218, %v1196, %v1076
        %v1247 = vsel %vm1218, %v1197, %v1078
        %v1248 = vsel %vm1218, %v1198, %v1080
        %v1249 = vsel %vm1218, %v1199, %v1082
        %v1250 = vsel %vm1218, %v1200, %v1084
        %v1251 = vsel %vm1218, %v1201, %v1086
        %v1252 = vsel %vm1218, %v1202, %v1088
        %v1253 = vsel %vm1218, %v1203, %v1090
        %v1254 = vsel %vm1218, %v1204, %v1092
        %v1255 = vsel %vm1218, %v1205, %v1094
        %v1256 = vsel %vm1218, %v1206, %v1096
        %v1257 = vsel %vm1218, %v1207, %v1098
        %v1258 = vsel %vm1218, %v1208, %v1100
        %v1259 = vsel %vm1218, %v1209, %v1102
        %v1260 = vsel %vm1218, %v1210, %v1104
        %v1261 = vsel %vm1218, %v1211, %v1106
        %v1262 = vsel %vm1218, %v1212, %v1108
        %v1263 = vsel %vm1218, %v1213, %v1110
        %v1264 = vsel %vm1218, %v1214, %v1112
        %v1265 = vsel %vm1218, %v1215, %v1114
        %v1266 = vsel %vm1218, %v1216, %v1116
        %v1267 = vsel %vm1218, %v1217, %v1118
        %vm1268 = vcmask 97280
        %1269 = vst.msk [vmem:[#allocation2] sm:$0xff] %vm1268, %v1219
        %1270 = vst.msk [vmem:[#allocation2 + $0x8] sm:$0xff] %vm1268, %v1220
        %1271 = vst.msk [vmem:[#allocation2 + $0x10] sm:$0xff] %vm1268, %v1221
        %1272 = vst.msk [vmem:[#allocation2 + $0x18] sm:$0xff] %vm1268, %v1222
        %1273 = vst.msk [vmem:[#allocation2 + $0x20] sm:$0xff] %vm1268, %v1223
        %1274 = vst.msk [vmem:[#allocation2 + $0x28] sm:$0xff] %vm1268, %v1224
        %1275 = vst.msk [vmem:[#allocation2 + $0x30] sm:$0xff] %vm1268, %v1225
        %1276 = vst.msk [vmem:[#allocation2 + $0x38] sm:$0xff] %vm1268, %v1226
        %1277 = vst.msk [vmem:[#allocation2 + $0x40] sm:$0xff] %vm1268, %v1227
        %1278 = vst.msk [vmem:[#allocation2 + $0x48] sm:$0xff] %vm1268, %v1219
        %1279 = vst.msk [vmem:[#allocation2 + $0x50] sm:$0xff] %vm1268, %v1219
        %1280 = vst.msk [vmem:[#allocation2 + $0x58] sm:$0xff] %vm1268, %v1228
        %1281 = vst.msk [vmem:[#allocation2 + $0x60] sm:$0xff] %vm1268, %v1229
        %1282 = vst.msk [vmem:[#allocation2 + $0x68] sm:$0xff] %vm1268, %v1230
        %1283 = vst.msk [vmem:[#allocation2 + $0x70] sm:$0xff] %vm1268, %v1231
        %1284 = vst.msk [vmem:[#allocation2 + $0x78] sm:$0xff] %vm1268, %v1232
        %1285 = vst.msk [vmem:[#allocation2 + $0x80] sm:$0xff] %vm1268, %v1233
        %1286 = vst.msk [vmem:[#allocation2 + $0x88] sm:$0xff] %vm1268, %v1234
        %1287 = vst.msk [vmem:[#allocation2 + $0x90] sm:$0xff] %vm1268, %v1235
        %1288 = vst.msk [vmem:[#allocation2 + $0x98] sm:$0xff] %vm1268, %v1219
        %1289 = vst.msk [vmem:[#allocation2 + $0xa0] sm:$0xff] %vm1268, %v1219
        %1290 = vst.msk [vmem:[#allocation2 + $0xa8] sm:$0xff] %vm1268, %v1236
        %1291 = vst.msk [vmem:[#allocation2 + $0xb0] sm:$0xff] %vm1268, %v1237
        %1292 = vst.msk [vmem:[#allocation2 + $0xb8] sm:$0xff] %vm1268, %v1238
        %1293 = vst.msk [vmem:[#allocation2 + $0xc0] sm:$0xff] %vm1268, %v1239
        %1294 = vst.msk [vmem:[#allocation2 + $0xc8] sm:$0xff] %vm1268, %v1240
        %1295 = vst.msk [vmem:[#allocation2 + $0xd0] sm:$0xff] %vm1268, %v1241
        %1296 = vst.msk [vmem:[#allocation2 + $0xd8] sm:$0xff] %vm1268, %v1242
        %1297 = vst.msk [vmem:[#allocation2 + $0xe0] sm:$0xff] %vm1268, %v1243
        %1298 = vst.msk [vmem:[#allocation2 + $0xe8] sm:$0xff] %vm1268, %v1219
        %1299 = vst.msk [vmem:[#allocation2 + $0xf0] sm:$0xff] %vm1268, %v1219
        %1300 = vst.msk [vmem:[#allocation2 + $0xf8] sm:$0xff] %vm1268, %v1244
        %1301 = vst.msk [vmem:[#allocation2 + $0x100] sm:$0xff] %vm1268, %v1245
        %1302 = vst.msk [vmem:[#allocation2 + $0x108] sm:$0xff] %vm1268, %v1246
        %1303 = vst.msk [vmem:[#allocation2 + $0x110] sm:$0xff] %vm1268, %v1247
        %1304 = vst.msk [vmem:[#allocation2 + $0x118] sm:$0xff] %vm1268, %v1248
        %1305 = vst.msk [vmem:[#allocation2 + $0x120] sm:$0xff] %vm1268, %v1249
        %1306 = vst.msk [vmem:[#allocation2 + $0x128] sm:$0xff] %vm1268, %v1250
        %1307 = vst.msk [vmem:[#allocation2 + $0x130] sm:$0xff] %vm1268, %v1251
        %1308 = vst.msk [vmem:[#allocation2 + $0x138] sm:$0xff] %vm1268, %v1219
        %1309 = vst.msk [vmem:[#allocation2 + $0x140] sm:$0xff] %vm1268, %v1219
        %1310 = vst.msk [vmem:[#allocation2 + $0x148] sm:$0xff] %vm1268, %v1252
        %1311 = vst.msk [vmem:[#allocation2 + $0x150] sm:$0xff] %vm1268, %v1253
        %1312 = vst.msk [vmem:[#allocation2 + $0x158] sm:$0xff] %vm1268, %v1254
        %1313 = vst.msk [vmem:[#allocation2 + $0x160] sm:$0xff] %vm1268, %v1255
        %1314 = vst.msk [vmem:[#allocation2 + $0x168] sm:$0xff] %vm1268, %v1256
        %1315 = vst.msk [vmem:[#allocation2 + $0x170] sm:$0xff] %vm1268, %v1257
        %1316 = vst.msk [vmem:[#allocation2 + $0x178] sm:$0xff] %vm1268, %v1258
        %1317 = vst.msk [vmem:[#allocation2 + $0x180] sm:$0xff] %vm1268, %v1259
        %1318 = vst.msk [vmem:[#allocation2 + $0x188] sm:$0xff] %vm1268, %v1219
        %1319 = vst.msk [vmem:[#allocation2 + $0x190] sm:$0xff] %vm1268, %v1219
        %1320 = vst.msk [vmem:[#allocation2 + $0x198] sm:$0xff] %vm1268, %v1260
        %1321 = vst.msk [vmem:[#allocation2 + $0x1a0] sm:$0xff] %vm1268, %v1261
        %1322 = vst.msk [vmem:[#allocation2 + $0x1a8] sm:$0xff] %vm1268, %v1262
        %1323 = vst.msk [vmem:[#allocation2 + $0x1b0] sm:$0xff] %vm1268, %v1263
        %1324 = vst.msk [vmem:[#allocation2 + $0x1b8] sm:$0xff] %vm1268, %v1264
        %1325 = vst.msk [vmem:[#allocation2 + $0x1c0] sm:$0xff] %vm1268, %v1265
        %1326 = vst.msk [vmem:[#allocation2 + $0x1c8] sm:$0xff] %vm1268, %v1266
        %1327 = vst.msk [vmem:[#allocation2 + $0x1d0] sm:$0xff] %vm1268, %v1267
        %1328 = vst.msk [vmem:[#allocation2 + $0x1d8] sm:$0xff] %vm1268, %v1219
        %v1329 = vld [vmem:[#allocation2] sm:$0xff]
        %v1330 = vld [vmem:[#allocation2 + $0x8] sm:$0xff]
        %v1331 = vld [vmem:[#allocation2 + $0x10] sm:$0xff]
        %v1332 = vld [vmem:[#allocation2 + $0x18] sm:$0xff]
        %v1333 = vld [vmem:[#allocation2 + $0x20] sm:$0xff]
        %v1334 = vld [vmem:[#allocation2 + $0x28] sm:$0xff]
        %v1335 = vld [vmem:[#allocation2 + $0x30] sm:$0xff]
        %v1336 = vld [vmem:[#allocation2 + $0x38] sm:$0xff]
        %v1337 = vld [vmem:[#allocation2 + $0x50] sm:$0xff]
        %v1338 = vld [vmem:[#allocation2 + $0x58] sm:$0xff]
        %v1339 = vld [vmem:[#allocation2 + $0x60] sm:$0xff]
        %v1340 = vld [vmem:[#allocation2 + $0x68] sm:$0xff]
        %v1341 = vld [vmem:[#allocation2 + $0x70] sm:$0xff]
        %v1342 = vld [vmem:[#allocation2 + $0x78] sm:$0xff]
        %v1343 = vld [vmem:[#allocation2 + $0x80] sm:$0xff]
        %v1344 = vld [vmem:[#allocation2 + $0x88] sm:$0xff]
        %v1345 = vld [vmem:[#allocation2 + $0xa0] sm:$0xff]
        %v1346 = vld [vmem:[#allocation2 + $0xa8] sm:$0xff]
        %v1347 = vld [vmem:[#allocation2 + $0xb0] sm:$0xff]
        %v1348 = vld [vmem:[#allocation2 + $0xb8] sm:$0xff]
        %v1349 = vld [vmem:[#allocation2 + $0xc0] sm:$0xff]
        %v1350 = vld [vmem:[#allocation2 + $0xc8] sm:$0xff]
        %v1351 = vld [vmem:[#allocation2 + $0xd0] sm:$0xff]
        %v1352 = vld [vmem:[#allocation2 + $0xd8] sm:$0xff]
        %v1353 = vld [vmem:[#allocation2 + $0xf0] sm:$0xff]
        %v1354 = vld [vmem:[#allocation2 + $0xf8] sm:$0xff]
        %v1355 = vld [vmem:[#allocation2 + $0x100] sm:$0xff]
        %v1356 = vld [vmem:[#allocation2 + $0x108] sm:$0xff]
        %v1357 = vld [vmem:[#allocation2 + $0x110] sm:$0xff]
        %v1358 = vld [vmem:[#allocation2 + $0x118] sm:$0xff]
        %v1359 = vld [vmem:[#allocation2 + $0x120] sm:$0xff]
        %v1360 = vld [vmem:[#allocation2 + $0x128] sm:$0xff]
        %v1361 = vld [vmem:[%s3] sm:$0xff]
        %v1362 = vld [vmem:[%s3 + $0x8] sm:$0xf]
        %s1363 = scalar_lea.vmem [#allocation2], 8
        %v1364 = vld [vmem:[%s1363] sm:$0xff]
        %v1365 = vld [vmem:[%s1363 + $0x8] sm:$0xff]
        %v1366 = vld [vmem:[%s1363 + $0x10] sm:$0xff]
        %v1367 = vld [vmem:[%s1363 + $0x18] sm:$0xff]
        %v1368 = vld [vmem:[%s1363 + $0x20] sm:$0xff]
        %v1369 = vld [vmem:[%s1363 + $0x28] sm:$0xff]
        %v1370 = vld [vmem:[%s1363 + $0x30] sm:$0xff]
        %v1371 = vld [vmem:[%s1363 + $0x38] sm:$0xff]
        %v1372 = vld [vmem:[%s1363 + $0x50] sm:$0xff]
        %v1373 = vld [vmem:[%s1363 + $0x58] sm:$0xff]
        %v1374 = vld [vmem:[%s1363 + $0x60] sm:$0xff]
        %v1375 = vld [vmem:[%s1363 + $0x68] sm:$0xff]
        %v1376 = vld [vmem:[%s1363 + $0x70] sm:$0xff]
        %v1377 = vld [vmem:[%s1363 + $0x78] sm:$0xff]
        %v1378 = vld [vmem:[%s1363 + $0x80] sm:$0xff]
        %v1379 = vld [vmem:[%s1363 + $0x88] sm:$0xff]
        %v1380 = vld [vmem:[%s1363 + $0xa0] sm:$0xff]
        %v1381 = vld [vmem:[%s1363 + $0xa8] sm:$0xff]
        %v1382 = vld [vmem:[%s1363 + $0xb0] sm:$0xff]
        %v1383 = vld [vmem:[%s1363 + $0xb8] sm:$0xff]
        %v1384 = vld [vmem:[%s1363 + $0xc0] sm:$0xff]
        %v1385 = vld [vmem:[%s1363 + $0xc8] sm:$0xff]
        %v1386 = vld [vmem:[%s1363 + $0xd0] sm:$0xff]
        %v1387 = vld [vmem:[%s1363 + $0xd8] sm:$0xff]
        %v1388 = vld [vmem:[%s1363 + $0xf0] sm:$0xff]
        %v1389 = vld [vmem:[%s1363 + $0xf8] sm:$0xff]
        %v1390 = vld [vmem:[%s1363 + $0x100] sm:$0xff]
        %v1391 = vld [vmem:[%s1363 + $0x108] sm:$0xff]
        %v1392 = vld [vmem:[%s1363 + $0x110] sm:$0xff]
        %v1393 = vld [vmem:[%s1363 + $0x118] sm:$0xff]
        %v1394 = vld [vmem:[%s1363 + $0x120] sm:$0xff]
        %v1395 = vld [vmem:[%s1363 + $0x128] sm:$0xff]
        %s1396 = scalar_lea.vmem %s3, 16
        %v1397 = vld [vmem:[%s1396] sm:$0xff]
        %v1398 = vld [vmem:[%s1396 + $0x8] sm:$0xf]
        %v1400 = vsel %vm1268, %v1364, 0
        %v1403 = vsel %vm1268, %v1365, 0
        %v1406 = vsel %vm1268, %v1366, 0
        %v1409 = vsel %vm1268, %v1367, 0
        %v1412 = vsel %vm1268, %v1368, 0
        %v1415 = vsel %vm1268, %v1369, 0
        %v1418 = vsel %vm1268, %v1370, 0
        %v1421 = vsel %vm1268, %v1371, 0
        %v1424 = vsel %vm1268, %v1372, 0
        %v1427 = vsel %vm1268, %v1373, 0
        %v1430 = vsel %vm1268, %v1374, 0
        %v1433 = vsel %vm1268, %v1375, 0
        %v1436 = vsel %vm1268, %v1376, 0
        %v1439 = vsel %vm1268, %v1377, 0
        %v1442 = vsel %vm1268, %v1378, 0
        %v1445 = vsel %vm1268, %v1379, 0
        %v1448 = vsel %vm1268, %v1380, 0
        %v1451 = vsel %vm1268, %v1381, 0
        %v1454 = vsel %vm1268, %v1382, 0
        %v1457 = vsel %vm1268, %v1383, 0
        %v1460 = vsel %vm1268, %v1384, 0
        %v1463 = vsel %vm1268, %v1385, 0
        %v1466 = vsel %vm1268, %v1386, 0
        %v1469 = vsel %vm1268, %v1387, 0
        %v1472 = vsel %vm1268, %v1388, 0
        %v1475 = vsel %vm1268, %v1389, 0
        %v1478 = vsel %vm1268, %v1390, 0
        %v1481 = vsel %vm1268, %v1391, 0
        %v1484 = vsel %vm1268, %v1392, 0
        %v1487 = vsel %vm1268, %v1393, 0
        %v1490 = vsel %vm1268, %v1394, 0
        %v1493 = vsel %vm1268, %v1395, 0
        %vm1495 = vcmask 1043456
        %v1497 = vsel %vm1495, %v1398, 0
        %1499 = vmatprep.subr.mxu0 0.0
        %1500 = vmatpush1.msra.mxu0 %v1397
        %1501 = vmatprep.subr.mxu0 0.0
        %1502 = vmatpush1.msra.mxu0 %v1497
        %1503 = vmatprep.subr.mxu0 0.0
        %1504 = vmatpush1.msra.mxu0 0.0
        %1505 = vmatprep.subr.mxu0 0.0
        %1506 = vmatpush1.msra.mxu0 0.0
        %1507 = vmatprep.subr.mxu0 0.0
        %1508 = vmatpush1.msra.mxu0 0.0
        %1509 = vmatprep.subr.mxu0 0.0
        %1510 = vmatpush1.msra.mxu0 0.0
        %1511 = vmatprep.subr.mxu0 0.0
        %1512 = vmatpush1.msra.mxu0 0.0
        %1513 = vmatprep.subr.mxu0 0.0
        %1514 = vmatpush1.msra.mxu0 0.0
        %1515 = vmatprep.subr.mxu0 0.0
        %1516 = vmatpush1.msra.mxu0 0.0
        %1517 = vmatprep.subr.mxu0 0.0
        %1518 = vmatpush1.msra.mxu0 0.0
        %1519 = vmatprep.subr.mxu0 0.0
        %1520 = vmatpush1.msra.mxu0 0.0
        %1521 = vmatprep.subr.mxu0 0.0
        %1522 = vmatpush1.msra.mxu0 0.0
        %1523 = vmatprep.subr.mxu0 0.0
        %1524 = vmatpush1.msra.mxu0 0.0
        %1525 = vmatprep.subr.mxu0 0.0
        %1526 = vmatpush1.msra.mxu0 0.0
        %1527 = vmatprep.subr.mxu0 0.0
        %1528 = vmatpush1.msra.mxu0 0.0
        %1529 = vmatprep.subr.mxu0 0.0
        %1530 = vmatpush1.msra.mxu0 0.0
        %1531 = vmatprep.subr.mxu0 0.0
        %1532 = vmatpush1.msra.mxu0 0.0
        %1533 = vmatprep.subr.mxu0 0.0
        %1534 = vmatpush1.msra.mxu0 0.0
        %1535 = vmatprep.subr.mxu0 0.0
        %1536 = vmatpush1.msra.mxu0 0.0
        %1537 = vmatprep.subr.mxu0 0.0
        %1538 = vmatpush1.msra.mxu0 0.0
        %1539 = vmatprep.subr.mxu0 0.0
        %1540 = vmatpush1.msra.mxu0 0.0
        %1541 = vmatprep.subr.mxu0 0.0
        %1542 = vmatpush1.msra.mxu0 0.0
        %1543 = vmatprep.subr.mxu0 0.0
        %1544 = vmatpush1.msra.mxu0 0.0
        %1545 = vmatprep.subr.mxu0 0.0
        %1546 = vmatpush1.msra.mxu0 0.0
        %1547 = vmatprep.subr.mxu0 0.0
        %1548 = vmatpush1.msra.mxu0 0.0
        %1549 = vmatprep.subr.mxu0 0.0
        %1550 = vmatpush1.msra.mxu0 0.0
        %1551 = vmatprep.subr.mxu0 0.0
        %1552 = vmatpush1.msra.mxu0 0.0
        %1553 = vmatprep.subr.mxu0 0.0
        %1554 = vmatpush1.msra.mxu0 0.0
        %1555 = vmatprep.subr.mxu0 0.0
        %1556 = vmatpush1.msra.mxu0 0.0
        %1557 = vmatprep.subr.mxu0 0.0
        %1558 = vmatpush1.msra.mxu0 0.0
        %1559 = vmatprep.subr.mxu0 0.0
        %1560 = vmatpush1.msra.mxu0 0.0
        %1561 = vmatprep.subr.mxu0 0.0
        %1562 = vmatpush1.msra.mxu0 0.0
        %1563 = vmatprep.mubr.f32.mxu0 0.0
        %1564 = vmatmul.mubr.f32.gmra.mrb[0].mxu0 %v1400
        %v1565 = vpop.f32.mrb[0].mxu0
        %v1566 = vadd.f32 0.0, %v1565
        %v1567 = vpop.f32.mrb[0].mxu0
        %1568 = vmatprep.mubr.f32.mxu0 0.0
        %1569 = vmatmul.mubr.f32.gmra.mrb[0].mxu0 %v1403
        %v1570 = vpop.f32.mrb[0].mxu0
        %v1571 = vadd.f32 0.0, %v1570
        %v1572 = vpop.f32.mrb[0].mxu0
        %1573 = vmatprep.mubr.f32.mxu0 0.0
        %1574 = vmatmul.mubr.f32.gmra.mrb[0].mxu0 %v1406
        %v1575 = vpop.f32.mrb[0].mxu0
        %v1576 = vadd.f32 0.0, %v1575
        %v1577 = vpop.f32.mrb[0].mxu0
        %1578 = vmatprep.mubr.f32.mxu0 0.0
        %1579 = vmatmul.mubr.f32.gmra.mrb[0].mxu0 %v1409
        %v1580 = vpop.f32.mrb[0].mxu0
        %v1581 = vadd.f32 0.0, %v1580
        %v1582 = vpop.f32.mrb[0].mxu0
        %1583 = vmatprep.mubr.f32.mxu0 0.0
        %1584 = vmatmul.mubr.f32.gmra.mrb[0].mxu0 %v1412
        %v1585 = vpop.f32.mrb[0].mxu0
        %v1586 = vadd.f32 0.0, %v1585
        %v1587 = vpop.f32.mrb[0].mxu0
        %1588 = vmatprep.mubr.f32.mxu0 0.0
        %1589 = vmatmul.mubr.f32.gmra.mrb[0].mxu0 %v1415
        %v1590 = vpop.f32.mrb[0].mxu0
        %v1591 = vadd.f32 0.0, %v1590
        %v1592 = vpop.f32.mrb[0].mxu0
        %1593 = vmatprep.mubr.f32.mxu0 0.0
        %1594 = vmatmul.mubr.f32.gmra.mrb[0].mxu0 %v1418
        %v1595 = vpop.f32.mrb[0].mxu0
        %v1596 = vadd.f32 0.0, %v1595
        %v1597 = vpop.f32.mrb[0].mxu0
        %1598 = vmatprep.mubr.f32.mxu0 0.0
        %1599 = vmatmul.mubr.f32.gmra.mrb[0].mxu0 %v1421
        %v1600 = vpop.f32.mrb[0].mxu0
        %v1601 = vadd.f32 0.0, %v1600
        %v1602 = vpop.f32.mrb[0].mxu0
        %1603 = vmatprep.mubr.f32.mxu0 0.0
        %1604 = vmatmul.mubr.f32.gmra.mrb[0].mxu0 %v1424
        %v1605 = vpop.f32.mrb[0].mxu0
        %v1606 = vadd.f32 0.0, %v1605
        %v1607 = vpop.f32.mrb[0].mxu0
        %1608 = vmatprep.mubr.f32.mxu0 0.0
        %1609 = vmatmul.mubr.f32.gmra.mrb[0].mxu0 %v1427
        %v1610 = vpop.f32.mrb[0].mxu0
        %v1611 = vadd.f32 0.0, %v1610
        %v1612 = vpop.f32.mrb[0].mxu0
        %1613 = vmatprep.mubr.f32.mxu0 0.0
        %1614 = vmatmul.mubr.f32.gmra.mrb[0].mxu0 %v1430
        %v1615 = vpop.f32.mrb[0].mxu0
        %v1616 = vadd.f32 0.0, %v1615
        %v1617 = vpop.f32.mrb[0].mxu0
        %1618 = vmatprep.mubr.f32.mxu0 0.0
        %1619 = vmatmul.mubr.f32.gmra.mrb[0].mxu0 %v1433
        %v1620 = vpop.f32.mrb[0].mxu0
        %v1621 = vadd.f32 0.0, %v1620
        %v1622 = vpop.f32.mrb[0].mxu0
        %1623 = vmatprep.mubr.f32.mxu0 0.0
        %1624 = vmatmul.mubr.f32.gmra.mrb[0].mxu0 %v1436
        %v1625 = vpop.f32.mrb[0].mxu0
        %v1626 = vadd.f32 0.0, %v1625
        %v1627 = vpop.f32.mrb[0].mxu0
        %1628 = vmatprep.mubr.f32.mxu0 0.0
        %1629 = vmatmul.mubr.f32.gmra.mrb[0].mxu0 %v1439
        %v1630 = vpop.f32.mrb[0].mxu0
        %v1631 = vadd.f32 0.0, %v1630
        %v1632 = vpop.f32.mrb[0].mxu0
        %1633 = vmatprep.mubr.f32.mxu0 0.0
        %1634 = vmatmul.mubr.f32.gmra.mrb[0].mxu0 %v1442
        %v1635 = vpop.f32.mrb[0].mxu0
        %v1636 = vadd.f32 0.0, %v1635
        %v1637 = vpop.f32.mrb[0].mxu0
        %1638 = vmatprep.mubr.f32.mxu0 0.0
        %1639 = vmatmul.mubr.f32.gmra.mrb[0].mxu0 %v1445
        %v1640 = vpop.f32.mrb[0].mxu0
        %v1641 = vadd.f32 0.0, %v1640
        %v1642 = vpop.f32.mrb[0].mxu0
        %1643 = vmatprep.mubr.f32.mxu0 0.0
        %1644 = vmatmul.mubr.f32.gmra.mrb[0].mxu0 %v1448
        %v1645 = vpop.f32.mrb[0].mxu0
        %v1646 = vadd.f32 0.0, %v1645
        %v1647 = vpop.f32.mrb[0].mxu0
        %1648 = vmatprep.mubr.f32.mxu0 0.0
        %1649 = vmatmul.mubr.f32.gmra.mrb[0].mxu0 %v1451
        %v1650 = vpop.f32.mrb[0].mxu0
        %v1651 = vadd.f32 0.0, %v1650
        %v1652 = vpop.f32.mrb[0].mxu0
        %1653 = vmatprep.mubr.f32.mxu0 0.0
        %1654 = vmatmul.mubr.f32.gmra.mrb[0].mxu0 %v1454
        %v1655 = vpop.f32.mrb[0].mxu0
        %v1656 = vadd.f32 0.0, %v1655
        %v1657 = vpop.f32.mrb[0].mxu0
        %1658 = vmatprep.mubr.f32.mxu0 0.0
        %1659 = vmatmul.mubr.f32.gmra.mrb[0].mxu0 %v1457
        %v1660 = vpop.f32.mrb[0].mxu0
        %v1661 = vadd.f32 0.0, %v1660
        %v1662 = vpop.f32.mrb[0].mxu0
        %1663 = vmatprep.mubr.f32.mxu0 0.0
        %1664 = vmatmul.mubr.f32.gmra.mrb[0].mxu0 %v1460
        %v1665 = vpop.f32.mrb[0].mxu0
        %v1666 = vadd.f32 0.0, %v1665
        %v1667 = vpop.f32.mrb[0].mxu0
        %1668 = vmatprep.mubr.f32.mxu0 0.0
        %1669 = vmatmul.mubr.f32.gmra.mrb[0].mxu0 %v1463
        %v1670 = vpop.f32.mrb[0].mxu0
        %v1671 = vadd.f32 0.0, %v1670
        %v1672 = vpop.f32.mrb[0].mxu0
        %1673 = vmatprep.mubr.f32.mxu0 0.0
        %1674 = vmatmul.mubr.f32.gmra.mrb[0].mxu0 %v1466
        %v1675 = vpop.f32.mrb[0].mxu0
        %v1676 = vadd.f32 0.0, %v1675
        %v1677 = vpop.f32.mrb[0].mxu0
        %1678 = vmatprep.mubr.f32.mxu0 0.0
        %1679 = vmatmul.mubr.f32.gmra.mrb[0].mxu0 %v1469
        %v1680 = vpop.f32.mrb[0].mxu0
        %v1681 = vadd.f32 0.0, %v1680
        %v1682 = vpop.f32.mrb[0].mxu0
        %1683 = vmatprep.mubr.f32.mxu0 0.0
        %1684 = vmatmul.mubr.f32.gmra.mrb[0].mxu0 %v1472
        %v1685 = vpop.f32.mrb[0].mxu0
        %v1686 = vadd.f32 0.0, %v1685
        %v1687 = vpop.f32.mrb[0].mxu0
        %1688 = vmatprep.mubr.f32.mxu0 0.0
        %1689 = vmatmul.mubr.f32.gmra.mrb[0].mxu0 %v1475
        %v1690 = vpop.f32.mrb[0].mxu0
        %v1691 = vadd.f32 0.0, %v1690
        %v1692 = vpop.f32.mrb[0].mxu0
        %1693 = vmatprep.mubr.f32.mxu0 0.0
        %1694 = vmatmul.mubr.f32.gmra.mrb[0].mxu0 %v1478
        %v1695 = vpop.f32.mrb[0].mxu0
        %v1696 = vadd.f32 0.0, %v1695
        %v1697 = vpop.f32.mrb[0].mxu0
        %1698 = vmatprep.mubr.f32.mxu0 0.0
        %1699 = vmatmul.mubr.f32.gmra.mrb[0].mxu0 %v1481
        %v1700 = vpop.f32.mrb[0].mxu0
        %v1701 = vadd.f32 0.0, %v1700
        %v1702 = vpop.f32.mrb[0].mxu0
        %1703 = vmatprep.mubr.f32.mxu0 0.0
        %1704 = vmatmul.mubr.f32.gmra.mrb[0].mxu0 %v1484
        %v1705 = vpop.f32.mrb[0].mxu0
        %v1706 = vadd.f32 0.0, %v1705
        %v1707 = vpop.f32.mrb[0].mxu0
        %1708 = vmatprep.mubr.f32.mxu0 0.0
        %1709 = vmatmul.mubr.f32.gmra.mrb[0].mxu0 %v1487
        %v1710 = vpop.f32.mrb[0].mxu0
        %v1711 = vadd.f32 0.0, %v1710
        %v1712 = vpop.f32.mrb[0].mxu0
        %1713 = vmatprep.mubr.f32.mxu0 0.0
        %1714 = vmatmul.mubr.f32.gmra.mrb[0].mxu0 %v1490
        %v1715 = vpop.f32.mrb[0].mxu0
        %v1716 = vadd.f32 0.0, %v1715
        %v1717 = vpop.f32.mrb[0].mxu0
        %1718 = vmatprep.mubr.f32.mxu0 0.0
        %1719 = vmatmul.mubr.f32.gmra.mrb[0].mxu0 %v1493
        %v1720 = vpop.f32.mrb[0].mxu0
        %v1721 = vadd.f32 0.0, %v1720
        %v1722 = vpop.f32.mrb[0].mxu0
        %1723 = vdwg.mxu0
        %v1725 = vsel %vm1268, %v1329, 0
        %v1728 = vsel %vm1268, %v1330, 0
        %v1731 = vsel %vm1268, %v1331, 0
        %v1734 = vsel %vm1268, %v1332, 0
        %v1737 = vsel %vm1268, %v1333, 0
        %v1740 = vsel %vm1268, %v1334, 0
        %v1743 = vsel %vm1268, %v1335, 0
        %v1746 = vsel %vm1268, %v1336, 0
        %v1749 = vsel %vm1268, %v1337, 0
        %v1752 = vsel %vm1268, %v1338, 0
        %v1755 = vsel %vm1268, %v1339, 0
        %v1758 = vsel %vm1268, %v1340, 0
        %v1761 = vsel %vm1268, %v1341, 0
        %v1764 = vsel %vm1268, %v1342, 0
        %v1767 = vsel %vm1268, %v1343, 0
        %v1770 = vsel %vm1268, %v1344, 0
        %v1773 = vsel %vm1268, %v1345, 0
        %v1776 = vsel %vm1268, %v1346, 0
        %v1779 = vsel %vm1268, %v1347, 0
        %v1782 = vsel %vm1268, %v1348, 0
        %v1785 = vsel %vm1268, %v1349, 0
        %v1788 = vsel %vm1268, %v1350, 0
        %v1791 = vsel %vm1268, %v1351, 0
        %v1794 = vsel %vm1268, %v1352, 0
        %v1797 = vsel %vm1268, %v1353, 0
        %v1800 = vsel %vm1268, %v1354, 0
        %v1803 = vsel %vm1268, %v1355, 0
        %v1806 = vsel %vm1268, %v1356, 0
        %v1809 = vsel %vm1268, %v1357, 0
        %v1812 = vsel %vm1268, %v1358, 0
        %v1815 = vsel %vm1268, %v1359, 0
        %v1818 = vsel %vm1268, %v1360, 0
        %v1821 = vsel %vm1495, %v1362, 0
        %1823 = vmatprep.subr.mxu0 0.0
        %1824 = vmatpush1.msra.mxu0 %v1361
        %1825 = vmatprep.subr.mxu0 0.0
        %1826 = vmatpush1.msra.mxu0 %v1821
        %1827 = vmatprep.subr.mxu0 0.0
        %1828 = vmatpush1.msra.mxu0 0.0
        %1829 = vmatprep.subr.mxu0 0.0
        %1830 = vmatpush1.msra.mxu0 0.0
        %1831 = vmatprep.subr.mxu0 0.0
        %1832 = vmatpush1.msra.mxu0 0.0
        %1833 = vmatprep.subr.mxu0 0.0
        %1834 = vmatpush1.msra.mxu0 0.0
        %1835 = vmatprep.subr.mxu0 0.0
        %1836 = vmatpush1.msra.mxu0 0.0
        %1837 = vmatprep.subr.mxu0 0.0
        %1838 = vmatpush1.msra.mxu0 0.0
        %1839 = vmatprep.subr.mxu0 0.0
        %1840 = vmatpush1.msra.mxu0 0.0
        %1841 = vmatprep.subr.mxu0 0.0
        %1842 = vmatpush1.msra.mxu0 0.0
        %1843 = vmatprep.subr.mxu0 0.0
        %1844 = vmatpush1.msra.mxu0 0.0
        %1845 = vmatprep.subr.mxu0 0.0
        %1846 = vmatpush1.msra.mxu0 0.0
        %1847 = vmatprep.subr.mxu0 0.0
        %1848 = vmatpush1.msra.mxu0 0.0
        %1849 = vmatprep.subr.mxu0 0.0
        %1850 = vmatpush1.msra.mxu0 0.0
        %1851 = vmatprep.subr.mxu0 0.0
        %1852 = vmatpush1.msra.mxu0 0.0
        %1853 = vmatprep.subr.mxu0 0.0
        %1854 = vmatpush1.msra.mxu0 0.0
        %1855 = vmatprep.subr.mxu0 0.0
        %1856 = vmatpush1.msra.mxu0 0.0
        %1857 = vmatprep.subr.mxu0 0.0
        %1858 = vmatpush1.msra.mxu0 0.0
        %1859 = vmatprep.subr.mxu0 0.0
        %1860 = vmatpush1.msra.mxu0 0.0
        %1861 = vmatprep.subr.mxu0 0.0
        %1862 = vmatpush1.msra.mxu0 0.0
        %1863 = vmatprep.subr.mxu0 0.0
        %1864 = vmatpush1.msra.mxu0 0.0
        %1865 = vmatprep.subr.mxu0 0.0
        %1866 = vmatpush1.msra.mxu0 0.0
        %1867 = vmatprep.subr.mxu0 0.0
        %1868 = vmatpush1.msra.mxu0 0.0
        %1869 = vmatprep.subr.mxu0 0.0
        %1870 = vmatpush1.msra.mxu0 0.0
        %1871 = vmatprep.subr.mxu0 0.0
        %1872 = vmatpush1.msra.mxu0 0.0
        %1873 = vmatprep.subr.mxu0 0.0
        %1874 = vmatpush1.msra.mxu0 0.0
        %1875 = vmatprep.subr.mxu0 0.0
        %1876 = vmatpush1.msra.mxu0 0.0
        %1877 = vmatprep.subr.mxu0 0.0
        %1878 = vmatpush1.msra.mxu0 0.0
        %1879 = vmatprep.subr.mxu0 0.0
        %1880 = vmatpush1.msra.mxu0 0.0
        %1881 = vmatprep.subr.mxu0 0.0
        %1882 = vmatpush1.msra.mxu0 0.0
        %1883 = vmatprep.subr.mxu0 0.0
        %1884 = vmatpush1.msra.mxu0 0.0
        %1885 = vmatprep.subr.mxu0 0.0
        %1886 = vmatpush1.msra.mxu0 0.0
        %1887 = vmatprep.mubr.f32.mxu0 0.0
        %1888 = vmatmul.mubr.f32.gmra.mrb[0].mxu0 %v1725
        %v1889 = vpop.f32.mrb[0].mxu0
        %v1890 = vadd.f32 %v1566, %v1889
        %v1891 = vpop.f32.mrb[0].mxu0
        %1892 = vmatprep.mubr.f32.mxu0 0.0
        %1893 = vmatmul.mubr.f32.gmra.mrb[0].mxu0 %v1728
        %v1894 = vpop.f32.mrb[0].mxu0
        %v1895 = vadd.f32 %v1571, %v1894
        %v1896 = vpop.f32.mrb[0].mxu0
        %1897 = vmatprep.mubr.f32.mxu0 0.0
        %1898 = vmatmul.mubr.f32.gmra.mrb[0].mxu0 %v1731
        %v1899 = vpop.f32.mrb[0].mxu0
        %v1900 = vadd.f32 %v1576, %v1899
        %v1901 = vpop.f32.mrb[0].mxu0
        %1902 = vmatprep.mubr.f32.mxu0 0.0
        %1903 = vmatmul.mubr.f32.gmra.mrb[0].mxu0 %v1734
        %v1904 = vpop.f32.mrb[0].mxu0
        %v1905 = vadd.f32 %v1581, %v1904
        %v1906 = vpop.f32.mrb[0].mxu0
        %1907 = vmatprep.mubr.f32.mxu0 0.0
        %1908 = vmatmul.mubr.f32.gmra.mrb[0].mxu0 %v1737
        %v1909 = vpop.f32.mrb[0].mxu0
        %v1910 = vadd.f32 %v1586, %v1909
        %v1911 = vpop.f32.mrb[0].mxu0
        %1912 = vmatprep.mubr.f32.mxu0 0.0
        %1913 = vmatmul.mubr.f32.gmra.mrb[0].mxu0 %v1740
        %v1914 = vpop.f32.mrb[0].mxu0
        %v1915 = vadd.f32 %v1591, %v1914
        %v1916 = vpop.f32.mrb[0].mxu0
        %1917 = vmatprep.mubr.f32.mxu0 0.0
        %1918 = vmatmul.mubr.f32.gmra.mrb[0].mxu0 %v1743
        %v1919 = vpop.f32.mrb[0].mxu0
        %v1920 = vadd.f32 %v1596, %v1919
        %v1921 = vpop.f32.mrb[0].mxu0
        %1922 = vmatprep.mubr.f32.mxu0 0.0
        %1923 = vmatmul.mubr.f32.gmra.mrb[0].mxu0 %v1746
        %v1924 = vpop.f32.mrb[0].mxu0
        %v1925 = vadd.f32 %v1601, %v1924
        %v1926 = vpop.f32.mrb[0].mxu0
        %1927 = vmatprep.mubr.f32.mxu0 0.0
        %1928 = vmatmul.mubr.f32.gmra.mrb[0].mxu0 %v1749
        %v1929 = vpop.f32.mrb[0].mxu0
        %v1930 = vadd.f32 %v1606, %v1929
        %v1931 = vpop.f32.mrb[0].mxu0
        %1932 = vmatprep.mubr.f32.mxu0 0.0
        %1933 = vmatmul.mubr.f32.gmra.mrb[0].mxu0 %v1752
        %v1934 = vpop.f32.mrb[0].mxu0
        %v1935 = vadd.f32 %v1611, %v1934
        %v1936 = vpop.f32.mrb[0].mxu0
        %1937 = vmatprep.mubr.f32.mxu0 0.0
        %1938 = vmatmul.mubr.f32.gmra.mrb[0].mxu0 %v1755
        %v1939 = vpop.f32.mrb[0].mxu0
        %v1940 = vadd.f32 %v1616, %v1939
        %v1941 = vpop.f32.mrb[0].mxu0
        %1942 = vmatprep.mubr.f32.mxu0 0.0
        %1943 = vmatmul.mubr.f32.gmra.mrb[0].mxu0 %v1758
        %v1944 = vpop.f32.mrb[0].mxu0
        %v1945 = vadd.f32 %v1621, %v1944
        %v1946 = vpop.f32.mrb[0].mxu0
        %1947 = vmatprep.mubr.f32.mxu0 0.0
        %1948 = vmatmul.mubr.f32.gmra.mrb[0].mxu0 %v1761
        %v1949 = vpop.f32.mrb[0].mxu0
        %v1950 = vadd.f32 %v1626, %v1949
        %v1951 = vpop.f32.mrb[0].mxu0
        %1952 = vmatprep.mubr.f32.mxu0 0.0
        %1953 = vmatmul.mubr.f32.gmra.mrb[0].mxu0 %v1764
        %v1954 = vpop.f32.mrb[0].mxu0
        %v1955 = vadd.f32 %v1631, %v1954
        %v1956 = vpop.f32.mrb[0].mxu0
        %1957 = vmatprep.mubr.f32.mxu0 0.0
        %1958 = vmatmul.mubr.f32.gmra.mrb[0].mxu0 %v1767
        %v1959 = vpop.f32.mrb[0].mxu0
        %v1960 = vadd.f32 %v1636, %v1959
        %v1961 = vpop.f32.mrb[0].mxu0
        %1962 = vmatprep.mubr.f32.mxu0 0.0
        %1963 = vmatmul.mubr.f32.gmra.mrb[0].mxu0 %v1770
        %v1964 = vpop.f32.mrb[0].mxu0
        %v1965 = vadd.f32 %v1641, %v1964
        %v1966 = vpop.f32.mrb[0].mxu0
        %1967 = vmatprep.mubr.f32.mxu0 0.0
        %1968 = vmatmul.mubr.f32.gmra.mrb[0].mxu0 %v1773
        %v1969 = vpop.f32.mrb[0].mxu0
        %v1970 = vadd.f32 %v1646, %v1969
        %v1971 = vpop.f32.mrb[0].mxu0
        %1972 = vmatprep.mubr.f32.mxu0 0.0
        %1973 = vmatmul.mubr.f32.gmra.mrb[0].mxu0 %v1776
        %v1974 = vpop.f32.mrb[0].mxu0
        %v1975 = vadd.f32 %v1651, %v1974
        %v1976 = vpop.f32.mrb[0].mxu0
        %1977 = vmatprep.mubr.f32.mxu0 0.0
        %1978 = vmatmul.mubr.f32.gmra.mrb[0].mxu0 %v1779
        %v1979 = vpop.f32.mrb[0].mxu0
        %v1980 = vadd.f32 %v1656, %v1979
        %v1981 = vpop.f32.mrb[0].mxu0
        %1982 = vmatprep.mubr.f32.mxu0 0.0
        %1983 = vmatmul.mubr.f32.gmra.mrb[0].mxu0 %v1782
        %v1984 = vpop.f32.mrb[0].mxu0
        %v1985 = vadd.f32 %v1661, %v1984
        %v1986 = vpop.f32.mrb[0].mxu0
        %1987 = vmatprep.mubr.f32.mxu0 0.0
        %1988 = vmatmul.mubr.f32.gmra.mrb[0].mxu0 %v1785
        %v1989 = vpop.f32.mrb[0].mxu0
        %v1990 = vadd.f32 %v1666, %v1989
        %v1991 = vpop.f32.mrb[0].mxu0
        %1992 = vmatprep.mubr.f32.mxu0 0.0
        %1993 = vmatmul.mubr.f32.gmra.mrb[0].mxu0 %v1788
        %v1994 = vpop.f32.mrb[0].mxu0
        %v1995 = vadd.f32 %v1671, %v1994
        %v1996 = vpop.f32.mrb[0].mxu0
        %1997 = vmatprep.mubr.f32.mxu0 0.0
        %1998 = vmatmul.mubr.f32.gmra.mrb[0].mxu0 %v1791
        %v1999 = vpop.f32.mrb[0].mxu0
        %v2000 = vadd.f32 %v1676, %v1999
        %v2001 = vpop.f32.mrb[0].mxu0
        %2002 = vmatprep.mubr.f32.mxu0 0.0
        %2003 = vmatmul.mubr.f32.gmra.mrb[0].mxu0 %v1794
        %v2004 = vpop.f32.mrb[0].mxu0
        %v2005 = vadd.f32 %v1681, %v2004
        %v2006 = vpop.f32.mrb[0].mxu0
        %2007 = vmatprep.mubr.f32.mxu0 0.0
        %2008 = vmatmul.mubr.f32.gmra.mrb[0].mxu0 %v1797
        %v2009 = vpop.f32.mrb[0].mxu0
        %v2010 = vadd.f32 %v1686, %v2009
        %v2011 = vpop.f32.mrb[0].mxu0
        %2012 = vmatprep.mubr.f32.mxu0 0.0
        %2013 = vmatmul.mubr.f32.gmra.mrb[0].mxu0 %v1800
        %v2014 = vpop.f32.mrb[0].mxu0
        %v2015 = vadd.f32 %v1691, %v2014
        %v2016 = vpop.f32.mrb[0].mxu0
        %2017 = vmatprep.mubr.f32.mxu0 0.0
        %2018 = vmatmul.mubr.f32.gmra.mrb[0].mxu0 %v1803
        %v2019 = vpop.f32.mrb[0].mxu0
        %v2020 = vadd.f32 %v1696, %v2019
        %v2021 = vpop.f32.mrb[0].mxu0
        %2022 = vmatprep.mubr.f32.mxu0 0.0
        %2023 = vmatmul.mubr.f32.gmra.mrb[0].mxu0 %v1806
        %v2024 = vpop.f32.mrb[0].mxu0
        %v2025 = vadd.f32 %v1701, %v2024
        %v2026 = vpop.f32.mrb[0].mxu0
        %2027 = vmatprep.mubr.f32.mxu0 0.0
        %2028 = vmatmul.mubr.f32.gmra.mrb[0].mxu0 %v1809
        %v2029 = vpop.f32.mrb[0].mxu0
        %v2030 = vadd.f32 %v1706, %v2029
        %v2031 = vpop.f32.mrb[0].mxu0
        %2032 = vmatprep.mubr.f32.mxu0 0.0
        %2033 = vmatmul.mubr.f32.gmra.mrb[0].mxu0 %v1812
        %v2034 = vpop.f32.mrb[0].mxu0
        %v2035 = vadd.f32 %v1711, %v2034
        %v2036 = vpop.f32.mrb[0].mxu0
        %2037 = vmatprep.mubr.f32.mxu0 0.0
        %2038 = vmatmul.mubr.f32.gmra.mrb[0].mxu0 %v1815
        %v2039 = vpop.f32.mrb[0].mxu0
        %v2040 = vadd.f32 %v1716, %v2039
        %v2041 = vpop.f32.mrb[0].mxu0
        %2042 = vmatprep.mubr.f32.mxu0 0.0
        %2043 = vmatmul.mubr.f32.gmra.mrb[0].mxu0 %v1818
        %v2044 = vpop.f32.mrb[0].mxu0
        %v2045 = vadd.f32 %v1721, %v2044
        %v2046 = vpop.f32.mrb[0].mxu0
        %2047 = vdwg.mxu0
        %s2048 = scalar_lea.vmem [#allocation2], 16
        %v2049 = vld [vmem:[%s2048] sm:$0xff]
        %v2050 = vld [vmem:[%s2048 + $0x8] sm:$0xff]
        %v2051 = vld [vmem:[%s2048 + $0x10] sm:$0xff]
        %v2052 = vld [vmem:[%s2048 + $0x18] sm:$0xff]
        %v2053 = vld [vmem:[%s2048 + $0x20] sm:$0xff]
        %v2054 = vld [vmem:[%s2048 + $0x28] sm:$0xff]
        %v2055 = vld [vmem:[%s2048 + $0x30] sm:$0xff]
        %v2056 = vld [vmem:[%s2048 + $0x38] sm:$0xff]
        %v2057 = vld [vmem:[%s2048 + $0x50] sm:$0xff]
        %v2058 = vld [vmem:[%s2048 + $0x58] sm:$0xff]
        %v2059 = vld [vmem:[%s2048 + $0x60] sm:$0xff]
        %v2060 = vld [vmem:[%s2048 + $0x68] sm:$0xff]
        %v2061 = vld [vmem:[%s2048 + $0x70] sm:$0xff]
        %v2062 = vld [vmem:[%s2048 + $0x78] sm:$0xff]
        %v2063 = vld [vmem:[%s2048 + $0x80] sm:$0xff]
        %v2064 = vld [vmem:[%s2048 + $0x88] sm:$0xff]
        %v2065 = vld [vmem:[%s2048 + $0xa0] sm:$0xff]
        %v2066 = vld [vmem:[%s2048 + $0xa8] sm:$0xff]
        %v2067 = vld [vmem:[%s2048 + $0xb0] sm:$0xff]
        %v2068 = vld [vmem:[%s2048 + $0xb8] sm:$0xff]
        %v2069 = vld [vmem:[%s2048 + $0xc0] sm:$0xff]
        %v2070 = vld [vmem:[%s2048 + $0xc8] sm:$0xff]
        %v2071 = vld [vmem:[%s2048 + $0xd0] sm:$0xff]
        %v2072 = vld [vmem:[%s2048 + $0xd8] sm:$0xff]
        %v2073 = vld [vmem:[%s2048 + $0xf0] sm:$0xff]
        %v2074 = vld [vmem:[%s2048 + $0xf8] sm:$0xff]
        %v2075 = vld [vmem:[%s2048 + $0x100] sm:$0xff]
        %v2076 = vld [vmem:[%s2048 + $0x108] sm:$0xff]
        %v2077 = vld [vmem:[%s2048 + $0x110] sm:$0xff]
        %v2078 = vld [vmem:[%s2048 + $0x118] sm:$0xff]
        %v2079 = vld [vmem:[%s2048 + $0x120] sm:$0xff]
        %v2080 = vld [vmem:[%s2048 + $0x128] sm:$0xff]
        %s2081 = scalar_lea.vmem %s3, 32
        %v2082 = vld [vmem:[%s2081] sm:$0xff]
        %v2083 = vld [vmem:[%s2081 + $0x8] sm:$0xf]
        %v2085 = vsel %vm1268, %v2049, 0
        %v2088 = vsel %vm1268, %v2050, 0
        %v2091 = vsel %vm1268, %v2051, 0
        %v2094 = vsel %vm1268, %v2052, 0
        %v2097 = vsel %vm1268, %v2053, 0
        %v2100 = vsel %vm1268, %v2054, 0
        %v2103 = vsel %vm1268, %v2055, 0
        %v2106 = vsel %vm1268, %v2056, 0
        %v2109 = vsel %vm1268, %v2057, 0
        %v2112 = vsel %vm1268, %v2058, 0
        %v2115 = vsel %vm1268, %v2059, 0
        %v2118 = vsel %vm1268, %v2060, 0
        %v2121 = vsel %vm1268, %v2061, 0
        %v2124 = vsel %vm1268, %v2062, 0
        %v2127 = vsel %vm1268, %v2063, 0
        %v2130 = vsel %vm1268, %v2064, 0
        %v2133 = vsel %vm1268, %v2065, 0
        %v2136 = vsel %vm1268, %v2066, 0
        %v2139 = vsel %vm1268, %v2067, 0
        %v2142 = vsel %vm1268, %v2068, 0
        %v2145 = vsel %vm1268, %v2069, 0
        %v2148 = vsel %vm1268, %v2070, 0
        %v2151 = vsel %vm1268, %v2071, 0
        %v2154 = vsel %vm1268, %v2072, 0
        %v2157 = vsel %vm1268, %v2073, 0
        %v2160 = vsel %vm1268, %v2074, 0
        %v2163 = vsel %vm1268, %v2075, 0
        %v2166 = vsel %vm1268, %v2076, 0
        %v2169 = vsel %vm1268, %v2077, 0
        %v2172 = vsel %vm1268, %v2078, 0
        %v2175 = vsel %vm1268, %v2079, 0
        %v2178 = vsel %vm1268, %v2080, 0
        %v2181 = vsel %vm1495, %v2083, 0
        %2183 = vmatprep.subr.mxu0 0.0
        %2184 = vmatpush1.msra.mxu0 %v2082
        %2185 = vmatprep.subr.mxu0 0.0
        %2186 = vmatpush1.msra.mxu0 %v2181
        %2187 = vmatprep.subr.mxu0 0.0
        %2188 = vmatpush1.msra.mxu0 0.0
        %2189 = vmatprep.subr.mxu0 0.0
        %2190 = vmatpush1.msra.mxu0 0.0
        %2191 = vmatprep.subr.mxu0 0.0
        %2192 = vmatpush1.msra.mxu0 0.0
        %2193 = vmatprep.subr.mxu0 0.0
        %2194 = vmatpush1.msra.mxu0 0.0
        %2195 = vmatprep.subr.mxu0 0.0
        %2196 = vmatpush1.msra.mxu0 0.0
        %2197 = vmatprep.subr.mxu0 0.0
        %2198 = vmatpush1.msra.mxu0 0.0
        %2199 = vmatprep.subr.mxu0 0.0
        %2200 = vmatpush1.msra.mxu0 0.0
        %2201 = vmatprep.subr.mxu0 0.0
        %2202 = vmatpush1.msra.mxu0 0.0
        %2203 = vmatprep.subr.mxu0 0.0
        %2204 = vmatpush1.msra.mxu0 0.0
        %2205 = vmatprep.subr.mxu0 0.0
        %2206 = vmatpush1.msra.mxu0 0.0
        %2207 = vmatprep.subr.mxu0 0.0
        %2208 = vmatpush1.msra.mxu0 0.0
        %2209 = vmatprep.subr.mxu0 0.0
        %2210 = vmatpush1.msra.mxu0 0.0
        %2211 = vmatprep.subr.mxu0 0.0
        %2212 = vmatpush1.msra.mxu0 0.0
        %2213 = vmatprep.subr.mxu0 0.0
        %2214 = vmatpush1.msra.mxu0 0.0
        %2215 = vmatprep.subr.mxu0 0.0
        %2216 = vmatpush1.msra.mxu0 0.0
        %2217 = vmatprep.subr.mxu0 0.0
        %2218 = vmatpush1.msra.mxu0 0.0
        %2219 = vmatprep.subr.mxu0 0.0
        %2220 = vmatpush1.msra.mxu0 0.0
        %2221 = vmatprep.subr.mxu0 0.0
        %2222 = vmatpush1.msra.mxu0 0.0
        %2223 = vmatprep.subr.mxu0 0.0
        %2224 = vmatpush1.msra.mxu0 0.0
        %2225 = vmatprep.subr.mxu0 0.0
        %2226 = vmatpush1.msra.mxu0 0.0
        %2227 = vmatprep.subr.mxu0 0.0
        %2228 = vmatpush1.msra.mxu0 0.0
        %2229 = vmatprep.subr.mxu0 0.0
        %2230 = vmatpush1.msra.mxu0 0.0
        %2231 = vmatprep.subr.mxu0 0.0
        %2232 = vmatpush1.msra.mxu0 0.0
        %2233 = vmatprep.subr.mxu0 0.0
        %2234 = vmatpush1.msra.mxu0 0.0
        %2235 = vmatprep.subr.mxu0 0.0
        %2236 = vmatpush1.msra.mxu0 0.0
        %2237 = vmatprep.subr.mxu0 0.0
        %2238 = vmatpush1.msra.mxu0 0.0
        %2239 = vmatprep.subr.mxu0 0.0
        %2240 = vmatpush1.msra.mxu0 0.0
        %2241 = vmatprep.subr.mxu0 0.0
        %2242 = vmatpush1.msra.mxu0 0.0
        %2243 = vmatprep.subr.mxu0 0.0
        %2244 = vmatpush1.msra.mxu0 0.0
        %2245 = vmatprep.subr.mxu0 0.0
        %2246 = vmatpush1.msra.mxu0 0.0
        %2247 = vmatprep.mubr.f32.mxu0 0.0
        %2248 = vmatmul.mubr.f32.gmra.mrb[0].mxu0 %v2085
        %v2249 = vpop.f32.mrb[0].mxu0
        %v2250 = vadd.f32 0.0, %v2249
        %v2251 = vpop.f32.mrb[0].mxu0
        %2252 = vmatprep.mubr.f32.mxu0 0.0
        %2253 = vmatmul.mubr.f32.gmra.mrb[0].mxu0 %v2088
        %v2254 = vpop.f32.mrb[0].mxu0
        %v2255 = vadd.f32 0.0, %v2254
        %v2256 = vpop.f32.mrb[0].mxu0
        %2257 = vmatprep.mubr.f32.mxu0 0.0
        %2258 = vmatmul.mubr.f32.gmra.mrb[0].mxu0 %v2091
        %v2259 = vpop.f32.mrb[0].mxu0
        %v2260 = vadd.f32 0.0, %v2259
        %v2261 = vpop.f32.mrb[0].mxu0
        %2262 = vmatprep.mubr.f32.mxu0 0.0
        %2263 = vmatmul.mubr.f32.gmra.mrb[0].mxu0 %v2094
        %v2264 = vpop.f32.mrb[0].mxu0
        %v2265 = vadd.f32 0.0, %v2264
        %v2266 = vpop.f32.mrb[0].mxu0
        %2267 = vmatprep.mubr.f32.mxu0 0.0
        %2268 = vmatmul.mubr.f32.gmra.mrb[0].mxu0 %v2097
        %v2269 = vpop.f32.mrb[0].mxu0
        %v2270 = vadd.f32 0.0, %v2269
        %v2271 = vpop.f32.mrb[0].mxu0
        %2272 = vmatprep.mubr.f32.mxu0 0.0
        %2273 = vmatmul.mubr.f32.gmra.mrb[0].mxu0 %v2100
        %v2274 = vpop.f32.mrb[0].mxu0
        %v2275 = vadd.f32 0.0, %v2274
        %v2276 = vpop.f32.mrb[0].mxu0
        %2277 = vmatprep.mubr.f32.mxu0 0.0
        %2278 = vmatmul.mubr.f32.gmra.mrb[0].mxu0 %v2103
        %v2279 = vpop.f32.mrb[0].mxu0
        %v2280 = vadd.f32 0.0, %v2279
        %v2281 = vpop.f32.mrb[0].mxu0
        %2282 = vmatprep.mubr.f32.mxu0 0.0
        %2283 = vmatmul.mubr.f32.gmra.mrb[0].mxu0 %v2106
        %v2284 = vpop.f32.mrb[0].mxu0
        %v2285 = vadd.f32 0.0, %v2284
        %v2286 = vpop.f32.mrb[0].mxu0
        %2287 = vmatprep.mubr.f32.mxu0 0.0
        %2288 = vmatmul.mubr.f32.gmra.mrb[0].mxu0 %v2109
        %v2289 = vpop.f32.mrb[0].mxu0
        %v2290 = vadd.f32 0.0, %v2289
        %v2291 = vpop.f32.mrb[0].mxu0
        %2292 = vmatprep.mubr.f32.mxu0 0.0
        %2293 = vmatmul.mubr.f32.gmra.mrb[0].mxu0 %v2112
        %v2294 = vpop.f32.mrb[0].mxu0
        %v2295 = vadd.f32 0.0, %v2294
        %v2296 = vpop.f32.mrb[0].mxu0
        %2297 = vmatprep.mubr.f32.mxu0 0.0
        %2298 = vmatmul.mubr.f32.gmra.mrb[0].mxu0 %v2115
        %v2299 = vpop.f32.mrb[0].mxu0
        %v2300 = vadd.f32 0.0, %v2299
        %v2301 = vpop.f32.mrb[0].mxu0
        %2302 = vmatprep.mubr.f32.mxu0 0.0
        %2303 = vmatmul.mubr.f32.gmra.mrb[0].mxu0 %v2118
        %v2304 = vpop.f32.mrb[0].mxu0
        %v2305 = vadd.f32 0.0, %v2304
        %v2306 = vpop.f32.mrb[0].mxu0
        %2307 = vmatprep.mubr.f32.mxu0 0.0
        %2308 = vmatmul.mubr.f32.gmra.mrb[0].mxu0 %v2121
        %v2309 = vpop.f32.mrb[0].mxu0
        %v2310 = vadd.f32 0.0, %v2309
        %v2311 = vpop.f32.mrb[0].mxu0
        %2312 = vmatprep.mubr.f32.mxu0 0.0
        %2313 = vmatmul.mubr.f32.gmra.mrb[0].mxu0 %v2124
        %v2314 = vpop.f32.mrb[0].mxu0
        %v2315 = vadd.f32 0.0, %v2314
        %v2316 = vpop.f32.mrb[0].mxu0
        %2317 = vmatprep.mubr.f32.mxu0 0.0
        %2318 = vmatmul.mubr.f32.gmra.mrb[0].mxu0 %v2127
        %v2319 = vpop.f32.mrb[0].mxu0
        %v2320 = vadd.f32 0.0, %v2319
        %v2321 = vpop.f32.mrb[0].mxu0
        %2322 = vmatprep.mubr.f32.mxu0 0.0
        %2323 = vmatmul.mubr.f32.gmra.mrb[0].mxu0 %v2130
        %v2324 = vpop.f32.mrb[0].mxu0
        %v2325 = vadd.f32 0.0, %v2324
        %v2326 = vpop.f32.mrb[0].mxu0
        %2327 = vmatprep.mubr.f32.mxu0 0.0
        %2328 = vmatmul.mubr.f32.gmra.mrb[0].mxu0 %v2133
        %v2329 = vpop.f32.mrb[0].mxu0
        %v2330 = vadd.f32 0.0, %v2329
        %v2331 = vpop.f32.mrb[0].mxu0
        %2332 = vmatprep.mubr.f32.mxu0 0.0
        %2333 = vmatmul.mubr.f32.gmra.mrb[0].mxu0 %v2136
        %v2334 = vpop.f32.mrb[0].mxu0
        %v2335 = vadd.f32 0.0, %v2334
        %v2336 = vpop.f32.mrb[0].mxu0
        %2337 = vmatprep.mubr.f32.mxu0 0.0
        %2338 = vmatmul.mubr.f32.gmra.mrb[0].mxu0 %v2139
        %v2339 = vpop.f32.mrb[0].mxu0
        %v2340 = vadd.f32 0.0, %v2339
        %v2341 = vpop.f32.mrb[0].mxu0
        %2342 = vmatprep.mubr.f32.mxu0 0.0
        %2343 = vmatmul.mubr.f32.gmra.mrb[0].mxu0 %v2142
        %v2344 = vpop.f32.mrb[0].mxu0
        %v2345 = vadd.f32 0.0, %v2344
        %v2346 = vpop.f32.mrb[0].mxu0
        %2347 = vmatprep.mubr.f32.mxu0 0.0
        %2348 = vmatmul.mubr.f32.gmra.mrb[0].mxu0 %v2145
        %v2349 = vpop.f32.mrb[0].mxu0
        %v2350 = vadd.f32 0.0, %v2349
        %v2351 = vpop.f32.mrb[0].mxu0
        %2352 = vmatprep.mubr.f32.mxu0 0.0
        %2353 = vmatmul.mubr.f32.gmra.mrb[0].mxu0 %v2148
        %v2354 = vpop.f32.mrb[0].mxu0
        %v2355 = vadd.f32 0.0, %v2354
        %v2356 = vpop.f32.mrb[0].mxu0
        %2357 = vmatprep.mubr.f32.mxu0 0.0
        %2358 = vmatmul.mubr.f32.gmra.mrb[0].mxu0 %v2151
        %v2359 = vpop.f32.mrb[0].mxu0
        %v2360 = vadd.f32 0.0, %v2359
        %v2361 = vpop.f32.mrb[0].mxu0
        %2362 = vmatprep.mubr.f32.mxu0 0.0
        %2363 = vmatmul.mubr.f32.gmra.mrb[0].mxu0 %v2154
        %v2364 = vpop.f32.mrb[0].mxu0
        %v2365 = vadd.f32 0.0, %v2364
        %v2366 = vpop.f32.mrb[0].mxu0
        %2367 = vmatprep.mubr.f32.mxu0 0.0
        %2368 = vmatmul.mubr.f32.gmra.mrb[0].mxu0 %v2157
        %v2369 = vpop.f32.mrb[0].mxu0
        %v2370 = vadd.f32 0.0, %v2369
        %v2371 = vpop.f32.mrb[0].mxu0
        %2372 = vmatprep.mubr.f32.mxu0 0.0
        %2373 = vmatmul.mubr.f32.gmra.mrb[0].mxu0 %v2160
        %v2374 = vpop.f32.mrb[0].mxu0
        %v2375 = vadd.f32 0.0, %v2374
        %v2376 = vpop.f32.mrb[0].mxu0
        %2377 = vmatprep.mubr.f32.mxu0 0.0
        %2378 = vmatmul.mubr.f32.gmra.mrb[0].mxu0 %v2163
        %v2379 = vpop.f32.mrb[0].mxu0
        %v2380 = vadd.f32 0.0, %v2379
        %v2381 = vpop.f32.mrb[0].mxu0
        %2382 = vmatprep.mubr.f32.mxu0 0.0
        %2383 = vmatmul.mubr.f32.gmra.mrb[0].mxu0 %v2166
        %v2384 = vpop.f32.mrb[0].mxu0
        %v2385 = vadd.f32 0.0, %v2384
        %v2386 = vpop.f32.mrb[0].mxu0
        %2387 = vmatprep.mubr.f32.mxu0 0.0
        %2388 = vmatmul.mubr.f32.gmra.mrb[0].mxu0 %v2169
        %v2389 = vpop.f32.mrb[0].mxu0
        %v2390 = vadd.f32 0.0, %v2389
        %v2391 = vpop.f32.mrb[0].mxu0
        %2392 = vmatprep.mubr.f32.mxu0 0.0
        %2393 = vmatmul.mubr.f32.gmra.mrb[0].mxu0 %v2172
        %v2394 = vpop.f32.mrb[0].mxu0
        %v2395 = vadd.f32 0.0, %v2394
        %v2396 = vpop.f32.mrb[0].mxu0
        %2397 = vmatprep.mubr.f32.mxu0 0.0
        %2398 = vmatmul.mubr.f32.gmra.mrb[0].mxu0 %v2175
        %v2399 = vpop.f32.mrb[0].mxu0
        %v2400 = vadd.f32 0.0, %v2399
        %v2401 = vpop.f32.mrb[0].mxu0
        %2402 = vmatprep.mubr.f32.mxu0 0.0
        %2403 = vmatmul.mubr.f32.gmra.mrb[0].mxu0 %v2178
        %v2404 = vpop.f32.mrb[0].mxu0
        %v2405 = vadd.f32 0.0, %v2404
        %v2406 = vpop.f32.mrb[0].mxu0
        %2407 = vdwg.mxu0
        %v2408 = vadd.f32 %v1890, %v2250
        %v2409 = vadd.f32 %v1895, %v2255
        %v2410 = vadd.f32 %v1900, %v2260
        %v2411 = vadd.f32 %v1905, %v2265
        %v2412 = vadd.f32 %v1910, %v2270
        %v2413 = vadd.f32 %v1915, %v2275
        %v2414 = vadd.f32 %v1920, %v2280
        %v2415 = vadd.f32 %v1925, %v2285
        %v2416 = vadd.f32 %v1930, %v2290
        %v2417 = vadd.f32 %v1935, %v2295
        %v2418 = vadd.f32 %v1940, %v2300
        %v2419 = vadd.f32 %v1945, %v2305
        %v2420 = vadd.f32 %v1950, %v2310
        %v2421 = vadd.f32 %v1955, %v2315
        %v2422 = vadd.f32 %v1960, %v2320
        %v2423 = vadd.f32 %v1965, %v2325
        %v2424 = vadd.f32 %v1970, %v2330
        %v2425 = vadd.f32 %v1975, %v2335
        %v2426 = vadd.f32 %v1980, %v2340
        %v2427 = vadd.f32 %v1985, %v2345
        %v2428 = vadd.f32 %v1990, %v2350
        %v2429 = vadd.f32 %v1995, %v2355
        %v2430 = vadd.f32 %v2000, %v2360
        %v2431 = vadd.f32 %v2005, %v2365
        %v2432 = vadd.f32 %v2010, %v2370
        %v2433 = vadd.f32 %v2015, %v2375
        %v2434 = vadd.f32 %v2020, %v2380
        %v2435 = vadd.f32 %v2025, %v2385
        %v2436 = vadd.f32 %v2030, %v2390
        %v2437 = vadd.f32 %v2035, %v2395
        %v2438 = vadd.f32 %v2040, %v2400
        %v2439 = vadd.f32 %v2045, %v2405
        %s2440 = scalar_lea.vmem [#allocation2], 80
        %v2441 = vld [vmem:[%s2440] sm:$0xff]
        %v2442 = vld [vmem:[%s2440 + $0x8] sm:$0xff]
        %v2443 = vld [vmem:[%s2440 + $0x10] sm:$0xff]
        %v2444 = vld [vmem:[%s2440 + $0x18] sm:$0xff]
        %v2445 = vld [vmem:[%s2440 + $0x20] sm:$0xff]
        %v2446 = vld [vmem:[%s2440 + $0x28] sm:$0xff]
        %v2447 = vld [vmem:[%s2440 + $0x30] sm:$0xff]
        %v2448 = vld [vmem:[%s2440 + $0x38] sm:$0xff]
        %v2449 = vld [vmem:[%s2440 + $0x50] sm:$0xff]
        %v2450 = vld [vmem:[%s2440 + $0x58] sm:$0xff]
        %v2451 = vld [vmem:[%s2440 + $0x60] sm:$0xff]
        %v2452 = vld [vmem:[%s2440 + $0x68] sm:$0xff]
        %v2453 = vld [vmem:[%s2440 + $0x70] sm:$0xff]
        %v2454 = vld [vmem:[%s2440 + $0x78] sm:$0xff]
        %v2455 = vld [vmem:[%s2440 + $0x80] sm:$0xff]
        %v2456 = vld [vmem:[%s2440 + $0x88] sm:$0xff]
        %v2457 = vld [vmem:[%s2440 + $0xa0] sm:$0xff]
        %v2458 = vld [vmem:[%s2440 + $0xa8] sm:$0xff]
        %v2459 = vld [vmem:[%s2440 + $0xb0] sm:$0xff]
        %v2460 = vld [vmem:[%s2440 + $0xb8] sm:$0xff]
        %v2461 = vld [vmem:[%s2440 + $0xc0] sm:$0xff]
        %v2462 = vld [vmem:[%s2440 + $0xc8] sm:$0xff]
        %v2463 = vld [vmem:[%s2440 + $0xd0] sm:$0xff]
        %v2464 = vld [vmem:[%s2440 + $0xd8] sm:$0xff]
        %v2465 = vld [vmem:[%s2440 + $0xf0] sm:$0xff]
        %v2466 = vld [vmem:[%s2440 + $0xf8] sm:$0xff]
        %v2467 = vld [vmem:[%s2440 + $0x100] sm:$0xff]
        %v2468 = vld [vmem:[%s2440 + $0x108] sm:$0xff]
        %v2469 = vld [vmem:[%s2440 + $0x110] sm:$0xff]
        %v2470 = vld [vmem:[%s2440 + $0x118] sm:$0xff]
        %v2471 = vld [vmem:[%s2440 + $0x120] sm:$0xff]
        %v2472 = vld [vmem:[%s2440 + $0x128] sm:$0xff]
        %s2473 = scalar_lea.vmem %s3, 48
        %v2474 = vld [vmem:[%s2473] sm:$0xff]
        %v2475 = vld [vmem:[%s2473 + $0x8] sm:$0xf]
        %v2477 = vsel %vm1268, %v2441, 0
        %v2480 = vsel %vm1268, %v2442, 0
        %v2483 = vsel %vm1268, %v2443, 0
        %v2486 = vsel %vm1268, %v2444, 0
        %v2489 = vsel %vm1268, %v2445, 0
        %v2492 = vsel %vm1268, %v2446, 0
        %v2495 = vsel %vm1268, %v2447, 0
        %v2498 = vsel %vm1268, %v2448, 0
        %v2501 = vsel %vm1268, %v2449, 0
        %v2504 = vsel %vm1268, %v2450, 0
        %v2507 = vsel %vm1268, %v2451, 0
        %v2510 = vsel %vm1268, %v2452, 0
        %v2513 = vsel %vm1268, %v2453, 0
        %v2516 = vsel %vm1268, %v2454, 0
        %v2519 = vsel %vm1268, %v2455, 0
        %v2522 = vsel %vm1268, %v2456, 0
        %v2525 = vsel %vm1268, %v2457, 0
        %v2528 = vsel %vm1268, %v2458, 0
        %v2531 = vsel %vm1268, %v2459, 0
        %v2534 = vsel %vm1268, %v2460, 0
        %v2537 = vsel %vm1268, %v2461, 0
        %v2540 = vsel %vm1268, %v2462, 0
        %v2543 = vsel %vm1268, %v2463, 0
        %v2546 = vsel %vm1268, %v2464, 0
        %v2549 = vsel %vm1268, %v2465, 0
        %v2552 = vsel %vm1268, %v2466, 0
        %v2555 = vsel %vm1268, %v2467, 0
        %v2558 = vsel %vm1268, %v2468, 0
        %v2561 = vsel %vm1268, %v2469, 0
        %v2564 = vsel %vm1268, %v2470, 0
        %v2567 = vsel %vm1268, %v2471, 0
        %v2570 = vsel %vm1268, %v2472, 0
        %v2573 = vsel %vm1495, %v2475, 0
        %2575 = vmatprep.subr.mxu0 0.0
        %2576 = vmatpush1.msra.mxu0 %v2474
        %2577 = vmatprep.subr.mxu0 0.0
        %2578 = vmatpush1.msra.mxu0 %v2573
        %2579 = vmatprep.subr.mxu0 0.0
        %2580 = vmatpush1.msra.mxu0 0.0
        %2581 = vmatprep.subr.mxu0 0.0
        %2582 = vmatpush1.msra.mxu0 0.0
        %2583 = vmatprep.subr.mxu0 0.0
        %2584 = vmatpush1.msra.mxu0 0.0
        %2585 = vmatprep.subr.mxu0 0.0
        %2586 = vmatpush1.msra.mxu0 0.0
        %2587 = vmatprep.subr.mxu0 0.0
        %2588 = vmatpush1.msra.mxu0 0.0
        %2589 = vmatprep.subr.mxu0 0.0
        %2590 = vmatpush1.msra.mxu0 0.0
        %2591 = vmatprep.subr.mxu0 0.0
        %2592 = vmatpush1.msra.mxu0 0.0
        %2593 = vmatprep.subr.mxu0 0.0
        %2594 = vmatpush1.msra.mxu0 0.0
        %2595 = vmatprep.subr.mxu0 0.0
        %2596 = vmatpush1.msra.mxu0 0.0
        %2597 = vmatprep.subr.mxu0 0.0
        %2598 = vmatpush1.msra.mxu0 0.0
        %2599 = vmatprep.subr.mxu0 0.0
        %2600 = vmatpush1.msra.mxu0 0.0
        %2601 = vmatprep.subr.mxu0 0.0
        %2602 = vmatpush1.msra.mxu0 0.0
        %2603 = vmatprep.subr.mxu0 0.0
        %2604 = vmatpush1.msra.mxu0 0.0
        %2605 = vmatprep.subr.mxu0 0.0
        %2606 = vmatpush1.msra.mxu0 0.0
        %2607 = vmatprep.subr.mxu0 0.0
        %2608 = vmatpush1.msra.mxu0 0.0
        %2609 = vmatprep.subr.mxu0 0.0
        %2610 = vmatpush1.msra.mxu0 0.0
        %2611 = vmatprep.subr.mxu0 0.0
        %2612 = vmatpush1.msra.mxu0 0.0
        %2613 = vmatprep.subr.mxu0 0.0
        %2614 = vmatpush1.msra.mxu0 0.0
        %2615 = vmatprep.subr.mxu0 0.0
        %2616 = vmatpush1.msra.mxu0 0.0
        %2617 = vmatprep.subr.mxu0 0.0
        %2618 = vmatpush1.msra.mxu0 0.0
        %2619 = vmatprep.subr.mxu0 0.0
        %2620 = vmatpush1.msra.mxu0 0.0
        %2621 = vmatprep.subr.mxu0 0.0
        %2622 = vmatpush1.msra.mxu0 0.0
        %2623 = vmatprep.subr.mxu0 0.0
        %2624 = vmatpush1.msra.mxu0 0.0
        %2625 = vmatprep.subr.mxu0 0.0
        %2626 = vmatpush1.msra.mxu0 0.0
        %2627 = vmatprep.subr.mxu0 0.0
        %2628 = vmatpush1.msra.mxu0 0.0
        %2629 = vmatprep.subr.mxu0 0.0
        %2630 = vmatpush1.msra.mxu0 0.0
        %2631 = vmatprep.subr.mxu0 0.0
        %2632 = vmatpush1.msra.mxu0 0.0
        %2633 = vmatprep.subr.mxu0 0.0
        %2634 = vmatpush1.msra.mxu0 0.0
        %2635 = vmatprep.subr.mxu0 0.0
        %2636 = vmatpush1.msra.mxu0 0.0
        %2637 = vmatprep.subr.mxu0 0.0
        %2638 = vmatpush1.msra.mxu0 0.0
        %2639 = vmatprep.mubr.f32.mxu0 0.0
        %2640 = vmatmul.mubr.f32.gmra.mrb[0].mxu0 %v2477
        %v2641 = vpop.f32.mrb[0].mxu0
        %v2642 = vadd.f32 0.0, %v2641
        %v2643 = vpop.f32.mrb[0].mxu0
        %2644 = vmatprep.mubr.f32.mxu0 0.0
        %2645 = vmatmul.mubr.f32.gmra.mrb[0].mxu0 %v2480
        %v2646 = vpop.f32.mrb[0].mxu0
        %v2647 = vadd.f32 0.0, %v2646
        %v2648 = vpop.f32.mrb[0].mxu0
        %2649 = vmatprep.mubr.f32.mxu0 0.0
        %2650 = vmatmul.mubr.f32.gmra.mrb[0].mxu0 %v2483
        %v2651 = vpop.f32.mrb[0].mxu0
        %v2652 = vadd.f32 0.0, %v2651
        %v2653 = vpop.f32.mrb[0].mxu0
        %2654 = vmatprep.mubr.f32.mxu0 0.0
        %2655 = vmatmul.mubr.f32.gmra.mrb[0].mxu0 %v2486
        %v2656 = vpop.f32.mrb[0].mxu0
        %v2657 = vadd.f32 0.0, %v2656
        %v2658 = vpop.f32.mrb[0].mxu0
        %2659 = vmatprep.mubr.f32.mxu0 0.0
        %2660 = vmatmul.mubr.f32.gmra.mrb[0].mxu0 %v2489
        %v2661 = vpop.f32.mrb[0].mxu0
        %v2662 = vadd.f32 0.0, %v2661
        %v2663 = vpop.f32.mrb[0].mxu0
        %2664 = vmatprep.mubr.f32.mxu0 0.0
        %2665 = vmatmul.mubr.f32.gmra.mrb[0].mxu0 %v2492
        %v2666 = vpop.f32.mrb[0].mxu0
        %v2667 = vadd.f32 0.0, %v2666
        %v2668 = vpop.f32.mrb[0].mxu0
        %2669 = vmatprep.mubr.f32.mxu0 0.0
        %2670 = vmatmul.mubr.f32.gmra.mrb[0].mxu0 %v2495
        %v2671 = vpop.f32.mrb[0].mxu0
        %v2672 = vadd.f32 0.0, %v2671
        %v2673 = vpop.f32.mrb[0].mxu0
        %2674 = vmatprep.mubr.f32.mxu0 0.0
        %2675 = vmatmul.mubr.f32.gmra.mrb[0].mxu0 %v2498
        %v2676 = vpop.f32.mrb[0].mxu0
        %v2677 = vadd.f32 0.0, %v2676
        %v2678 = vpop.f32.mrb[0].mxu0
        %2679 = vmatprep.mubr.f32.mxu0 0.0
        %2680 = vmatmul.mubr.f32.gmra.mrb[0].mxu0 %v2501
        %v2681 = vpop.f32.mrb[0].mxu0
        %v2682 = vadd.f32 0.0, %v2681
        %v2683 = vpop.f32.mrb[0].mxu0
        %2684 = vmatprep.mubr.f32.mxu0 0.0
        %2685 = vmatmul.mubr.f32.gmra.mrb[0].mxu0 %v2504
        %v2686 = vpop.f32.mrb[0].mxu0
        %v2687 = vadd.f32 0.0, %v2686
        %v2688 = vpop.f32.mrb[0].mxu0
        %2689 = vmatprep.mubr.f32.mxu0 0.0
        %2690 = vmatmul.mubr.f32.gmra.mrb[0].mxu0 %v2507
        %v2691 = vpop.f32.mrb[0].mxu0
        %v2692 = vadd.f32 0.0, %v2691
        %v2693 = vpop.f32.mrb[0].mxu0
        %2694 = vmatprep.mubr.f32.mxu0 0.0
        %2695 = vmatmul.mubr.f32.gmra.mrb[0].mxu0 %v2510
        %v2696 = vpop.f32.mrb[0].mxu0
        %v2697 = vadd.f32 0.0, %v2696
        %v2698 = vpop.f32.mrb[0].mxu0
        %2699 = vmatprep.mubr.f32.mxu0 0.0
        %2700 = vmatmul.mubr.f32.gmra.mrb[0].mxu0 %v2513
        %v2701 = vpop.f32.mrb[0].mxu0
        %v2702 = vadd.f32 0.0, %v2701
        %v2703 = vpop.f32.mrb[0].mxu0
        %2704 = vmatprep.mubr.f32.mxu0 0.0
        %2705 = vmatmul.mubr.f32.gmra.mrb[0].mxu0 %v2516
        %v2706 = vpop.f32.mrb[0].mxu0
        %v2707 = vadd.f32 0.0, %v2706
        %v2708 = vpop.f32.mrb[0].mxu0
        %2709 = vmatprep.mubr.f32.mxu0 0.0
        %2710 = vmatmul.mubr.f32.gmra.mrb[0].mxu0 %v2519
        %v2711 = vpop.f32.mrb[0].mxu0
        %v2712 = vadd.f32 0.0, %v2711
        %v2713 = vpop.f32.mrb[0].mxu0
        %2714 = vmatprep.mubr.f32.mxu0 0.0
        %2715 = vmatmul.mubr.f32.gmra.mrb[0].mxu0 %v2522
        %v2716 = vpop.f32.mrb[0].mxu0
        %v2717 = vadd.f32 0.0, %v2716
        %v2718 = vpop.f32.mrb[0].mxu0
        %2719 = vmatprep.mubr.f32.mxu0 0.0
        %2720 = vmatmul.mubr.f32.gmra.mrb[0].mxu0 %v2525
        %v2721 = vpop.f32.mrb[0].mxu0
        %v2722 = vadd.f32 0.0, %v2721
        %v2723 = vpop.f32.mrb[0].mxu0
        %2724 = vmatprep.mubr.f32.mxu0 0.0
        %2725 = vmatmul.mubr.f32.gmra.mrb[0].mxu0 %v2528
        %v2726 = vpop.f32.mrb[0].mxu0
        %v2727 = vadd.f32 0.0, %v2726
        %v2728 = vpop.f32.mrb[0].mxu0
        %2729 = vmatprep.mubr.f32.mxu0 0.0
        %2730 = vmatmul.mubr.f32.gmra.mrb[0].mxu0 %v2531
        %v2731 = vpop.f32.mrb[0].mxu0
        %v2732 = vadd.f32 0.0, %v2731
        %v2733 = vpop.f32.mrb[0].mxu0
        %2734 = vmatprep.mubr.f32.mxu0 0.0
        %2735 = vmatmul.mubr.f32.gmra.mrb[0].mxu0 %v2534
        %v2736 = vpop.f32.mrb[0].mxu0
        %v2737 = vadd.f32 0.0, %v2736
        %v2738 = vpop.f32.mrb[0].mxu0
        %2739 = vmatprep.mubr.f32.mxu0 0.0
        %2740 = vmatmul.mubr.f32.gmra.mrb[0].mxu0 %v2537
        %v2741 = vpop.f32.mrb[0].mxu0
        %v2742 = vadd.f32 0.0, %v2741
        %v2743 = vpop.f32.mrb[0].mxu0
        %2744 = vmatprep.mubr.f32.mxu0 0.0
        %2745 = vmatmul.mubr.f32.gmra.mrb[0].mxu0 %v2540
        %v2746 = vpop.f32.mrb[0].mxu0
        %v2747 = vadd.f32 0.0, %v2746
        %v2748 = vpop.f32.mrb[0].mxu0
        %2749 = vmatprep.mubr.f32.mxu0 0.0
        %2750 = vmatmul.mubr.f32.gmra.mrb[0].mxu0 %v2543
        %v2751 = vpop.f32.mrb[0].mxu0
        %v2752 = vadd.f32 0.0, %v2751
        %v2753 = vpop.f32.mrb[0].mxu0
        %2754 = vmatprep.mubr.f32.mxu0 0.0
        %2755 = vmatmul.mubr.f32.gmra.mrb[0].mxu0 %v2546
        %v2756 = vpop.f32.mrb[0].mxu0
        %v2757 = vadd.f32 0.0, %v2756
        %v2758 = vpop.f32.mrb[0].mxu0
        %2759 = vmatprep.mubr.f32.mxu0 0.0
        %2760 = vmatmul.mubr.f32.gmra.mrb[0].mxu0 %v2549
        %v2761 = vpop.f32.mrb[0].mxu0
        %v2762 = vadd.f32 0.0, %v2761
        %v2763 = vpop.f32.mrb[0].mxu0
        %2764 = vmatprep.mubr.f32.mxu0 0.0
        %2765 = vmatmul.mubr.f32.gmra.mrb[0].mxu0 %v2552
        %v2766 = vpop.f32.mrb[0].mxu0
        %v2767 = vadd.f32 0.0, %v2766
        %v2768 = vpop.f32.mrb[0].mxu0
        %2769 = vmatprep.mubr.f32.mxu0 0.0
        %2770 = vmatmul.mubr.f32.gmra.mrb[0].mxu0 %v2555
        %v2771 = vpop.f32.mrb[0].mxu0
        %v2772 = vadd.f32 0.0, %v2771
        %v2773 = vpop.f32.mrb[0].mxu0
        %2774 = vmatprep.mubr.f32.mxu0 0.0
        %2775 = vmatmul.mubr.f32.gmra.mrb[0].mxu0 %v2558
        %v2776 = vpop.f32.mrb[0].mxu0
        %v2777 = vadd.f32 0.0, %v2776
        %v2778 = vpop.f32.mrb[0].mxu0
        %2779 = vmatprep.mubr.f32.mxu0 0.0
        %2780 = vmatmul.mubr.f32.gmra.mrb[0].mxu0 %v2561
        %v2781 = vpop.f32.mrb[0].mxu0
        %v2782 = vadd.f32 0.0, %v2781
        %v2783 = vpop.f32.mrb[0].mxu0
        %2784 = vmatprep.mubr.f32.mxu0 0.0
        %2785 = vmatmul.mubr.f32.gmra.mrb[0].mxu0 %v2564
        %v2786 = vpop.f32.mrb[0].mxu0
        %v2787 = vadd.f32 0.0, %v2786
        %v2788 = vpop.f32.mrb[0].mxu0
        %2789 = vmatprep.mubr.f32.mxu0 0.0
        %2790 = vmatmul.mubr.f32.gmra.mrb[0].mxu0 %v2567
        %v2791 = vpop.f32.mrb[0].mxu0
        %v2792 = vadd.f32 0.0, %v2791
        %v2793 = vpop.f32.mrb[0].mxu0
        %2794 = vmatprep.mubr.f32.mxu0 0.0
        %2795 = vmatmul.mubr.f32.gmra.mrb[0].mxu0 %v2570
        %v2796 = vpop.f32.mrb[0].mxu0
        %v2797 = vadd.f32 0.0, %v2796
        %v2798 = vpop.f32.mrb[0].mxu0
        %2799 = vdwg.mxu0
        %v2800 = vadd.f32 %v2408, %v2642
        %v2801 = vadd.f32 %v2409, %v2647
        %v2802 = vadd.f32 %v2410, %v2652
        %v2803 = vadd.f32 %v2411, %v2657
        %v2804 = vadd.f32 %v2412, %v2662
        %v2805 = vadd.f32 %v2413, %v2667
        %v2806 = vadd.f32 %v2414, %v2672
        %v2807 = vadd.f32 %v2415, %v2677
        %v2808 = vadd.f32 %v2416, %v2682
        %v2809 = vadd.f32 %v2417, %v2687
        %v2810 = vadd.f32 %v2418, %v2692
        %v2811 = vadd.f32 %v2419, %v2697
        %v2812 = vadd.f32 %v2420, %v2702
        %v2813 = vadd.f32 %v2421, %v2707
        %v2814 = vadd.f32 %v2422, %v2712
        %v2815 = vadd.f32 %v2423, %v2717
        %v2816 = vadd.f32 %v2424, %v2722
        %v2817 = vadd.f32 %v2425, %v2727
        %v2818 = vadd.f32 %v2426, %v2732
        %v2819 = vadd.f32 %v2427, %v2737
        %v2820 = vadd.f32 %v2428, %v2742
        %v2821 = vadd.f32 %v2429, %v2747
        %v2822 = vadd.f32 %v2430, %v2752
        %v2823 = vadd.f32 %v2431, %v2757
        %v2824 = vadd.f32 %v2432, %v2762
        %v2825 = vadd.f32 %v2433, %v2767
        %v2826 = vadd.f32 %v2434, %v2772
        %v2827 = vadd.f32 %v2435, %v2777
        %v2828 = vadd.f32 %v2436, %v2782
        %v2829 = vadd.f32 %v2437, %v2787
        %v2830 = vadd.f32 %v2438, %v2792
        %v2831 = vadd.f32 %v2439, %v2797
        %s2832 = scalar_lea.vmem [#allocation2], 88
        %v2833 = vld [vmem:[%s2832] sm:$0xff]
        %v2834 = vld [vmem:[%s2832 + $0x8] sm:$0xff]
        %v2835 = vld [vmem:[%s2832 + $0x10] sm:$0xff]
        %v2836 = vld [vmem:[%s2832 + $0x18] sm:$0xff]
        %v2837 = vld [vmem:[%s2832 + $0x20] sm:$0xff]
        %v2838 = vld [vmem:[%s2832 + $0x28] sm:$0xff]
        %v2839 = vld [vmem:[%s2832 + $0x30] sm:$0xff]
        %v2840 = vld [vmem:[%s2832 + $0x38] sm:$0xff]
        %v2841 = vld [vmem:[%s2832 + $0x50] sm:$0xff]
        %v2842 = vld [vmem:[%s2832 + $0x58] sm:$0xff]
        %v2843 = vld [vmem:[%s2832 + $0x60] sm:$0xff]
        %v2844 = vld [vmem:[%s2832 + $0x68] sm:$0xff]
        %v2845 = vld [vmem:[%s2832 + $0x70] sm:$0xff]
        %v2846 = vld [vmem:[%s2832 + $0x78] sm:$0xff]
        %v2847 = vld [vmem:[%s2832 + $0x80] sm:$0xff]
        %v2848 = vld [vmem:[%s2832 + $0x88] sm:$0xff]
        %v2849 = vld [vmem:[%s2832 + $0xa0] sm:$0xff]
        %v2850 = vld [vmem:[%s2832 + $0xa8] sm:$0xff]
        %v2851 = vld [vmem:[%s2832 + $0xb0] sm:$0xff]
        %v2852 = vld [vmem:[%s2832 + $0xb8] sm:$0xff]
        %v2853 = vld [vmem:[%s2832 + $0xc0] sm:$0xff]
        %v2854 = vld [vmem:[%s2832 + $0xc8] sm:$0xff]
        %v2855 = vld [vmem:[%s2832 + $0xd0] sm:$0xff]
        %v2856 = vld [vmem:[%s2832 + $0xd8] sm:$0xff]
        %v2857 = vld [vmem:[%s2832 + $0xf0] sm:$0xff]
        %v2858 = vld [vmem:[%s2832 + $0xf8] sm:$0xff]
        %v2859 = vld [vmem:[%s2832 + $0x100] sm:$0xff]
        %v2860 = vld [vmem:[%s2832 + $0x108] sm:$0xff]
        %v2861 = vld [vmem:[%s2832 + $0x110] sm:$0xff]
        %v2862 = vld [vmem:[%s2832 + $0x118] sm:$0xff]
        %v2863 = vld [vmem:[%s2832 + $0x120] sm:$0xff]
        %v2864 = vld [vmem:[%s2832 + $0x128] sm:$0xff]
        %s2865 = scalar_lea.vmem %s3, 64
        %v2866 = vld [vmem:[%s2865] sm:$0xff]
        %v2867 = vld [vmem:[%s2865 + $0x8] sm:$0xf]
        %v2869 = vsel %vm1268, %v2833, 0
        %v2872 = vsel %vm1268, %v2834, 0
        %v2875 = vsel %vm1268, %v2835, 0
        %v2878 = vsel %vm1268, %v2836, 0
        %v2881 = vsel %vm1268, %v2837, 0
        %v2884 = vsel %vm1268, %v2838, 0
        %v2887 = vsel %vm1268, %v2839, 0
        %v2890 = vsel %vm1268, %v2840, 0
        %v2893 = vsel %vm1268, %v2841, 0
        %v2896 = vsel %vm1268, %v2842, 0
        %v2899 = vsel %vm1268, %v2843, 0
        %v2902 = vsel %vm1268, %v2844, 0
        %v2905 = vsel %vm1268, %v2845, 0
        %v2908 = vsel %vm1268, %v2846, 0
        %v2911 = vsel %vm1268, %v2847, 0
        %v2914 = vsel %vm1268, %v2848, 0
        %v2917 = vsel %vm1268, %v2849, 0
        %v2920 = vsel %vm1268, %v2850, 0
        %v2923 = vsel %vm1268, %v2851, 0
        %v2926 = vsel %vm1268, %v2852, 0
        %v2929 = vsel %vm1268, %v2853, 0
        %v2932 = vsel %vm1268, %v2854, 0
        %v2935 = vsel %vm1268, %v2855, 0
        %v2938 = vsel %vm1268, %v2856, 0
        %v2941 = vsel %vm1268, %v2857, 0
        %v2944 = vsel %vm1268, %v2858, 0
        %v2947 = vsel %vm1268, %v2859, 0
        %v2950 = vsel %vm1268, %v2860, 0
        %v2953 = vsel %vm1268, %v2861, 0
        %v2956 = vsel %vm1268, %v2862, 0
        %v2959 = vsel %vm1268, %v2863, 0
        %v2962 = vsel %vm1268, %v2864, 0
        %v2965 = vsel %vm1495, %v2867, 0
        %2967 = vmatprep.subr.mxu0 0.0
        %2968 = vmatpush1.msra.mxu0 %v2866
        %2969 = vmatprep.subr.mxu0 0.0
        %2970 = vmatpush1.msra.mxu0 %v2965
        %2971 = vmatprep.subr.mxu0 0.0
        %2972 = vmatpush1.msra.mxu0 0.0
        %2973 = vmatprep.subr.mxu0 0.0
        %2974 = vmatpush1.msra.mxu0 0.0
        %2975 = vmatprep.subr.mxu0 0.0
        %2976 = vmatpush1.msra.mxu0 0.0
        %2977 = vmatprep.subr.mxu0 0.0
        %2978 = vmatpush1.msra.mxu0 0.0
        %2979 = vmatprep.subr.mxu0 0.0
        %2980 = vmatpush1.msra.mxu0 0.0
        %2981 = vmatprep.subr.mxu0 0.0
        %2982 = vmatpush1.msra.mxu0 0.0
        %2983 = vmatprep.subr.mxu0 0.0
        %2984 = vmatpush1.msra.mxu0 0.0
        %2985 = vmatprep.subr.mxu0 0.0
        %2986 = vmatpush1.msra.mxu0 0.0
        %2987 = vmatprep.subr.mxu0 0.0
        %2988 = vmatpush1.msra.mxu0 0.0
        %2989 = vmatprep.subr.mxu0 0.0
        %2990 = vmatpush1.msra.mxu0 0.0
        %2991 = vmatprep.subr.mxu0 0.0
        %2992 = vmatpush1.msra.mxu0 0.0
        %2993 = vmatprep.subr.mxu0 0.0
        %2994 = vmatpush1.msra.mxu0 0.0
        %2995 = vmatprep.subr.mxu0 0.0
        %2996 = vmatpush1.msra.mxu0 0.0
        %2997 = vmatprep.subr.mxu0 0.0
        %2998 = vmatpush1.msra.mxu0 0.0
        %2999 = vmatprep.subr.mxu0 0.0
        %3000 = vmatpush1.msra.mxu0 0.0
        %3001 = vmatprep.subr.mxu0 0.0
        %3002 = vmatpush1.msra.mxu0 0.0
        %3003 = vmatprep.subr.mxu0 0.0
        %3004 = vmatpush1.msra.mxu0 0.0
        %3005 = vmatprep.subr.mxu0 0.0
        %3006 = vmatpush1.msra.mxu0 0.0
        %3007 = vmatprep.subr.mxu0 0.0
        %3008 = vmatpush1.msra.mxu0 0.0
        %3009 = vmatprep.subr.mxu0 0.0
        %3010 = vmatpush1.msra.mxu0 0.0
        %3011 = vmatprep.subr.mxu0 0.0
        %3012 = vmatpush1.msra.mxu0 0.0
        %3013 = vmatprep.subr.mxu0 0.0
        %3014 = vmatpush1.msra.mxu0 0.0
        %3015 = vmatprep.subr.mxu0 0.0
        %3016 = vmatpush1.msra.mxu0 0.0
        %3017 = vmatprep.subr.mxu0 0.0
        %3018 = vmatpush1.msra.mxu0 0.0
        %3019 = vmatprep.subr.mxu0 0.0
        %3020 = vmatpush1.msra.mxu0 0.0
        %3021 = vmatprep.subr.mxu0 0.0
        %3022 = vmatpush1.msra.mxu0 0.0
        %3023 = vmatprep.subr.mxu0 0.0
        %3024 = vmatpush1.msra.mxu0 0.0
        %3025 = vmatprep.subr.mxu0 0.0
        %3026 = vmatpush1.msra.mxu0 0.0
        %3027 = vmatprep.subr.mxu0 0.0
        %3028 = vmatpush1.msra.mxu0 0.0
        %3029 = vmatprep.subr.mxu0 0.0
        %3030 = vmatpush1.msra.mxu0 0.0
        %3031 = vmatprep.mubr.f32.mxu0 0.0
        %3032 = vmatmul.mubr.f32.gmra.mrb[0].mxu0 %v2869
        %v3033 = vpop.f32.mrb[0].mxu0
        %v3034 = vadd.f32 0.0, %v3033
        %v3035 = vpop.f32.mrb[0].mxu0
        %3036 = vmatprep.mubr.f32.mxu0 0.0
        %3037 = vmatmul.mubr.f32.gmra.mrb[0].mxu0 %v2872
        %v3038 = vpop.f32.mrb[0].mxu0
        %v3039 = vadd.f32 0.0, %v3038
        %v3040 = vpop.f32.mrb[0].mxu0
        %3041 = vmatprep.mubr.f32.mxu0 0.0
        %3042 = vmatmul.mubr.f32.gmra.mrb[0].mxu0 %v2875
        %v3043 = vpop.f32.mrb[0].mxu0
        %v3044 = vadd.f32 0.0, %v3043
        %v3045 = vpop.f32.mrb[0].mxu0
        %3046 = vmatprep.mubr.f32.mxu0 0.0
        %3047 = vmatmul.mubr.f32.gmra.mrb[0].mxu0 %v2878
        %v3048 = vpop.f32.mrb[0].mxu0
        %v3049 = vadd.f32 0.0, %v3048
        %v3050 = vpop.f32.mrb[0].mxu0
        %3051 = vmatprep.mubr.f32.mxu0 0.0
        %3052 = vmatmul.mubr.f32.gmra.mrb[0].mxu0 %v2881
        %v3053 = vpop.f32.mrb[0].mxu0
        %v3054 = vadd.f32 0.0, %v3053
        %v3055 = vpop.f32.mrb[0].mxu0
        %3056 = vmatprep.mubr.f32.mxu0 0.0
        %3057 = vmatmul.mubr.f32.gmra.mrb[0].mxu0 %v2884
        %v3058 = vpop.f32.mrb[0].mxu0
        %v3059 = vadd.f32 0.0, %v3058
        %v3060 = vpop.f32.mrb[0].mxu0
        %3061 = vmatprep.mubr.f32.mxu0 0.0
        %3062 = vmatmul.mubr.f32.gmra.mrb[0].mxu0 %v2887
        %v3063 = vpop.f32.mrb[0].mxu0
        %v3064 = vadd.f32 0.0, %v3063
        %v3065 = vpop.f32.mrb[0].mxu0
        %3066 = vmatprep.mubr.f32.mxu0 0.0
        %3067 = vmatmul.mubr.f32.gmra.mrb[0].mxu0 %v2890
        %v3068 = vpop.f32.mrb[0].mxu0
        %v3069 = vadd.f32 0.0, %v3068
        %v3070 = vpop.f32.mrb[0].mxu0
        %3071 = vmatprep.mubr.f32.mxu0 0.0
        %3072 = vmatmul.mubr.f32.gmra.mrb[0].mxu0 %v2893
        %v3073 = vpop.f32.mrb[0].mxu0
        %v3074 = vadd.f32 0.0, %v3073
        %v3075 = vpop.f32.mrb[0].mxu0
        %3076 = vmatprep.mubr.f32.mxu0 0.0
        %3077 = vmatmul.mubr.f32.gmra.mrb[0].mxu0 %v2896
        %v3078 = vpop.f32.mrb[0].mxu0
        %v3079 = vadd.f32 0.0, %v3078
        %v3080 = vpop.f32.mrb[0].mxu0
        %3081 = vmatprep.mubr.f32.mxu0 0.0
        %3082 = vmatmul.mubr.f32.gmra.mrb[0].mxu0 %v2899
        %v3083 = vpop.f32.mrb[0].mxu0
        %v3084 = vadd.f32 0.0, %v3083
        %v3085 = vpop.f32.mrb[0].mxu0
        %3086 = vmatprep.mubr.f32.mxu0 0.0
        %3087 = vmatmul.mubr.f32.gmra.mrb[0].mxu0 %v2902
        %v3088 = vpop.f32.mrb[0].mxu0
        %v3089 = vadd.f32 0.0, %v3088
        %v3090 = vpop.f32.mrb[0].mxu0
        %3091 = vmatprep.mubr.f32.mxu0 0.0
        %3092 = vmatmul.mubr.f32.gmra.mrb[0].mxu0 %v2905
        %v3093 = vpop.f32.mrb[0].mxu0
        %v3094 = vadd.f32 0.0, %v3093
        %v3095 = vpop.f32.mrb[0].mxu0
        %3096 = vmatprep.mubr.f32.mxu0 0.0
        %3097 = vmatmul.mubr.f32.gmra.mrb[0].mxu0 %v2908
        %v3098 = vpop.f32.mrb[0].mxu0
        %v3099 = vadd.f32 0.0, %v3098
        %v3100 = vpop.f32.mrb[0].mxu0
        %3101 = vmatprep.mubr.f32.mxu0 0.0
        %3102 = vmatmul.mubr.f32.gmra.mrb[0].mxu0 %v2911
        %v3103 = vpop.f32.mrb[0].mxu0
        %v3104 = vadd.f32 0.0, %v3103
        %v3105 = vpop.f32.mrb[0].mxu0
        %3106 = vmatprep.mubr.f32.mxu0 0.0
        %3107 = vmatmul.mubr.f32.gmra.mrb[0].mxu0 %v2914
        %v3108 = vpop.f32.mrb[0].mxu0
        %v3109 = vadd.f32 0.0, %v3108
        %v3110 = vpop.f32.mrb[0].mxu0
        %3111 = vmatprep.mubr.f32.mxu0 0.0
        %3112 = vmatmul.mubr.f32.gmra.mrb[0].mxu0 %v2917
        %v3113 = vpop.f32.mrb[0].mxu0
        %v3114 = vadd.f32 0.0, %v3113
        %v3115 = vpop.f32.mrb[0].mxu0
        %3116 = vmatprep.mubr.f32.mxu0 0.0
        %3117 = vmatmul.mubr.f32.gmra.mrb[0].mxu0 %v2920
        %v3118 = vpop.f32.mrb[0].mxu0
        %v3119 = vadd.f32 0.0, %v3118
        %v3120 = vpop.f32.mrb[0].mxu0
        %3121 = vmatprep.mubr.f32.mxu0 0.0
        %3122 = vmatmul.mubr.f32.gmra.mrb[0].mxu0 %v2923
        %v3123 = vpop.f32.mrb[0].mxu0
        %v3124 = vadd.f32 0.0, %v3123
        %v3125 = vpop.f32.mrb[0].mxu0
        %3126 = vmatprep.mubr.f32.mxu0 0.0
        %3127 = vmatmul.mubr.f32.gmra.mrb[0].mxu0 %v2926
        %v3128 = vpop.f32.mrb[0].mxu0
        %v3129 = vadd.f32 0.0, %v3128
        %v3130 = vpop.f32.mrb[0].mxu0
        %3131 = vmatprep.mubr.f32.mxu0 0.0
        %3132 = vmatmul.mubr.f32.gmra.mrb[0].mxu0 %v2929
        %v3133 = vpop.f32.mrb[0].mxu0
        %v3134 = vadd.f32 0.0, %v3133
        %v3135 = vpop.f32.mrb[0].mxu0
        %3136 = vmatprep.mubr.f32.mxu0 0.0
        %3137 = vmatmul.mubr.f32.gmra.mrb[0].mxu0 %v2932
        %v3138 = vpop.f32.mrb[0].mxu0
        %v3139 = vadd.f32 0.0, %v3138
        %v3140 = vpop.f32.mrb[0].mxu0
        %3141 = vmatprep.mubr.f32.mxu0 0.0
        %3142 = vmatmul.mubr.f32.gmra.mrb[0].mxu0 %v2935
        %v3143 = vpop.f32.mrb[0].mxu0
        %v3144 = vadd.f32 0.0, %v3143
        %v3145 = vpop.f32.mrb[0].mxu0
        %3146 = vmatprep.mubr.f32.mxu0 0.0
        %3147 = vmatmul.mubr.f32.gmra.mrb[0].mxu0 %v2938
        %v3148 = vpop.f32.mrb[0].mxu0
        %v3149 = vadd.f32 0.0, %v3148
        %v3150 = vpop.f32.mrb[0].mxu0
        %3151 = vmatprep.mubr.f32.mxu0 0.0
        %3152 = vmatmul.mubr.f32.gmra.mrb[0].mxu0 %v2941
        %v3153 = vpop.f32.mrb[0].mxu0
        %v3154 = vadd.f32 0.0, %v3153
        %v3155 = vpop.f32.mrb[0].mxu0
        %3156 = vmatprep.mubr.f32.mxu0 0.0
        %3157 = vmatmul.mubr.f32.gmra.mrb[0].mxu0 %v2944
        %v3158 = vpop.f32.mrb[0].mxu0
        %v3159 = vadd.f32 0.0, %v3158
        %v3160 = vpop.f32.mrb[0].mxu0
        %3161 = vmatprep.mubr.f32.mxu0 0.0
        %3162 = vmatmul.mubr.f32.gmra.mrb[0].mxu0 %v2947
        %v3163 = vpop.f32.mrb[0].mxu0
        %v3164 = vadd.f32 0.0, %v3163
        %v3165 = vpop.f32.mrb[0].mxu0
        %3166 = vmatprep.mubr.f32.mxu0 0.0
        %3167 = vmatmul.mubr.f32.gmra.mrb[0].mxu0 %v2950
        %v3168 = vpop.f32.mrb[0].mxu0
        %v3169 = vadd.f32 0.0, %v3168
        %v3170 = vpop.f32.mrb[0].mxu0
        %3171 = vmatprep.mubr.f32.mxu0 0.0
        %3172 = vmatmul.mubr.f32.gmra.mrb[0].mxu0 %v2953
        %v3173 = vpop.f32.mrb[0].mxu0
        %v3174 = vadd.f32 0.0, %v3173
        %v3175 = vpop.f32.mrb[0].mxu0
        %3176 = vmatprep.mubr.f32.mxu0 0.0
        %3177 = vmatmul.mubr.f32.gmra.mrb[0].mxu0 %v2956
        %v3178 = vpop.f32.mrb[0].mxu0
        %v3179 = vadd.f32 0.0, %v3178
        %v3180 = vpop.f32.mrb[0].mxu0
        %3181 = vmatprep.mubr.f32.mxu0 0.0
        %3182 = vmatmul.mubr.f32.gmra.mrb[0].mxu0 %v2959
        %v3183 = vpop.f32.mrb[0].mxu0
        %v3184 = vadd.f32 0.0, %v3183
        %v3185 = vpop.f32.mrb[0].mxu0
        %3186 = vmatprep.mubr.f32.mxu0 0.0
        %3187 = vmatmul.mubr.f32.gmra.mrb[0].mxu0 %v2962
        %v3188 = vpop.f32.mrb[0].mxu0
        %v3189 = vadd.f32 0.0, %v3188
        %v3190 = vpop.f32.mrb[0].mxu0
        %3191 = vdwg.mxu0
        %v3192 = vadd.f32 %v2800, %v3034
        %v3193 = vadd.f32 %v2801, %v3039
        %v3194 = vadd.f32 %v2802, %v3044
        %v3195 = vadd.f32 %v2803, %v3049
        %v3196 = vadd.f32 %v2804, %v3054
        %v3197 = vadd.f32 %v2805, %v3059
        %v3198 = vadd.f32 %v2806, %v3064
        %v3199 = vadd.f32 %v2807, %v3069
        %v3200 = vadd.f32 %v2808, %v3074
        %v3201 = vadd.f32 %v2809, %v3079
        %v3202 = vadd.f32 %v2810, %v3084
        %v3203 = vadd.f32 %v2811, %v3089
        %v3204 = vadd.f32 %v2812, %v3094
        %v3205 = vadd.f32 %v2813, %v3099
        %v3206 = vadd.f32 %v2814, %v3104
        %v3207 = vadd.f32 %v2815, %v3109
        %v3208 = vadd.f32 %v2816, %v3114
        %v3209 = vadd.f32 %v2817, %v3119
        %v3210 = vadd.f32 %v2818, %v3124
        %v3211 = vadd.f32 %v2819, %v3129
        %v3212 = vadd.f32 %v2820, %v3134
        %v3213 = vadd.f32 %v2821, %v3139
        %v3214 = vadd.f32 %v2822, %v3144
        %v3215 = vadd.f32 %v2823, %v3149
        %v3216 = vadd.f32 %v2824, %v3154
        %v3217 = vadd.f32 %v2825, %v3159
        %v3218 = vadd.f32 %v2826, %v3164
        %v3219 = vadd.f32 %v2827, %v3169
        %v3220 = vadd.f32 %v2828, %v3174
        %v3221 = vadd.f32 %v2829, %v3179
        %v3222 = vadd.f32 %v2830, %v3184
        %v3223 = vadd.f32 %v2831, %v3189
        %s3224 = scalar_lea.vmem [#allocation2], 96
        %v3225 = vld [vmem:[%s3224] sm:$0xff]
        %v3226 = vld [vmem:[%s3224 + $0x8] sm:$0xff]
        %v3227 = vld [vmem:[%s3224 + $0x10] sm:$0xff]
        %v3228 = vld [vmem:[%s3224 + $0x18] sm:$0xff]
        %v3229 = vld [vmem:[%s3224 + $0x20] sm:$0xff]
        %v3230 = vld [vmem:[%s3224 + $0x28] sm:$0xff]
        %v3231 = vld [vmem:[%s3224 + $0x30] sm:$0xff]
        %v3232 = vld [vmem:[%s3224 + $0x38] sm:$0xff]
        %v3233 = vld [vmem:[%s3224 + $0x50] sm:$0xff]
        %v3234 = vld [vmem:[%s3224 + $0x58] sm:$0xff]
        %v3235 = vld [vmem:[%s3224 + $0x60] sm:$0xff]
        %v3236 = vld [vmem:[%s3224 + $0x68] sm:$0xff]
        %v3237 = vld [vmem:[%s3224 + $0x70] sm:$0xff]
        %v3238 = vld [vmem:[%s3224 + $0x78] sm:$0xff]
        %v3239 = vld [vmem:[%s3224 + $0x80] sm:$0xff]
        %v3240 = vld [vmem:[%s3224 + $0x88] sm:$0xff]
        %v3241 = vld [vmem:[%s3224 + $0xa0] sm:$0xff]
        %v3242 = vld [vmem:[%s3224 + $0xa8] sm:$0xff]
        %v3243 = vld [vmem:[%s3224 + $0xb0] sm:$0xff]
        %v3244 = vld [vmem:[%s3224 + $0xb8] sm:$0xff]
        %v3245 = vld [vmem:[%s3224 + $0xc0] sm:$0xff]
        %v3246 = vld [vmem:[%s3224 + $0xc8] sm:$0xff]
        %v3247 = vld [vmem:[%s3224 + $0xd0] sm:$0xff]
        %v3248 = vld [vmem:[%s3224 + $0xd8] sm:$0xff]
        %v3249 = vld [vmem:[%s3224 + $0xf0] sm:$0xff]
        %v3250 = vld [vmem:[%s3224 + $0xf8] sm:$0xff]
        %v3251 = vld [vmem:[%s3224 + $0x100] sm:$0xff]
        %v3252 = vld [vmem:[%s3224 + $0x108] sm:$0xff]
        %v3253 = vld [vmem:[%s3224 + $0x110] sm:$0xff]
        %v3254 = vld [vmem:[%s3224 + $0x118] sm:$0xff]
        %v3255 = vld [vmem:[%s3224 + $0x120] sm:$0xff]
        %v3256 = vld [vmem:[%s3224 + $0x128] sm:$0xff]
        %s3257 = scalar_lea.vmem %s3, 80
        %v3258 = vld [vmem:[%s3257] sm:$0xff]
        %v3259 = vld [vmem:[%s3257 + $0x8] sm:$0xf]
        %v3261 = vsel %vm1268, %v3225, 0
        %v3264 = vsel %vm1268, %v3226, 0
        %v3267 = vsel %vm1268, %v3227, 0
        %v3270 = vsel %vm1268, %v3228, 0
        %v3273 = vsel %vm1268, %v3229, 0
        %v3276 = vsel %vm1268, %v3230, 0
        %v3279 = vsel %vm1268, %v3231, 0
        %v3282 = vsel %vm1268, %v3232, 0
        %v3285 = vsel %vm1268, %v3233, 0
        %v3288 = vsel %vm1268, %v3234, 0
        %v3291 = vsel %vm1268, %v3235, 0
        %v3294 = vsel %vm1268, %v3236, 0
        %v3297 = vsel %vm1268, %v3237, 0
        %v3300 = vsel %vm1268, %v3238, 0
        %v3303 = vsel %vm1268, %v3239, 0
        %v3306 = vsel %vm1268, %v3240, 0
        %v3309 = vsel %vm1268, %v3241, 0
        %v3312 = vsel %vm1268, %v3242, 0
        %v3315 = vsel %vm1268, %v3243, 0
        %v3318 = vsel %vm1268, %v3244, 0
        %v3321 = vsel %vm1268, %v3245, 0
        %v3324 = vsel %vm1268, %v3246, 0
        %v3327 = vsel %vm1268, %v3247, 0
        %v3330 = vsel %vm1268, %v3248, 0
        %v3333 = vsel %vm1268, %v3249, 0
        %v3336 = vsel %vm1268, %v3250, 0
        %v3339 = vsel %vm1268, %v3251, 0
        %v3342 = vsel %vm1268, %v3252, 0
        %v3345 = vsel %vm1268, %v3253, 0
        %v3348 = vsel %vm1268, %v3254, 0
        %v3351 = vsel %vm1268, %v3255, 0
        %v3354 = vsel %vm1268, %v3256, 0
        %v3357 = vsel %vm1495, %v3259, 0
        %3359 = vmatprep.subr.mxu0 0.0
        %3360 = vmatpush1.msra.mxu0 %v3258
        %3361 = vmatprep.subr.mxu0 0.0
        %3362 = vmatpush1.msra.mxu0 %v3357
        %3363 = vmatprep.subr.mxu0 0.0
        %3364 = vmatpush1.msra.mxu0 0.0
        %3365 = vmatprep.subr.mxu0 0.0
        %3366 = vmatpush1.msra.mxu0 0.0
        %3367 = vmatprep.subr.mxu0 0.0
        %3368 = vmatpush1.msra.mxu0 0.0
        %3369 = vmatprep.subr.mxu0 0.0
        %3370 = vmatpush1.msra.mxu0 0.0
        %3371 = vmatprep.subr.mxu0 0.0
        %3372 = vmatpush1.msra.mxu0 0.0
        %3373 = vmatprep.subr.mxu0 0.0
        %3374 = vmatpush1.msra.mxu0 0.0
        %3375 = vmatprep.subr.mxu0 0.0
        %3376 = vmatpush1.msra.mxu0 0.0
        %3377 = vmatprep.subr.mxu0 0.0
        %3378 = vmatpush1.msra.mxu0 0.0
        %3379 = vmatprep.subr.mxu0 0.0
        %3380 = vmatpush1.msra.mxu0 0.0
        %3381 = vmatprep.subr.mxu0 0.0
        %3382 = vmatpush1.msra.mxu0 0.0
        %3383 = vmatprep.subr.mxu0 0.0
        %3384 = vmatpush1.msra.mxu0 0.0
        %3385 = vmatprep.subr.mxu0 0.0
        %3386 = vmatpush1.msra.mxu0 0.0
        %3387 = vmatprep.subr.mxu0 0.0
        %3388 = vmatpush1.msra.mxu0 0.0
        %3389 = vmatprep.subr.mxu0 0.0
        %3390 = vmatpush1.msra.mxu0 0.0
        %3391 = vmatprep.subr.mxu0 0.0
        %3392 = vmatpush1.msra.mxu0 0.0
        %3393 = vmatprep.subr.mxu0 0.0
        %3394 = vmatpush1.msra.mxu0 0.0
        %3395 = vmatprep.subr.mxu0 0.0
        %3396 = vmatpush1.msra.mxu0 0.0
        %3397 = vmatprep.subr.mxu0 0.0
        %3398 = vmatpush1.msra.mxu0 0.0
        %3399 = vmatprep.subr.mxu0 0.0
        %3400 = vmatpush1.msra.mxu0 0.0
        %3401 = vmatprep.subr.mxu0 0.0
        %3402 = vmatpush1.msra.mxu0 0.0
        %3403 = vmatprep.subr.mxu0 0.0
        %3404 = vmatpush1.msra.mxu0 0.0
        %3405 = vmatprep.subr.mxu0 0.0
        %3406 = vmatpush1.msra.mxu0 0.0
        %3407 = vmatprep.subr.mxu0 0.0
        %3408 = vmatpush1.msra.mxu0 0.0
        %3409 = vmatprep.subr.mxu0 0.0
        %3410 = vmatpush1.msra.mxu0 0.0
        %3411 = vmatprep.subr.mxu0 0.0
        %3412 = vmatpush1.msra.mxu0 0.0
        %3413 = vmatprep.subr.mxu0 0.0
        %3414 = vmatpush1.msra.mxu0 0.0
        %3415 = vmatprep.subr.mxu0 0.0
        %3416 = vmatpush1.msra.mxu0 0.0
        %3417 = vmatprep.subr.mxu0 0.0
        %3418 = vmatpush1.msra.mxu0 0.0
        %3419 = vmatprep.subr.mxu0 0.0
        %3420 = vmatpush1.msra.mxu0 0.0
        %3421 = vmatprep.subr.mxu0 0.0
        %3422 = vmatpush1.msra.mxu0 0.0
        %3423 = vmatprep.mubr.f32.mxu0 0.0
        %3424 = vmatmul.mubr.f32.gmra.mrb[0].mxu0 %v3261
        %v3425 = vpop.f32.mrb[0].mxu0
        %v3426 = vadd.f32 0.0, %v3425
        %v3427 = vpop.f32.mrb[0].mxu0
        %3428 = vmatprep.mubr.f32.mxu0 0.0
        %3429 = vmatmul.mubr.f32.gmra.mrb[0].mxu0 %v3264
        %v3430 = vpop.f32.mrb[0].mxu0
        %v3431 = vadd.f32 0.0, %v3430
        %v3432 = vpop.f32.mrb[0].mxu0
        %3433 = vmatprep.mubr.f32.mxu0 0.0
        %3434 = vmatmul.mubr.f32.gmra.mrb[0].mxu0 %v3267
        %v3435 = vpop.f32.mrb[0].mxu0
        %v3436 = vadd.f32 0.0, %v3435
        %v3437 = vpop.f32.mrb[0].mxu0
        %3438 = vmatprep.mubr.f32.mxu0 0.0
        %3439 = vmatmul.mubr.f32.gmra.mrb[0].mxu0 %v3270
        %v3440 = vpop.f32.mrb[0].mxu0
        %v3441 = vadd.f32 0.0, %v3440
        %v3442 = vpop.f32.mrb[0].mxu0
        %3443 = vmatprep.mubr.f32.mxu0 0.0
        %3444 = vmatmul.mubr.f32.gmra.mrb[0].mxu0 %v3273
        %v3445 = vpop.f32.mrb[0].mxu0
        %v3446 = vadd.f32 0.0, %v3445
        %v3447 = vpop.f32.mrb[0].mxu0
        %3448 = vmatprep.mubr.f32.mxu0 0.0
        %3449 = vmatmul.mubr.f32.gmra.mrb[0].mxu0 %v3276
        %v3450 = vpop.f32.mrb[0].mxu0
        %v3451 = vadd.f32 0.0, %v3450
        %v3452 = vpop.f32.mrb[0].mxu0
        %3453 = vmatprep.mubr.f32.mxu0 0.0
        %3454 = vmatmul.mubr.f32.gmra.mrb[0].mxu0 %v3279
        %v3455 = vpop.f32.mrb[0].mxu0
        %v3456 = vadd.f32 0.0, %v3455
        %v3457 = vpop.f32.mrb[0].mxu0
        %3458 = vmatprep.mubr.f32.mxu0 0.0
        %3459 = vmatmul.mubr.f32.gmra.mrb[0].mxu0 %v3282
        %v3460 = vpop.f32.mrb[0].mxu0
        %v3461 = vadd.f32 0.0, %v3460
        %v3462 = vpop.f32.mrb[0].mxu0
        %3463 = vmatprep.mubr.f32.mxu0 0.0
        %3464 = vmatmul.mubr.f32.gmra.mrb[0].mxu0 %v3285
        %v3465 = vpop.f32.mrb[0].mxu0
        %v3466 = vadd.f32 0.0, %v3465
        %v3467 = vpop.f32.mrb[0].mxu0
        %3468 = vmatprep.mubr.f32.mxu0 0.0
        %3469 = vmatmul.mubr.f32.gmra.mrb[0].mxu0 %v3288
        %v3470 = vpop.f32.mrb[0].mxu0
        %v3471 = vadd.f32 0.0, %v3470
        %v3472 = vpop.f32.mrb[0].mxu0
        %3473 = vmatprep.mubr.f32.mxu0 0.0
        %3474 = vmatmul.mubr.f32.gmra.mrb[0].mxu0 %v3291
        %v3475 = vpop.f32.mrb[0].mxu0
        %v3476 = vadd.f32 0.0, %v3475
        %v3477 = vpop.f32.mrb[0].mxu0
        %3478 = vmatprep.mubr.f32.mxu0 0.0
        %3479 = vmatmul.mubr.f32.gmra.mrb[0].mxu0 %v3294
        %v3480 = vpop.f32.mrb[0].mxu0
        %v3481 = vadd.f32 0.0, %v3480
        %v3482 = vpop.f32.mrb[0].mxu0
        %3483 = vmatprep.mubr.f32.mxu0 0.0
        %3484 = vmatmul.mubr.f32.gmra.mrb[0].mxu0 %v3297
        %v3485 = vpop.f32.mrb[0].mxu0
        %v3486 = vadd.f32 0.0, %v3485
        %v3487 = vpop.f32.mrb[0].mxu0
        %3488 = vmatprep.mubr.f32.mxu0 0.0
        %3489 = vmatmul.mubr.f32.gmra.mrb[0].mxu0 %v3300
        %v3490 = vpop.f32.mrb[0].mxu0
        %v3491 = vadd.f32 0.0, %v3490
        %v3492 = vpop.f32.mrb[0].mxu0
        %3493 = vmatprep.mubr.f32.mxu0 0.0
        %3494 = vmatmul.mubr.f32.gmra.mrb[0].mxu0 %v3303
        %v3495 = vpop.f32.mrb[0].mxu0
        %v3496 = vadd.f32 0.0, %v3495
        %v3497 = vpop.f32.mrb[0].mxu0
        %3498 = vmatprep.mubr.f32.mxu0 0.0
        %3499 = vmatmul.mubr.f32.gmra.mrb[0].mxu0 %v3306
        %v3500 = vpop.f32.mrb[0].mxu0
        %v3501 = vadd.f32 0.0, %v3500
        %v3502 = vpop.f32.mrb[0].mxu0
        %3503 = vmatprep.mubr.f32.mxu0 0.0
        %3504 = vmatmul.mubr.f32.gmra.mrb[0].mxu0 %v3309
        %v3505 = vpop.f32.mrb[0].mxu0
        %v3506 = vadd.f32 0.0, %v3505
        %v3507 = vpop.f32.mrb[0].mxu0
        %3508 = vmatprep.mubr.f32.mxu0 0.0
        %3509 = vmatmul.mubr.f32.gmra.mrb[0].mxu0 %v3312
        %v3510 = vpop.f32.mrb[0].mxu0
        %v3511 = vadd.f32 0.0, %v3510
        %v3512 = vpop.f32.mrb[0].mxu0
        %3513 = vmatprep.mubr.f32.mxu0 0.0
        %3514 = vmatmul.mubr.f32.gmra.mrb[0].mxu0 %v3315
        %v3515 = vpop.f32.mrb[0].mxu0
        %v3516 = vadd.f32 0.0, %v3515
        %v3517 = vpop.f32.mrb[0].mxu0
        %3518 = vmatprep.mubr.f32.mxu0 0.0
        %3519 = vmatmul.mubr.f32.gmra.mrb[0].mxu0 %v3318
        %v3520 = vpop.f32.mrb[0].mxu0
        %v3521 = vadd.f32 0.0, %v3520
        %v3522 = vpop.f32.mrb[0].mxu0
        %3523 = vmatprep.mubr.f32.mxu0 0.0
        %3524 = vmatmul.mubr.f32.gmra.mrb[0].mxu0 %v3321
        %v3525 = vpop.f32.mrb[0].mxu0
        %v3526 = vadd.f32 0.0, %v3525
        %v3527 = vpop.f32.mrb[0].mxu0
        %3528 = vmatprep.mubr.f32.mxu0 0.0
        %3529 = vmatmul.mubr.f32.gmra.mrb[0].mxu0 %v3324
        %v3530 = vpop.f32.mrb[0].mxu0
        %v3531 = vadd.f32 0.0, %v3530
        %v3532 = vpop.f32.mrb[0].mxu0
        %3533 = vmatprep.mubr.f32.mxu0 0.0
        %3534 = vmatmul.mubr.f32.gmra.mrb[0].mxu0 %v3327
        %v3535 = vpop.f32.mrb[0].mxu0
        %v3536 = vadd.f32 0.0, %v3535
        %v3537 = vpop.f32.mrb[0].mxu0
        %3538 = vmatprep.mubr.f32.mxu0 0.0
        %3539 = vmatmul.mubr.f32.gmra.mrb[0].mxu0 %v3330
        %v3540 = vpop.f32.mrb[0].mxu0
        %v3541 = vadd.f32 0.0, %v3540
        %v3542 = vpop.f32.mrb[0].mxu0
        %3543 = vmatprep.mubr.f32.mxu0 0.0
        %3544 = vmatmul.mubr.f32.gmra.mrb[0].mxu0 %v3333
        %v3545 = vpop.f32.mrb[0].mxu0
        %v3546 = vadd.f32 0.0, %v3545
        %v3547 = vpop.f32.mrb[0].mxu0
        %3548 = vmatprep.mubr.f32.mxu0 0.0
        %3549 = vmatmul.mubr.f32.gmra.mrb[0].mxu0 %v3336
        %v3550 = vpop.f32.mrb[0].mxu0
        %v3551 = vadd.f32 0.0, %v3550
        %v3552 = vpop.f32.mrb[0].mxu0
        %3553 = vmatprep.mubr.f32.mxu0 0.0
        %3554 = vmatmul.mubr.f32.gmra.mrb[0].mxu0 %v3339
        %v3555 = vpop.f32.mrb[0].mxu0
        %v3556 = vadd.f32 0.0, %v3555
        %v3557 = vpop.f32.mrb[0].mxu0
        %3558 = vmatprep.mubr.f32.mxu0 0.0
        %3559 = vmatmul.mubr.f32.gmra.mrb[0].mxu0 %v3342
        %v3560 = vpop.f32.mrb[0].mxu0
        %v3561 = vadd.f32 0.0, %v3560
        %v3562 = vpop.f32.mrb[0].mxu0
        %3563 = vmatprep.mubr.f32.mxu0 0.0
        %3564 = vmatmul.mubr.f32.gmra.mrb[0].mxu0 %v3345
        %v3565 = vpop.f32.mrb[0].mxu0
        %v3566 = vadd.f32 0.0, %v3565
        %v3567 = vpop.f32.mrb[0].mxu0
        %3568 = vmatprep.mubr.f32.mxu0 0.0
        %3569 = vmatmul.mubr.f32.gmra.mrb[0].mxu0 %v3348
        %v3570 = vpop.f32.mrb[0].mxu0
        %v3571 = vadd.f32 0.0, %v3570
        %v3572 = vpop.f32.mrb[0].mxu0
        %3573 = vmatprep.mubr.f32.mxu0 0.0
        %3574 = vmatmul.mubr.f32.gmra.mrb[0].mxu0 %v3351
        %v3575 = vpop.f32.mrb[0].mxu0
        %v3576 = vadd.f32 0.0, %v3575
        %v3577 = vpop.f32.mrb[0].mxu0
        %3578 = vmatprep.mubr.f32.mxu0 0.0
        %3579 = vmatmul.mubr.f32.gmra.mrb[0].mxu0 %v3354
        %v3580 = vpop.f32.mrb[0].mxu0
        %v3581 = vadd.f32 0.0, %v3580
        %v3582 = vpop.f32.mrb[0].mxu0
        %3583 = vdwg.mxu0
        %v3584 = vadd.f32 %v3192, %v3426
        %v3585 = vadd.f32 %v3193, %v3431
        %v3586 = vadd.f32 %v3194, %v3436
        %v3587 = vadd.f32 %v3195, %v3441
        %v3588 = vadd.f32 %v3196, %v3446
        %v3589 = vadd.f32 %v3197, %v3451
        %v3590 = vadd.f32 %v3198, %v3456
        %v3591 = vadd.f32 %v3199, %v3461
        %v3592 = vadd.f32 %v3200, %v3466
        %v3593 = vadd.f32 %v3201, %v3471
        %v3594 = vadd.f32 %v3202, %v3476
        %v3595 = vadd.f32 %v3203, %v3481
        %v3596 = vadd.f32 %v3204, %v3486
        %v3597 = vadd.f32 %v3205, %v3491
        %v3598 = vadd.f32 %v3206, %v3496
        %v3599 = vadd.f32 %v3207, %v3501
        %v3600 = vadd.f32 %v3208, %v3506
        %v3601 = vadd.f32 %v3209, %v3511
        %v3602 = vadd.f32 %v3210, %v3516
        %v3603 = vadd.f32 %v3211, %v3521
        %v3604 = vadd.f32 %v3212, %v3526
        %v3605 = vadd.f32 %v3213, %v3531
        %v3606 = vadd.f32 %v3214, %v3536
        %v3607 = vadd.f32 %v3215, %v3541
        %v3608 = vadd.f32 %v3216, %v3546
        %v3609 = vadd.f32 %v3217, %v3551
        %v3610 = vadd.f32 %v3218, %v3556
        %v3611 = vadd.f32 %v3219, %v3561
        %v3612 = vadd.f32 %v3220, %v3566
        %v3613 = vadd.f32 %v3221, %v3571
        %v3614 = vadd.f32 %v3222, %v3576
        %v3615 = vadd.f32 %v3223, %v3581
        %s3616 = scalar_lea.vmem [#allocation2], 160
        %v3617 = vld [vmem:[%s3616] sm:$0xff]
        %v3618 = vld [vmem:[%s3616 + $0x8] sm:$0xff]
        %v3619 = vld [vmem:[%s3616 + $0x10] sm:$0xff]
        %v3620 = vld [vmem:[%s3616 + $0x18] sm:$0xff]
        %v3621 = vld [vmem:[%s3616 + $0x20] sm:$0xff]
        %v3622 = vld [vmem:[%s3616 + $0x28] sm:$0xff]
        %v3623 = vld [vmem:[%s3616 + $0x30] sm:$0xff]
        %v3624 = vld [vmem:[%s3616 + $0x38] sm:$0xff]
        %v3625 = vld [vmem:[%s3616 + $0x50] sm:$0xff]
        %v3626 = vld [vmem:[%s3616 + $0x58] sm:$0xff]
        %v3627 = vld [vmem:[%s3616 + $0x60] sm:$0xff]
        %v3628 = vld [vmem:[%s3616 + $0x68] sm:$0xff]
        %v3629 = vld [vmem:[%s3616 + $0x70] sm:$0xff]
        %v3630 = vld [vmem:[%s3616 + $0x78] sm:$0xff]
        %v3631 = vld [vmem:[%s3616 + $0x80] sm:$0xff]
        %v3632 = vld [vmem:[%s3616 + $0x88] sm:$0xff]
        %v3633 = vld [vmem:[%s3616 + $0xa0] sm:$0xff]
        %v3634 = vld [vmem:[%s3616 + $0xa8] sm:$0xff]
        %v3635 = vld [vmem:[%s3616 + $0xb0] sm:$0xff]
        %v3636 = vld [vmem:[%s3616 + $0xb8] sm:$0xff]
        %v3637 = vld [vmem:[%s3616 + $0xc0] sm:$0xff]
        %v3638 = vld [vmem:[%s3616 + $0xc8] sm:$0xff]
        %v3639 = vld [vmem:[%s3616 + $0xd0] sm:$0xff]
        %v3640 = vld [vmem:[%s3616 + $0xd8] sm:$0xff]
        %v3641 = vld [vmem:[%s3616 + $0xf0] sm:$0xff]
        %v3642 = vld [vmem:[%s3616 + $0xf8] sm:$0xff]
        %v3643 = vld [vmem:[%s3616 + $0x100] sm:$0xff]
        %v3644 = vld [vmem:[%s3616 + $0x108] sm:$0xff]
        %v3645 = vld [vmem:[%s3616 + $0x110] sm:$0xff]
        %v3646 = vld [vmem:[%s3616 + $0x118] sm:$0xff]
        %v3647 = vld [vmem:[%s3616 + $0x120] sm:$0xff]
        %v3648 = vld [vmem:[%s3616 + $0x128] sm:$0xff]
        %s3649 = scalar_lea.vmem %s3, 96
        %v3650 = vld [vmem:[%s3649] sm:$0xff]
        %v3651 = vld [vmem:[%s3649 + $0x8] sm:$0xf]
        %v3653 = vsel %vm1268, %v3617, 0
        %v3656 = vsel %vm1268, %v3618, 0
        %v3659 = vsel %vm1268, %v3619, 0
        %v3662 = vsel %vm1268, %v3620, 0
        %v3665 = vsel %vm1268, %v3621, 0
        %v3668 = vsel %vm1268, %v3622, 0
        %v3671 = vsel %vm1268, %v3623, 0
        %v3674 = vsel %vm1268, %v3624, 0
        %v3677 = vsel %vm1268, %v3625, 0
        %v3680 = vsel %vm1268, %v3626, 0
        %v3683 = vsel %vm1268, %v3627, 0
        %v3686 = vsel %vm1268, %v3628, 0
        %v3689 = vsel %vm1268, %v3629, 0
        %v3692 = vsel %vm1268, %v3630, 0
        %v3695 = vsel %vm1268, %v3631, 0
        %v3698 = vsel %vm1268, %v3632, 0
        %v3701 = vsel %vm1268, %v3633, 0
        %v3704 = vsel %vm1268, %v3634, 0
        %v3707 = vsel %vm1268, %v3635, 0
        %v3710 = vsel %vm1268, %v3636, 0
        %v3713 = vsel %vm1268, %v3637, 0
        %v3716 = vsel %vm1268, %v3638, 0
        %v3719 = vsel %vm1268, %v3639, 0
        %v3722 = vsel %vm1268, %v3640, 0
        %v3725 = vsel %vm1268, %v3641, 0
        %v3728 = vsel %vm1268, %v3642, 0
        %v3731 = vsel %vm1268, %v3643, 0
        %v3734 = vsel %vm1268, %v3644, 0
        %v3737 = vsel %vm1268, %v3645, 0
        %v3740 = vsel %vm1268, %v3646, 0
        %v3743 = vsel %vm1268, %v3647, 0
        %v3746 = vsel %vm1268, %v3648, 0
        %v3749 = vsel %vm1495, %v3651, 0
        %3751 = vmatprep.subr.mxu0 0.0
        %3752 = vmatpush1.msra.mxu0 %v3650
        %3753 = vmatprep.subr.mxu0 0.0
        %3754 = vmatpush1.msra.mxu0 %v3749
        %3755 = vmatprep.subr.mxu0 0.0
        %3756 = vmatpush1.msra.mxu0 0.0
        %3757 = vmatprep.subr.mxu0 0.0
        %3758 = vmatpush1.msra.mxu0 0.0
        %3759 = vmatprep.subr.mxu0 0.0
        %3760 = vmatpush1.msra.mxu0 0.0
        %3761 = vmatprep.subr.mxu0 0.0
        %3762 = vmatpush1.msra.mxu0 0.0
        %3763 = vmatprep.subr.mxu0 0.0
        %3764 = vmatpush1.msra.mxu0 0.0
        %3765 = vmatprep.subr.mxu0 0.0
        %3766 = vmatpush1.msra.mxu0 0.0
        %3767 = vmatprep.subr.mxu0 0.0
        %3768 = vmatpush1.msra.mxu0 0.0
        %3769 = vmatprep.subr.mxu0 0.0
        %3770 = vmatpush1.msra.mxu0 0.0
        %3771 = vmatprep.subr.mxu0 0.0
        %3772 = vmatpush1.msra.mxu0 0.0
        %3773 = vmatprep.subr.mxu0 0.0
        %3774 = vmatpush1.msra.mxu0 0.0
        %3775 = vmatprep.subr.mxu0 0.0
        %3776 = vmatpush1.msra.mxu0 0.0
        %3777 = vmatprep.subr.mxu0 0.0
        %3778 = vmatpush1.msra.mxu0 0.0
        %3779 = vmatprep.subr.mxu0 0.0
        %3780 = vmatpush1.msra.mxu0 0.0
        %3781 = vmatprep.subr.mxu0 0.0
        %3782 = vmatpush1.msra.mxu0 0.0
        %3783 = vmatprep.subr.mxu0 0.0
        %3784 = vmatpush1.msra.mxu0 0.0
        %3785 = vmatprep.subr.mxu0 0.0
        %3786 = vmatpush1.msra.mxu0 0.0
        %3787 = vmatprep.subr.mxu0 0.0
        %3788 = vmatpush1.msra.mxu0 0.0
        %3789 = vmatprep.subr.mxu0 0.0
        %3790 = vmatpush1.msra.mxu0 0.0
        %3791 = vmatprep.subr.mxu0 0.0
        %3792 = vmatpush1.msra.mxu0 0.0
        %3793 = vmatprep.subr.mxu0 0.0
        %3794 = vmatpush1.msra.mxu0 0.0
        %3795 = vmatprep.subr.mxu0 0.0
        %3796 = vmatpush1.msra.mxu0 0.0
        %3797 = vmatprep.subr.mxu0 0.0
        %3798 = vmatpush1.msra.mxu0 0.0
        %3799 = vmatprep.subr.mxu0 0.0
        %3800 = vmatpush1.msra.mxu0 0.0
        %3801 = vmatprep.subr.mxu0 0.0
        %3802 = vmatpush1.msra.mxu0 0.0
        %3803 = vmatprep.subr.mxu0 0.0
        %3804 = vmatpush1.msra.mxu0 0.0
        %3805 = vmatprep.subr.mxu0 0.0
        %3806 = vmatpush1.msra.mxu0 0.0
        %3807 = vmatprep.subr.mxu0 0.0
        %3808 = vmatpush1.msra.mxu0 0.0
        %3809 = vmatprep.subr.mxu0 0.0
        %3810 = vmatpush1.msra.mxu0 0.0
        %3811 = vmatprep.subr.mxu0 0.0
        %3812 = vmatpush1.msra.mxu0 0.0
        %3813 = vmatprep.subr.mxu0 0.0
        %3814 = vmatpush1.msra.mxu0 0.0
        %3815 = vmatprep.mubr.f32.mxu0 0.0
        %3816 = vmatmul.mubr.f32.gmra.mrb[0].mxu0 %v3653
        %v3817 = vpop.f32.mrb[0].mxu0
        %v3818 = vadd.f32 0.0, %v3817
        %v3819 = vpop.f32.mrb[0].mxu0
        %3820 = vmatprep.mubr.f32.mxu0 0.0
        %3821 = vmatmul.mubr.f32.gmra.mrb[0].mxu0 %v3656
        %v3822 = vpop.f32.mrb[0].mxu0
        %v3823 = vadd.f32 0.0, %v3822
        %v3824 = vpop.f32.mrb[0].mxu0
        %3825 = vmatprep.mubr.f32.mxu0 0.0
        %3826 = vmatmul.mubr.f32.gmra.mrb[0].mxu0 %v3659
        %v3827 = vpop.f32.mrb[0].mxu0
        %v3828 = vadd.f32 0.0, %v3827
        %v3829 = vpop.f32.mrb[0].mxu0
        %3830 = vmatprep.mubr.f32.mxu0 0.0
        %3831 = vmatmul.mubr.f32.gmra.mrb[0].mxu0 %v3662
        %v3832 = vpop.f32.mrb[0].mxu0
        %v3833 = vadd.f32 0.0, %v3832
        %v3834 = vpop.f32.mrb[0].mxu0
        %3835 = vmatprep.mubr.f32.mxu0 0.0
        %3836 = vmatmul.mubr.f32.gmra.mrb[0].mxu0 %v3665
        %v3837 = vpop.f32.mrb[0].mxu0
        %v3838 = vadd.f32 0.0, %v3837
        %v3839 = vpop.f32.mrb[0].mxu0
        %3840 = vmatprep.mubr.f32.mxu0 0.0
        %3841 = vmatmul.mubr.f32.gmra.mrb[0].mxu0 %v3668
        %v3842 = vpop.f32.mrb[0].mxu0
        %v3843 = vadd.f32 0.0, %v3842
        %v3844 = vpop.f32.mrb[0].mxu0
        %3845 = vmatprep.mubr.f32.mxu0 0.0
        %3846 = vmatmul.mubr.f32.gmra.mrb[0].mxu0 %v3671
        %v3847 = vpop.f32.mrb[0].mxu0
        %v3848 = vadd.f32 0.0, %v3847
        %v3849 = vpop.f32.mrb[0].mxu0
        %3850 = vmatprep.mubr.f32.mxu0 0.0
        %3851 = vmatmul.mubr.f32.gmra.mrb[0].mxu0 %v3674
        %v3852 = vpop.f32.mrb[0].mxu0
        %v3853 = vadd.f32 0.0, %v3852
        %v3854 = vpop.f32.mrb[0].mxu0
        %3855 = vmatprep.mubr.f32.mxu0 0.0
        %3856 = vmatmul.mubr.f32.gmra.mrb[0].mxu0 %v3677
        %v3857 = vpop.f32.mrb[0].mxu0
        %v3858 = vadd.f32 0.0, %v3857
        %v3859 = vpop.f32.mrb[0].mxu0
        %3860 = vmatprep.mubr.f32.mxu0 0.0
        %3861 = vmatmul.mubr.f32.gmra.mrb[0].mxu0 %v3680
        %v3862 = vpop.f32.mrb[0].mxu0
        %v3863 = vadd.f32 0.0, %v3862
        %v3864 = vpop.f32.mrb[0].mxu0
        %3865 = vmatprep.mubr.f32.mxu0 0.0
        %3866 = vmatmul.mubr.f32.gmra.mrb[0].mxu0 %v3683
        %v3867 = vpop.f32.mrb[0].mxu0
        %v3868 = vadd.f32 0.0, %v3867
        %v3869 = vpop.f32.mrb[0].mxu0
        %3870 = vmatprep.mubr.f32.mxu0 0.0
        %3871 = vmatmul.mubr.f32.gmra.mrb[0].mxu0 %v3686
        %v3872 = vpop.f32.mrb[0].mxu0
        %v3873 = vadd.f32 0.0, %v3872
        %v3874 = vpop.f32.mrb[0].mxu0
        %3875 = vmatprep.mubr.f32.mxu0 0.0
        %3876 = vmatmul.mubr.f32.gmra.mrb[0].mxu0 %v3689
        %v3877 = vpop.f32.mrb[0].mxu0
        %v3878 = vadd.f32 0.0, %v3877
        %v3879 = vpop.f32.mrb[0].mxu0
        %3880 = vmatprep.mubr.f32.mxu0 0.0
        %3881 = vmatmul.mubr.f32.gmra.mrb[0].mxu0 %v3692
        %v3882 = vpop.f32.mrb[0].mxu0
        %v3883 = vadd.f32 0.0, %v3882
        %v3884 = vpop.f32.mrb[0].mxu0
        %3885 = vmatprep.mubr.f32.mxu0 0.0
        %3886 = vmatmul.mubr.f32.gmra.mrb[0].mxu0 %v3695
        %v3887 = vpop.f32.mrb[0].mxu0
        %v3888 = vadd.f32 0.0, %v3887
        %v3889 = vpop.f32.mrb[0].mxu0
        %3890 = vmatprep.mubr.f32.mxu0 0.0
        %3891 = vmatmul.mubr.f32.gmra.mrb[0].mxu0 %v3698
        %v3892 = vpop.f32.mrb[0].mxu0
        %v3893 = vadd.f32 0.0, %v3892
        %v3894 = vpop.f32.mrb[0].mxu0
        %3895 = vmatprep.mubr.f32.mxu0 0.0
        %3896 = vmatmul.mubr.f32.gmra.mrb[0].mxu0 %v3701
        %v3897 = vpop.f32.mrb[0].mxu0
        %v3898 = vadd.f32 0.0, %v3897
        %v3899 = vpop.f32.mrb[0].mxu0
        %3900 = vmatprep.mubr.f32.mxu0 0.0
        %3901 = vmatmul.mubr.f32.gmra.mrb[0].mxu0 %v3704
        %v3902 = vpop.f32.mrb[0].mxu0
        %v3903 = vadd.f32 0.0, %v3902
        %v3904 = vpop.f32.mrb[0].mxu0
        %3905 = vmatprep.mubr.f32.mxu0 0.0
        %3906 = vmatmul.mubr.f32.gmra.mrb[0].mxu0 %v3707
        %v3907 = vpop.f32.mrb[0].mxu0
        %v3908 = vadd.f32 0.0, %v3907
        %v3909 = vpop.f32.mrb[0].mxu0
        %3910 = vmatprep.mubr.f32.mxu0 0.0
        %3911 = vmatmul.mubr.f32.gmra.mrb[0].mxu0 %v3710
        %v3912 = vpop.f32.mrb[0].mxu0
        %v3913 = vadd.f32 0.0, %v3912
        %v3914 = vpop.f32.mrb[0].mxu0
        %3915 = vmatprep.mubr.f32.mxu0 0.0
        %3916 = vmatmul.mubr.f32.gmra.mrb[0].mxu0 %v3713
        %v3917 = vpop.f32.mrb[0].mxu0
        %v3918 = vadd.f32 0.0, %v3917
        %v3919 = vpop.f32.mrb[0].mxu0
        %3920 = vmatprep.mubr.f32.mxu0 0.0
        %3921 = vmatmul.mubr.f32.gmra.mrb[0].mxu0 %v3716
        %v3922 = vpop.f32.mrb[0].mxu0
        %v3923 = vadd.f32 0.0, %v3922
        %v3924 = vpop.f32.mrb[0].mxu0
        %3925 = vmatprep.mubr.f32.mxu0 0.0
        %3926 = vmatmul.mubr.f32.gmra.mrb[0].mxu0 %v3719
        %v3927 = vpop.f32.mrb[0].mxu0
        %v3928 = vadd.f32 0.0, %v3927
        %v3929 = vpop.f32.mrb[0].mxu0
        %3930 = vmatprep.mubr.f32.mxu0 0.0
        %3931 = vmatmul.mubr.f32.gmra.mrb[0].mxu0 %v3722
        %v3932 = vpop.f32.mrb[0].mxu0
        %v3933 = vadd.f32 0.0, %v3932
        %v3934 = vpop.f32.mrb[0].mxu0
        %3935 = vmatprep.mubr.f32.mxu0 0.0
        %3936 = vmatmul.mubr.f32.gmra.mrb[0].mxu0 %v3725
        %v3937 = vpop.f32.mrb[0].mxu0
        %v3938 = vadd.f32 0.0, %v3937
        %v3939 = vpop.f32.mrb[0].mxu0
        %3940 = vmatprep.mubr.f32.mxu0 0.0
        %3941 = vmatmul.mubr.f32.gmra.mrb[0].mxu0 %v3728
        %v3942 = vpop.f32.mrb[0].mxu0
        %v3943 = vadd.f32 0.0, %v3942
        %v3944 = vpop.f32.mrb[0].mxu0
        %3945 = vmatprep.mubr.f32.mxu0 0.0
        %3946 = vmatmul.mubr.f32.gmra.mrb[0].mxu0 %v3731
        %v3947 = vpop.f32.mrb[0].mxu0
        %v3948 = vadd.f32 0.0, %v3947
        %v3949 = vpop.f32.mrb[0].mxu0
        %3950 = vmatprep.mubr.f32.mxu0 0.0
        %3951 = vmatmul.mubr.f32.gmra.mrb[0].mxu0 %v3734
        %v3952 = vpop.f32.mrb[0].mxu0
        %v3953 = vadd.f32 0.0, %v3952
        %v3954 = vpop.f32.mrb[0].mxu0
        %3955 = vmatprep.mubr.f32.mxu0 0.0
        %3956 = vmatmul.mubr.f32.gmra.mrb[0].mxu0 %v3737
        %v3957 = vpop.f32.mrb[0].mxu0
        %v3958 = vadd.f32 0.0, %v3957
        %v3959 = vpop.f32.mrb[0].mxu0
        %3960 = vmatprep.mubr.f32.mxu0 0.0
        %3961 = vmatmul.mubr.f32.gmra.mrb[0].mxu0 %v3740
        %v3962 = vpop.f32.mrb[0].mxu0
        %v3963 = vadd.f32 0.0, %v3962
        %v3964 = vpop.f32.mrb[0].mxu0
        %3965 = vmatprep.mubr.f32.mxu0 0.0
        %3966 = vmatmul.mubr.f32.gmra.mrb[0].mxu0 %v3743
        %v3967 = vpop.f32.mrb[0].mxu0
        %v3968 = vadd.f32 0.0, %v3967
        %v3969 = vpop.f32.mrb[0].mxu0
        %3970 = vmatprep.mubr.f32.mxu0 0.0
        %3971 = vmatmul.mubr.f32.gmra.mrb[0].mxu0 %v3746
        %v3972 = vpop.f32.mrb[0].mxu0
        %v3973 = vadd.f32 0.0, %v3972
        %v3974 = vpop.f32.mrb[0].mxu0
        %3975 = vdwg.mxu0
        %v3976 = vadd.f32 %v3584, %v3818
        %v3977 = vadd.f32 %v3585, %v3823
        %v3978 = vadd.f32 %v3586, %v3828
        %v3979 = vadd.f32 %v3587, %v3833
        %v3980 = vadd.f32 %v3588, %v3838
        %v3981 = vadd.f32 %v3589, %v3843
        %v3982 = vadd.f32 %v3590, %v3848
        %v3983 = vadd.f32 %v3591, %v3853
        %v3984 = vadd.f32 %v3592, %v3858
        %v3985 = vadd.f32 %v3593, %v3863
        %v3986 = vadd.f32 %v3594, %v3868
        %v3987 = vadd.f32 %v3595, %v3873
        %v3988 = vadd.f32 %v3596, %v3878
        %v3989 = vadd.f32 %v3597, %v3883
        %v3990 = vadd.f32 %v3598, %v3888
        %v3991 = vadd.f32 %v3599, %v3893
        %v3992 = vadd.f32 %v3600, %v3898
        %v3993 = vadd.f32 %v3601, %v3903
        %v3994 = vadd.f32 %v3602, %v3908
        %v3995 = vadd.f32 %v3603, %v3913
        %v3996 = vadd.f32 %v3604, %v3918
        %v3997 = vadd.f32 %v3605, %v3923
        %v3998 = vadd.f32 %v3606, %v3928
        %v3999 = vadd.f32 %v3607, %v3933
        %v4000 = vadd.f32 %v3608, %v3938
        %v4001 = vadd.f32 %v3609, %v3943
        %v4002 = vadd.f32 %v3610, %v3948
        %v4003 = vadd.f32 %v3611, %v3953
        %v4004 = vadd.f32 %v3612, %v3958
        %v4005 = vadd.f32 %v3613, %v3963
        %v4006 = vadd.f32 %v3614, %v3968
        %v4007 = vadd.f32 %v3615, %v3973
        %s4008 = scalar_lea.vmem [#allocation2], 168
        %v4009 = vld [vmem:[%s4008] sm:$0xff]
        %v4010 = vld [vmem:[%s4008 + $0x8] sm:$0xff]
        %v4011 = vld [vmem:[%s4008 + $0x10] sm:$0xff]
        %v4012 = vld [vmem:[%s4008 + $0x18] sm:$0xff]
        %v4013 = vld [vmem:[%s4008 + $0x20] sm:$0xff]
        %v4014 = vld [vmem:[%s4008 + $0x28] sm:$0xff]
        %v4015 = vld [vmem:[%s4008 + $0x30] sm:$0xff]
        %v4016 = vld [vmem:[%s4008 + $0x38] sm:$0xff]
        %v4017 = vld [vmem:[%s4008 + $0x50] sm:$0xff]
        %v4018 = vld [vmem:[%s4008 + $0x58] sm:$0xff]
        %v4019 = vld [vmem:[%s4008 + $0x60] sm:$0xff]
        %v4020 = vld [vmem:[%s4008 + $0x68] sm:$0xff]
        %v4021 = vld [vmem:[%s4008 + $0x70] sm:$0xff]
        %v4022 = vld [vmem:[%s4008 + $0x78] sm:$0xff]
        %v4023 = vld [vmem:[%s4008 + $0x80] sm:$0xff]
        %v4024 = vld [vmem:[%s4008 + $0x88] sm:$0xff]
        %v4025 = vld [vmem:[%s4008 + $0xa0] sm:$0xff]
        %v4026 = vld [vmem:[%s4008 + $0xa8] sm:$0xff]
        %v4027 = vld [vmem:[%s4008 + $0xb0] sm:$0xff]
        %v4028 = vld [vmem:[%s4008 + $0xb8] sm:$0xff]
        %v4029 = vld [vmem:[%s4008 + $0xc0] sm:$0xff]
        %v4030 = vld [vmem:[%s4008 + $0xc8] sm:$0xff]
        %v4031 = vld [vmem:[%s4008 + $0xd0] sm:$0xff]
        %v4032 = vld [vmem:[%s4008 + $0xd8] sm:$0xff]
        %v4033 = vld [vmem:[%s4008 + $0xf0] sm:$0xff]
        %v4034 = vld [vmem:[%s4008 + $0xf8] sm:$0xff]
        %v4035 = vld [vmem:[%s4008 + $0x100] sm:$0xff]
        %v4036 = vld [vmem:[%s4008 + $0x108] sm:$0xff]
        %v4037 = vld [vmem:[%s4008 + $0x110] sm:$0xff]
        %v4038 = vld [vmem:[%s4008 + $0x118] sm:$0xff]
        %v4039 = vld [vmem:[%s4008 + $0x120] sm:$0xff]
        %v4040 = vld [vmem:[%s4008 + $0x128] sm:$0xff]
        %s4041 = scalar_lea.vmem %s3, 112
        %v4042 = vld [vmem:[%s4041] sm:$0xff]
        %v4043 = vld [vmem:[%s4041 + $0x8] sm:$0xf]
        %v4045 = vsel %vm1268, %v4009, 0
        %v4048 = vsel %vm1268, %v4010, 0
        %v4051 = vsel %vm1268, %v4011, 0
        %v4054 = vsel %vm1268, %v4012, 0
        %v4057 = vsel %vm1268, %v4013, 0
        %v4060 = vsel %vm1268, %v4014, 0
        %v4063 = vsel %vm1268, %v4015, 0
        %v4066 = vsel %vm1268, %v4016, 0
        %v4069 = vsel %vm1268, %v4017, 0
        %v4072 = vsel %vm1268, %v4018, 0
        %v4075 = vsel %vm1268, %v4019, 0
        %v4078 = vsel %vm1268, %v4020, 0
        %v4081 = vsel %vm1268, %v4021, 0
        %v4084 = vsel %vm1268, %v4022, 0
        %v4087 = vsel %vm1268, %v4023, 0
        %v4090 = vsel %vm1268, %v4024, 0
        %v4093 = vsel %vm1268, %v4025, 0
        %v4096 = vsel %vm1268, %v4026, 0
        %v4099 = vsel %vm1268, %v4027, 0
        %v4102 = vsel %vm1268, %v4028, 0
        %v4105 = vsel %vm1268, %v4029, 0
        %v4108 = vsel %vm1268, %v4030, 0
        %v4111 = vsel %vm1268, %v4031, 0
        %v4114 = vsel %vm1268, %v4032, 0
        %v4117 = vsel %vm1268, %v4033, 0
        %v4120 = vsel %vm1268, %v4034, 0
        %v4123 = vsel %vm1268, %v4035, 0
        %v4126 = vsel %vm1268, %v4036, 0
        %v4129 = vsel %vm1268, %v4037, 0
        %v4132 = vsel %vm1268, %v4038, 0
        %v4135 = vsel %vm1268, %v4039, 0
        %v4138 = vsel %vm1268, %v4040, 0
        %v4141 = vsel %vm1495, %v4043, 0
        %4143 = vmatprep.subr.mxu0 0.0
        %4144 = vmatpush1.msra.mxu0 %v4042
        %4145 = vmatprep.subr.mxu0 0.0
        %4146 = vmatpush1.msra.mxu0 %v4141
        %4147 = vmatprep.subr.mxu0 0.0
        %4148 = vmatpush1.msra.mxu0 0.0
        %4149 = vmatprep.subr.mxu0 0.0
        %4150 = vmatpush1.msra.mxu0 0.0
        %4151 = vmatprep.subr.mxu0 0.0
        %4152 = vmatpush1.msra.mxu0 0.0
        %4153 = vmatprep.subr.mxu0 0.0
        %4154 = vmatpush1.msra.mxu0 0.0
        %4155 = vmatprep.subr.mxu0 0.0
        %4156 = vmatpush1.msra.mxu0 0.0
        %4157 = vmatprep.subr.mxu0 0.0
        %4158 = vmatpush1.msra.mxu0 0.0
        %4159 = vmatprep.subr.mxu0 0.0
        %4160 = vmatpush1.msra.mxu0 0.0
        %4161 = vmatprep.subr.mxu0 0.0
        %4162 = vmatpush1.msra.mxu0 0.0
        %4163 = vmatprep.subr.mxu0 0.0
        %4164 = vmatpush1.msra.mxu0 0.0
        %4165 = vmatprep.subr.mxu0 0.0
        %4166 = vmatpush1.msra.mxu0 0.0
        %4167 = vmatprep.subr.mxu0 0.0
        %4168 = vmatpush1.msra.mxu0 0.0
        %4169 = vmatprep.subr.mxu0 0.0
        %4170 = vmatpush1.msra.mxu0 0.0
        %4171 = vmatprep.subr.mxu0 0.0
        %4172 = vmatpush1.msra.mxu0 0.0
        %4173 = vmatprep.subr.mxu0 0.0
        %4174 = vmatpush1.msra.mxu0 0.0
        %4175 = vmatprep.subr.mxu0 0.0
        %4176 = vmatpush1.msra.mxu0 0.0
        %4177 = vmatprep.subr.mxu0 0.0
        %4178 = vmatpush1.msra.mxu0 0.0
        %4179 = vmatprep.subr.mxu0 0.0
        %4180 = vmatpush1.msra.mxu0 0.0
        %4181 = vmatprep.subr.mxu0 0.0
        %4182 = vmatpush1.msra.mxu0 0.0
        %4183 = vmatprep.subr.mxu0 0.0
        %4184 = vmatpush1.msra.mxu0 0.0
        %4185 = vmatprep.subr.mxu0 0.0
        %4186 = vmatpush1.msra.mxu0 0.0
        %4187 = vmatprep.subr.mxu0 0.0
        %4188 = vmatpush1.msra.mxu0 0.0
        %4189 = vmatprep.subr.mxu0 0.0
        %4190 = vmatpush1.msra.mxu0 0.0
        %4191 = vmatprep.subr.mxu0 0.0
        %4192 = vmatpush1.msra.mxu0 0.0
        %4193 = vmatprep.subr.mxu0 0.0
        %4194 = vmatpush1.msra.mxu0 0.0
        %4195 = vmatprep.subr.mxu0 0.0
        %4196 = vmatpush1.msra.mxu0 0.0
        %4197 = vmatprep.subr.mxu0 0.0
        %4198 = vmatpush1.msra.mxu0 0.0
        %4199 = vmatprep.subr.mxu0 0.0
        %4200 = vmatpush1.msra.mxu0 0.0
        %4201 = vmatprep.subr.mxu0 0.0
        %4202 = vmatpush1.msra.mxu0 0.0
        %4203 = vmatprep.subr.mxu0 0.0
        %4204 = vmatpush1.msra.mxu0 0.0
        %4205 = vmatprep.subr.mxu0 0.0
        %4206 = vmatpush1.msra.mxu0 0.0
        %4207 = vmatprep.mubr.f32.mxu0 0.0
        %4208 = vmatmul.mubr.f32.gmra.mrb[0].mxu0 %v4045
        %v4209 = vpop.f32.mrb[0].mxu0
        %v4210 = vadd.f32 0.0, %v4209
        %v4211 = vpop.f32.mrb[0].mxu0
        %4212 = vmatprep.mubr.f32.mxu0 0.0
        %4213 = vmatmul.mubr.f32.gmra.mrb[0].mxu0 %v4048
        %v4214 = vpop.f32.mrb[0].mxu0
        %v4215 = vadd.f32 0.0, %v4214
        %v4216 = vpop.f32.mrb[0].mxu0
        %4217 = vmatprep.mubr.f32.mxu0 0.0
        %4218 = vmatmul.mubr.f32.gmra.mrb[0].mxu0 %v4051
        %v4219 = vpop.f32.mrb[0].mxu0
        %v4220 = vadd.f32 0.0, %v4219
        %v4221 = vpop.f32.mrb[0].mxu0
        %4222 = vmatprep.mubr.f32.mxu0 0.0
        %4223 = vmatmul.mubr.f32.gmra.mrb[0].mxu0 %v4054
        %v4224 = vpop.f32.mrb[0].mxu0
        %v4225 = vadd.f32 0.0, %v4224
        %v4226 = vpop.f32.mrb[0].mxu0
        %4227 = vmatprep.mubr.f32.mxu0 0.0
        %4228 = vmatmul.mubr.f32.gmra.mrb[0].mxu0 %v4057
        %v4229 = vpop.f32.mrb[0].mxu0
        %v4230 = vadd.f32 0.0, %v4229
        %v4231 = vpop.f32.mrb[0].mxu0
        %4232 = vmatprep.mubr.f32.mxu0 0.0
        %4233 = vmatmul.mubr.f32.gmra.mrb[0].mxu0 %v4060
        %v4234 = vpop.f32.mrb[0].mxu0
        %v4235 = vadd.f32 0.0, %v4234
        %v4236 = vpop.f32.mrb[0].mxu0
        %4237 = vmatprep.mubr.f32.mxu0 0.0
        %4238 = vmatmul.mubr.f32.gmra.mrb[0].mxu0 %v4063
        %v4239 = vpop.f32.mrb[0].mxu0
        %v4240 = vadd.f32 0.0, %v4239
        %v4241 = vpop.f32.mrb[0].mxu0
        %4242 = vmatprep.mubr.f32.mxu0 0.0
        %4243 = vmatmul.mubr.f32.gmra.mrb[0].mxu0 %v4066
        %v4244 = vpop.f32.mrb[0].mxu0
        %v4245 = vadd.f32 0.0, %v4244
        %v4246 = vpop.f32.mrb[0].mxu0
        %4247 = vmatprep.mubr.f32.mxu0 0.0
        %4248 = vmatmul.mubr.f32.gmra.mrb[0].mxu0 %v4069
        %v4249 = vpop.f32.mrb[0].mxu0
        %v4250 = vadd.f32 0.0, %v4249
        %v4251 = vpop.f32.mrb[0].mxu0
        %4252 = vmatprep.mubr.f32.mxu0 0.0
        %4253 = vmatmul.mubr.f32.gmra.mrb[0].mxu0 %v4072
        %v4254 = vpop.f32.mrb[0].mxu0
        %v4255 = vadd.f32 0.0, %v4254
        %v4256 = vpop.f32.mrb[0].mxu0
        %4257 = vmatprep.mubr.f32.mxu0 0.0
        %4258 = vmatmul.mubr.f32.gmra.mrb[0].mxu0 %v4075
        %v4259 = vpop.f32.mrb[0].mxu0
        %v4260 = vadd.f32 0.0, %v4259
        %v4261 = vpop.f32.mrb[0].mxu0
        %4262 = vmatprep.mubr.f32.mxu0 0.0
        %4263 = vmatmul.mubr.f32.gmra.mrb[0].mxu0 %v4078
        %v4264 = vpop.f32.mrb[0].mxu0
        %v4265 = vadd.f32 0.0, %v4264
        %v4266 = vpop.f32.mrb[0].mxu0
        %4267 = vmatprep.mubr.f32.mxu0 0.0
        %4268 = vmatmul.mubr.f32.gmra.mrb[0].mxu0 %v4081
        %v4269 = vpop.f32.mrb[0].mxu0
        %v4270 = vadd.f32 0.0, %v4269
        %v4271 = vpop.f32.mrb[0].mxu0
        %4272 = vmatprep.mubr.f32.mxu0 0.0
        %4273 = vmatmul.mubr.f32.gmra.mrb[0].mxu0 %v4084
        %v4274 = vpop.f32.mrb[0].mxu0
        %v4275 = vadd.f32 0.0, %v4274
        %v4276 = vpop.f32.mrb[0].mxu0
        %4277 = vmatprep.mubr.f32.mxu0 0.0
        %4278 = vmatmul.mubr.f32.gmra.mrb[0].mxu0 %v4087
        %v4279 = vpop.f32.mrb[0].mxu0
        %v4280 = vadd.f32 0.0, %v4279
        %v4281 = vpop.f32.mrb[0].mxu0
        %4282 = vmatprep.mubr.f32.mxu0 0.0
        %4283 = vmatmul.mubr.f32.gmra.mrb[0].mxu0 %v4090
        %v4284 = vpop.f32.mrb[0].mxu0
        %v4285 = vadd.f32 0.0, %v4284
        %v4286 = vpop.f32.mrb[0].mxu0
        %4287 = vmatprep.mubr.f32.mxu0 0.0
        %4288 = vmatmul.mubr.f32.gmra.mrb[0].mxu0 %v4093
        %v4289 = vpop.f32.mrb[0].mxu0
        %v4290 = vadd.f32 0.0, %v4289
        %v4291 = vpop.f32.mrb[0].mxu0
        %4292 = vmatprep.mubr.f32.mxu0 0.0
        %4293 = vmatmul.mubr.f32.gmra.mrb[0].mxu0 %v4096
        %v4294 = vpop.f32.mrb[0].mxu0
        %v4295 = vadd.f32 0.0, %v4294
        %v4296 = vpop.f32.mrb[0].mxu0
        %4297 = vmatprep.mubr.f32.mxu0 0.0
        %4298 = vmatmul.mubr.f32.gmra.mrb[0].mxu0 %v4099
        %v4299 = vpop.f32.mrb[0].mxu0
        %v4300 = vadd.f32 0.0, %v4299
        %v4301 = vpop.f32.mrb[0].mxu0
        %4302 = vmatprep.mubr.f32.mxu0 0.0
        %4303 = vmatmul.mubr.f32.gmra.mrb[0].mxu0 %v4102
        %v4304 = vpop.f32.mrb[0].mxu0
        %v4305 = vadd.f32 0.0, %v4304
        %v4306 = vpop.f32.mrb[0].mxu0
        %4307 = vmatprep.mubr.f32.mxu0 0.0
        %4308 = vmatmul.mubr.f32.gmra.mrb[0].mxu0 %v4105
        %v4309 = vpop.f32.mrb[0].mxu0
        %v4310 = vadd.f32 0.0, %v4309
        %v4311 = vpop.f32.mrb[0].mxu0
        %4312 = vmatprep.mubr.f32.mxu0 0.0
        %4313 = vmatmul.mubr.f32.gmra.mrb[0].mxu0 %v4108
        %v4314 = vpop.f32.mrb[0].mxu0
        %v4315 = vadd.f32 0.0, %v4314
        %v4316 = vpop.f32.mrb[0].mxu0
        %4317 = vmatprep.mubr.f32.mxu0 0.0
        %4318 = vmatmul.mubr.f32.gmra.mrb[0].mxu0 %v4111
        %v4319 = vpop.f32.mrb[0].mxu0
        %v4320 = vadd.f32 0.0, %v4319
        %v4321 = vpop.f32.mrb[0].mxu0
        %4322 = vmatprep.mubr.f32.mxu0 0.0
        %4323 = vmatmul.mubr.f32.gmra.mrb[0].mxu0 %v4114
        %v4324 = vpop.f32.mrb[0].mxu0
        %v4325 = vadd.f32 0.0, %v4324
        %v4326 = vpop.f32.mrb[0].mxu0
        %4327 = vmatprep.mubr.f32.mxu0 0.0
        %4328 = vmatmul.mubr.f32.gmra.mrb[0].mxu0 %v4117
        %v4329 = vpop.f32.mrb[0].mxu0
        %v4330 = vadd.f32 0.0, %v4329
        %v4331 = vpop.f32.mrb[0].mxu0
        %4332 = vmatprep.mubr.f32.mxu0 0.0
        %4333 = vmatmul.mubr.f32.gmra.mrb[0].mxu0 %v4120
        %v4334 = vpop.f32.mrb[0].mxu0
        %v4335 = vadd.f32 0.0, %v4334
        %v4336 = vpop.f32.mrb[0].mxu0
        %4337 = vmatprep.mubr.f32.mxu0 0.0
        %4338 = vmatmul.mubr.f32.gmra.mrb[0].mxu0 %v4123
        %v4339 = vpop.f32.mrb[0].mxu0
        %v4340 = vadd.f32 0.0, %v4339
        %v4341 = vpop.f32.mrb[0].mxu0
        %4342 = vmatprep.mubr.f32.mxu0 0.0
        %4343 = vmatmul.mubr.f32.gmra.mrb[0].mxu0 %v4126
        %v4344 = vpop.f32.mrb[0].mxu0
        %v4345 = vadd.f32 0.0, %v4344
        %v4346 = vpop.f32.mrb[0].mxu0
        %4347 = vmatprep.mubr.f32.mxu0 0.0
        %4348 = vmatmul.mubr.f32.gmra.mrb[0].mxu0 %v4129
        %v4349 = vpop.f32.mrb[0].mxu0
        %v4350 = vadd.f32 0.0, %v4349
        %v4351 = vpop.f32.mrb[0].mxu0
        %4352 = vmatprep.mubr.f32.mxu0 0.0
        %4353 = vmatmul.mubr.f32.gmra.mrb[0].mxu0 %v4132
        %v4354 = vpop.f32.mrb[0].mxu0
        %v4355 = vadd.f32 0.0, %v4354
        %v4356 = vpop.f32.mrb[0].mxu0
        %4357 = vmatprep.mubr.f32.mxu0 0.0
        %4358 = vmatmul.mubr.f32.gmra.mrb[0].mxu0 %v4135
        %v4359 = vpop.f32.mrb[0].mxu0
        %v4360 = vadd.f32 0.0, %v4359
        %v4361 = vpop.f32.mrb[0].mxu0
        %4362 = vmatprep.mubr.f32.mxu0 0.0
        %4363 = vmatmul.mubr.f32.gmra.mrb[0].mxu0 %v4138
        %v4364 = vpop.f32.mrb[0].mxu0
        %v4365 = vadd.f32 0.0, %v4364
        %v4366 = vpop.f32.mrb[0].mxu0
        %4367 = vdwg.mxu0
        %v4368 = vadd.f32 %v3976, %v4210
        %v4369 = vadd.f32 %v3977, %v4215
        %v4370 = vadd.f32 %v3978, %v4220
        %v4371 = vadd.f32 %v3979, %v4225
        %v4372 = vadd.f32 %v3980, %v4230
        %v4373 = vadd.f32 %v3981, %v4235
        %v4374 = vadd.f32 %v3982, %v4240
        %v4375 = vadd.f32 %v3983, %v4245
        %v4376 = vadd.f32 %v3984, %v4250
        %v4377 = vadd.f32 %v3985, %v4255
        %v4378 = vadd.f32 %v3986, %v4260
        %v4379 = vadd.f32 %v3987, %v4265
        %v4380 = vadd.f32 %v3988, %v4270
        %v4381 = vadd.f32 %v3989, %v4275
        %v4382 = vadd.f32 %v3990, %v4280
        %v4383 = vadd.f32 %v3991, %v4285
        %v4384 = vadd.f32 %v3992, %v4290
        %v4385 = vadd.f32 %v3993, %v4295
        %v4386 = vadd.f32 %v3994, %v4300
        %v4387 = vadd.f32 %v3995, %v4305
        %v4388 = vadd.f32 %v3996, %v4310
        %v4389 = vadd.f32 %v3997, %v4315
        %v4390 = vadd.f32 %v3998, %v4320
        %v4391 = vadd.f32 %v3999, %v4325
        %v4392 = vadd.f32 %v4000, %v4330
        %v4393 = vadd.f32 %v4001, %v4335
        %v4394 = vadd.f32 %v4002, %v4340
        %v4395 = vadd.f32 %v4003, %v4345
        %v4396 = vadd.f32 %v4004, %v4350
        %v4397 = vadd.f32 %v4005, %v4355
        %v4398 = vadd.f32 %v4006, %v4360
        %v4399 = vadd.f32 %v4007, %v4365
        %s4400 = scalar_lea.vmem [#allocation2], 176
        %v4401 = vld [vmem:[%s4400] sm:$0xff]
        %v4402 = vld [vmem:[%s4400 + $0x8] sm:$0xff]
        %v4403 = vld [vmem:[%s4400 + $0x10] sm:$0xff]
        %v4404 = vld [vmem:[%s4400 + $0x18] sm:$0xff]
        %v4405 = vld [vmem:[%s4400 + $0x20] sm:$0xff]
        %v4406 = vld [vmem:[%s4400 + $0x28] sm:$0xff]
        %v4407 = vld [vmem:[%s4400 + $0x30] sm:$0xff]
        %v4408 = vld [vmem:[%s4400 + $0x38] sm:$0xff]
        %v4409 = vld [vmem:[%s4400 + $0x50] sm:$0xff]
        %v4410 = vld [vmem:[%s4400 + $0x58] sm:$0xff]
        %v4411 = vld [vmem:[%s4400 + $0x60] sm:$0xff]
        %v4412 = vld [vmem:[%s4400 + $0x68] sm:$0xff]
        %v4413 = vld [vmem:[%s4400 + $0x70] sm:$0xff]
        %v4414 = vld [vmem:[%s4400 + $0x78] sm:$0xff]
        %v4415 = vld [vmem:[%s4400 + $0x80] sm:$0xff]
        %v4416 = vld [vmem:[%s4400 + $0x88] sm:$0xff]
        %v4417 = vld [vmem:[%s4400 + $0xa0] sm:$0xff]
        %v4418 = vld [vmem:[%s4400 + $0xa8] sm:$0xff]
        %v4419 = vld [vmem:[%s4400 + $0xb0] sm:$0xff]
        %v4420 = vld [vmem:[%s4400 + $0xb8] sm:$0xff]
        %v4421 = vld [vmem:[%s4400 + $0xc0] sm:$0xff]
        %v4422 = vld [vmem:[%s4400 + $0xc8] sm:$0xff]
        %v4423 = vld [vmem:[%s4400 + $0xd0] sm:$0xff]
        %v4424 = vld [vmem:[%s4400 + $0xd8] sm:$0xff]
        %v4425 = vld [vmem:[%s4400 + $0xf0] sm:$0xff]
        %v4426 = vld [vmem:[%s4400 + $0xf8] sm:$0xff]
        %v4427 = vld [vmem:[%s4400 + $0x100] sm:$0xff]
        %v4428 = vld [vmem:[%s4400 + $0x108] sm:$0xff]
        %v4429 = vld [vmem:[%s4400 + $0x110] sm:$0xff]
        %v4430 = vld [vmem:[%s4400 + $0x118] sm:$0xff]
        %v4431 = vld [vmem:[%s4400 + $0x120] sm:$0xff]
        %v4432 = vld [vmem:[%s4400 + $0x128] sm:$0xff]
        %s4433 = scalar_lea.vmem %s3, 128
        %v4434 = vld [vmem:[%s4433] sm:$0xff]
        %v4435 = vld [vmem:[%s4433 + $0x8] sm:$0xf]
        %v4437 = vsel %vm1268, %v4401, 0
        %v4440 = vsel %vm1268, %v4402, 0
        %v4443 = vsel %vm1268, %v4403, 0
        %v4446 = vsel %vm1268, %v4404, 0
        %v4449 = vsel %vm1268, %v4405, 0
        %v4452 = vsel %vm1268, %v4406, 0
        %v4455 = vsel %vm1268, %v4407, 0
        %v4458 = vsel %vm1268, %v4408, 0
        %v4461 = vsel %vm1268, %v4409, 0
        %v4464 = vsel %vm1268, %v4410, 0
        %v4467 = vsel %vm1268, %v4411, 0
        %v4470 = vsel %vm1268, %v4412, 0
        %v4473 = vsel %vm1268, %v4413, 0
        %v4476 = vsel %vm1268, %v4414, 0
        %v4479 = vsel %vm1268, %v4415, 0
        %v4482 = vsel %vm1268, %v4416, 0
        %v4485 = vsel %vm1268, %v4417, 0
        %v4488 = vsel %vm1268, %v4418, 0
        %v4491 = vsel %vm1268, %v4419, 0
        %v4494 = vsel %vm1268, %v4420, 0
        %v4497 = vsel %vm1268, %v4421, 0
        %v4500 = vsel %vm1268, %v4422, 0
        %v4503 = vsel %vm1268, %v4423, 0
        %v4506 = vsel %vm1268, %v4424, 0
        %v4509 = vsel %vm1268, %v4425, 0
        %v4512 = vsel %vm1268, %v4426, 0
        %v4515 = vsel %vm1268, %v4427, 0
        %v4518 = vsel %vm1268, %v4428, 0
        %v4521 = vsel %vm1268, %v4429, 0
        %v4524 = vsel %vm1268, %v4430, 0
        %v4527 = vsel %vm1268, %v4431, 0
        %v4530 = vsel %vm1268, %v4432, 0
        %v4533 = vsel %vm1495, %v4435, 0
        %4535 = vmatprep.subr.mxu0 0.0
        %4536 = vmatpush1.msra.mxu0 %v4434
        %4537 = vmatprep.subr.mxu0 0.0
        %4538 = vmatpush1.msra.mxu0 %v4533
        %4539 = vmatprep.subr.mxu0 0.0
        %4540 = vmatpush1.msra.mxu0 0.0
        %4541 = vmatprep.subr.mxu0 0.0
        %4542 = vmatpush1.msra.mxu0 0.0
        %4543 = vmatprep.subr.mxu0 0.0
        %4544 = vmatpush1.msra.mxu0 0.0
        %4545 = vmatprep.subr.mxu0 0.0
        %4546 = vmatpush1.msra.mxu0 0.0
        %4547 = vmatprep.subr.mxu0 0.0
        %4548 = vmatpush1.msra.mxu0 0.0
        %4549 = vmatprep.subr.mxu0 0.0
        %4550 = vmatpush1.msra.mxu0 0.0
        %4551 = vmatprep.subr.mxu0 0.0
        %4552 = vmatpush1.msra.mxu0 0.0
        %4553 = vmatprep.subr.mxu0 0.0
        %4554 = vmatpush1.msra.mxu0 0.0
        %4555 = vmatprep.subr.mxu0 0.0
        %4556 = vmatpush1.msra.mxu0 0.0
        %4557 = vmatprep.subr.mxu0 0.0
        %4558 = vmatpush1.msra.mxu0 0.0
        %4559 = vmatprep.subr.mxu0 0.0
        %4560 = vmatpush1.msra.mxu0 0.0
        %4561 = vmatprep.subr.mxu0 0.0
        %4562 = vmatpush1.msra.mxu0 0.0
        %4563 = vmatprep.subr.mxu0 0.0
        %4564 = vmatpush1.msra.mxu0 0.0
        %4565 = vmatprep.subr.mxu0 0.0
        %4566 = vmatpush1.msra.mxu0 0.0
        %4567 = vmatprep.subr.mxu0 0.0
        %4568 = vmatpush1.msra.mxu0 0.0
        %4569 = vmatprep.subr.mxu0 0.0
        %4570 = vmatpush1.msra.mxu0 0.0
        %4571 = vmatprep.subr.mxu0 0.0
        %4572 = vmatpush1.msra.mxu0 0.0
        %4573 = vmatprep.subr.mxu0 0.0
        %4574 = vmatpush1.msra.mxu0 0.0
        %4575 = vmatprep.subr.mxu0 0.0
        %4576 = vmatpush1.msra.mxu0 0.0
        %4577 = vmatprep.subr.mxu0 0.0
        %4578 = vmatpush1.msra.mxu0 0.0
        %4579 = vmatprep.subr.mxu0 0.0
        %4580 = vmatpush1.msra.mxu0 0.0
        %4581 = vmatprep.subr.mxu0 0.0
        %4582 = vmatpush1.msra.mxu0 0.0
        %4583 = vmatprep.subr.mxu0 0.0
        %4584 = vmatpush1.msra.mxu0 0.0
        %4585 = vmatprep.subr.mxu0 0.0
        %4586 = vmatpush1.msra.mxu0 0.0
        %4587 = vmatprep.subr.mxu0 0.0
        %4588 = vmatpush1.msra.mxu0 0.0
        %4589 = vmatprep.subr.mxu0 0.0
        %4590 = vmatpush1.msra.mxu0 0.0
        %4591 = vmatprep.subr.mxu0 0.0
        %4592 = vmatpush1.msra.mxu0 0.0
        %4593 = vmatprep.subr.mxu0 0.0
        %4594 = vmatpush1.msra.mxu0 0.0
        %4595 = vmatprep.subr.mxu0 0.0
        %4596 = vmatpush1.msra.mxu0 0.0
        %4597 = vmatprep.subr.mxu0 0.0
        %4598 = vmatpush1.msra.mxu0 0.0
        %4599 = vmatprep.mubr.f32.mxu0 0.0
        %4600 = vmatmul.mubr.f32.gmra.mrb[0].mxu0 %v4437
        %v4601 = vpop.f32.mrb[0].mxu0
        %v4602 = vadd.f32 0.0, %v4601
        %v4603 = vpop.f32.mrb[0].mxu0
        %4604 = vmatprep.mubr.f32.mxu0 0.0
        %4605 = vmatmul.mubr.f32.gmra.mrb[0].mxu0 %v4440
        %v4606 = vpop.f32.mrb[0].mxu0
        %v4607 = vadd.f32 0.0, %v4606
        %v4608 = vpop.f32.mrb[0].mxu0
        %4609 = vmatprep.mubr.f32.mxu0 0.0
        %4610 = vmatmul.mubr.f32.gmra.mrb[0].mxu0 %v4443
        %v4611 = vpop.f32.mrb[0].mxu0
        %v4612 = vadd.f32 0.0, %v4611
        %v4613 = vpop.f32.mrb[0].mxu0
        %4614 = vmatprep.mubr.f32.mxu0 0.0
        %4615 = vmatmul.mubr.f32.gmra.mrb[0].mxu0 %v4446
        %v4616 = vpop.f32.mrb[0].mxu0
        %v4617 = vadd.f32 0.0, %v4616
        %v4618 = vpop.f32.mrb[0].mxu0
        %4619 = vmatprep.mubr.f32.mxu0 0.0
        %4620 = vmatmul.mubr.f32.gmra.mrb[0].mxu0 %v4449
        %v4621 = vpop.f32.mrb[0].mxu0
        %v4622 = vadd.f32 0.0, %v4621
        %v4623 = vpop.f32.mrb[0].mxu0
        %4624 = vmatprep.mubr.f32.mxu0 0.0
        %4625 = vmatmul.mubr.f32.gmra.mrb[0].mxu0 %v4452
        %v4626 = vpop.f32.mrb[0].mxu0
        %v4627 = vadd.f32 0.0, %v4626
        %v4628 = vpop.f32.mrb[0].mxu0
        %4629 = vmatprep.mubr.f32.mxu0 0.0
        %4630 = vmatmul.mubr.f32.gmra.mrb[0].mxu0 %v4455
        %v4631 = vpop.f32.mrb[0].mxu0
        %v4632 = vadd.f32 0.0, %v4631
        %v4633 = vpop.f32.mrb[0].mxu0
        %4634 = vmatprep.mubr.f32.mxu0 0.0
        %4635 = vmatmul.mubr.f32.gmra.mrb[0].mxu0 %v4458
        %v4636 = vpop.f32.mrb[0].mxu0
        %v4637 = vadd.f32 0.0, %v4636
        %v4638 = vpop.f32.mrb[0].mxu0
        %4639 = vmatprep.mubr.f32.mxu0 0.0
        %4640 = vmatmul.mubr.f32.gmra.mrb[0].mxu0 %v4461
        %v4641 = vpop.f32.mrb[0].mxu0
        %v4642 = vadd.f32 0.0, %v4641
        %v4643 = vpop.f32.mrb[0].mxu0
        %4644 = vmatprep.mubr.f32.mxu0 0.0
        %4645 = vmatmul.mubr.f32.gmra.mrb[0].mxu0 %v4464
        %v4646 = vpop.f32.mrb[0].mxu0
        %v4647 = vadd.f32 0.0, %v4646
        %v4648 = vpop.f32.mrb[0].mxu0
        %4649 = vmatprep.mubr.f32.mxu0 0.0
        %4650 = vmatmul.mubr.f32.gmra.mrb[0].mxu0 %v4467
        %v4651 = vpop.f32.mrb[0].mxu0
        %v4652 = vadd.f32 0.0, %v4651
        %v4653 = vpop.f32.mrb[0].mxu0
        %4654 = vmatprep.mubr.f32.mxu0 0.0
        %4655 = vmatmul.mubr.f32.gmra.mrb[0].mxu0 %v4470
        %v4656 = vpop.f32.mrb[0].mxu0
        %v4657 = vadd.f32 0.0, %v4656
        %v4658 = vpop.f32.mrb[0].mxu0
        %4659 = vmatprep.mubr.f32.mxu0 0.0
        %4660 = vmatmul.mubr.f32.gmra.mrb[0].mxu0 %v4473
        %v4661 = vpop.f32.mrb[0].mxu0
        %v4662 = vadd.f32 0.0, %v4661
        %v4663 = vpop.f32.mrb[0].mxu0
        %4664 = vmatprep.mubr.f32.mxu0 0.0
        %4665 = vmatmul.mubr.f32.gmra.mrb[0].mxu0 %v4476
        %v4666 = vpop.f32.mrb[0].mxu0
        %v4667 = vadd.f32 0.0, %v4666
        %v4668 = vpop.f32.mrb[0].mxu0
        %4669 = vmatprep.mubr.f32.mxu0 0.0
        %4670 = vmatmul.mubr.f32.gmra.mrb[0].mxu0 %v4479
        %v4671 = vpop.f32.mrb[0].mxu0
        %v4672 = vadd.f32 0.0, %v4671
        %v4673 = vpop.f32.mrb[0].mxu0
        %4674 = vmatprep.mubr.f32.mxu0 0.0
        %4675 = vmatmul.mubr.f32.gmra.mrb[0].mxu0 %v4482
        %v4676 = vpop.f32.mrb[0].mxu0
        %v4677 = vadd.f32 0.0, %v4676
        %v4678 = vpop.f32.mrb[0].mxu0
        %4679 = vmatprep.mubr.f32.mxu0 0.0
        %4680 = vmatmul.mubr.f32.gmra.mrb[0].mxu0 %v4485
        %v4681 = vpop.f32.mrb[0].mxu0
        %v4682 = vadd.f32 0.0, %v4681
        %v4683 = vpop.f32.mrb[0].mxu0
        %4684 = vmatprep.mubr.f32.mxu0 0.0
        %4685 = vmatmul.mubr.f32.gmra.mrb[0].mxu0 %v4488
        %v4686 = vpop.f32.mrb[0].mxu0
        %v4687 = vadd.f32 0.0, %v4686
        %v4688 = vpop.f32.mrb[0].mxu0
        %4689 = vmatprep.mubr.f32.mxu0 0.0
        %4690 = vmatmul.mubr.f32.gmra.mrb[0].mxu0 %v4491
        %v4691 = vpop.f32.mrb[0].mxu0
        %v4692 = vadd.f32 0.0, %v4691
        %v4693 = vpop.f32.mrb[0].mxu0
        %4694 = vmatprep.mubr.f32.mxu0 0.0
        %4695 = vmatmul.mubr.f32.gmra.mrb[0].mxu0 %v4494
        %v4696 = vpop.f32.mrb[0].mxu0
        %v4697 = vadd.f32 0.0, %v4696
        %v4698 = vpop.f32.mrb[0].mxu0
        %4699 = vmatprep.mubr.f32.mxu0 0.0
        %4700 = vmatmul.mubr.f32.gmra.mrb[0].mxu0 %v4497
        %v4701 = vpop.f32.mrb[0].mxu0
        %v4702 = vadd.f32 0.0, %v4701
        %v4703 = vpop.f32.mrb[0].mxu0
        %4704 = vmatprep.mubr.f32.mxu0 0.0
        %4705 = vmatmul.mubr.f32.gmra.mrb[0].mxu0 %v4500
        %v4706 = vpop.f32.mrb[0].mxu0
        %v4707 = vadd.f32 0.0, %v4706
        %v4708 = vpop.f32.mrb[0].mxu0
        %4709 = vmatprep.mubr.f32.mxu0 0.0
        %4710 = vmatmul.mubr.f32.gmra.mrb[0].mxu0 %v4503
        %v4711 = vpop.f32.mrb[0].mxu0
        %v4712 = vadd.f32 0.0, %v4711
        %v4713 = vpop.f32.mrb[0].mxu0
        %4714 = vmatprep.mubr.f32.mxu0 0.0
        %4715 = vmatmul.mubr.f32.gmra.mrb[0].mxu0 %v4506
        %v4716 = vpop.f32.mrb[0].mxu0
        %v4717 = vadd.f32 0.0, %v4716
        %v4718 = vpop.f32.mrb[0].mxu0
        %4719 = vmatprep.mubr.f32.mxu0 0.0
        %4720 = vmatmul.mubr.f32.gmra.mrb[0].mxu0 %v4509
        %v4721 = vpop.f32.mrb[0].mxu0
        %v4722 = vadd.f32 0.0, %v4721
        %v4723 = vpop.f32.mrb[0].mxu0
        %4724 = vmatprep.mubr.f32.mxu0 0.0
        %4725 = vmatmul.mubr.f32.gmra.mrb[0].mxu0 %v4512
        %v4726 = vpop.f32.mrb[0].mxu0
        %v4727 = vadd.f32 0.0, %v4726
        %v4728 = vpop.f32.mrb[0].mxu0
        %4729 = vmatprep.mubr.f32.mxu0 0.0
        %4730 = vmatmul.mubr.f32.gmra.mrb[0].mxu0 %v4515
        %v4731 = vpop.f32.mrb[0].mxu0
        %v4732 = vadd.f32 0.0, %v4731
        %v4733 = vpop.f32.mrb[0].mxu0
        %4734 = vmatprep.mubr.f32.mxu0 0.0
        %4735 = vmatmul.mubr.f32.gmra.mrb[0].mxu0 %v4518
        %v4736 = vpop.f32.mrb[0].mxu0
        %v4737 = vadd.f32 0.0, %v4736
        %v4738 = vpop.f32.mrb[0].mxu0
        %4739 = vmatprep.mubr.f32.mxu0 0.0
        %4740 = vmatmul.mubr.f32.gmra.mrb[0].mxu0 %v4521
        %v4741 = vpop.f32.mrb[0].mxu0
        %v4742 = vadd.f32 0.0, %v4741
        %v4743 = vpop.f32.mrb[0].mxu0
        %4744 = vmatprep.mubr.f32.mxu0 0.0
        %4745 = vmatmul.mubr.f32.gmra.mrb[0].mxu0 %v4524
        %v4746 = vpop.f32.mrb[0].mxu0
        %v4747 = vadd.f32 0.0, %v4746
        %v4748 = vpop.f32.mrb[0].mxu0
        %4749 = vmatprep.mubr.f32.mxu0 0.0
        %4750 = vmatmul.mubr.f32.gmra.mrb[0].mxu0 %v4527
        %v4751 = vpop.f32.mrb[0].mxu0
        %v4752 = vadd.f32 0.0, %v4751
        %v4753 = vpop.f32.mrb[0].mxu0
        %4754 = vmatprep.mubr.f32.mxu0 0.0
        %4755 = vmatmul.mubr.f32.gmra.mrb[0].mxu0 %v4530
        %v4756 = vpop.f32.mrb[0].mxu0
        %v4757 = vadd.f32 0.0, %v4756
        %v4758 = vpop.f32.mrb[0].mxu0
        %4759 = vdwg.mxu0
        %v4760 = vadd.f32 %v4368, %v4602
        %v4761 = vadd.f32 %v4369, %v4607
        %v4762 = vadd.f32 %v4370, %v4612
        %v4763 = vadd.f32 %v4371, %v4617
        %v4764 = vadd.f32 %v4372, %v4622
        %v4765 = vadd.f32 %v4373, %v4627
        %v4766 = vadd.f32 %v4374, %v4632
        %v4767 = vadd.f32 %v4375, %v4637
        %v4768 = vadd.f32 %v4376, %v4642
        %v4769 = vadd.f32 %v4377, %v4647
        %v4770 = vadd.f32 %v4378, %v4652
        %v4771 = vadd.f32 %v4379, %v4657
        %v4772 = vadd.f32 %v4380, %v4662
        %v4773 = vadd.f32 %v4381, %v4667
        %v4774 = vadd.f32 %v4382, %v4672
        %v4775 = vadd.f32 %v4383, %v4677
        %v4776 = vadd.f32 %v4384, %v4682
        %v4777 = vadd.f32 %v4385, %v4687
        %v4778 = vadd.f32 %v4386, %v4692
        %v4779 = vadd.f32 %v4387, %v4697
        %v4780 = vadd.f32 %v4388, %v4702
        %v4781 = vadd.f32 %v4389, %v4707
        %v4782 = vadd.f32 %v4390, %v4712
        %v4783 = vadd.f32 %v4391, %v4717
        %v4784 = vadd.f32 %v4392, %v4722
        %v4785 = vadd.f32 %v4393, %v4727
        %v4786 = vadd.f32 %v4394, %v4732
        %v4787 = vadd.f32 %v4395, %v4737
        %v4788 = vadd.f32 %v4396, %v4742
        %v4789 = vadd.f32 %v4397, %v4747
        %v4790 = vadd.f32 %v4398, %v4752
        %v4791 = vadd.f32 %v4399, %v4757
        %v4792 = vld [vmem:[%s4] sm:$0x1]
        %v4794 = vlaneseq
        %v4795 = vshrl.u32 %v4794, 7
        %v4796 = vsub.s32 0, %v4795
        %v4797 = vrot.slane %v4792, %v4796
        %v4799 = vmul.f32 %v4760, %v4797
        %v4800 = vmul.f32 %v4761, %v4797
        %v4801 = vmul.f32 %v4762, %v4797
        %v4802 = vmul.f32 %v4763, %v4797
        %v4803 = vmul.f32 %v4764, %v4797
        %v4804 = vmul.f32 %v4765, %v4797
        %v4805 = vmul.f32 %v4766, %v4797
        %v4806 = vmul.f32 %v4767, %v4797
        %v4807 = vmul.f32 %v4768, %v4797
        %v4808 = vmul.f32 %v4769, %v4797
        %v4809 = vmul.f32 %v4770, %v4797
        %v4810 = vmul.f32 %v4771, %v4797
        %v4811 = vmul.f32 %v4772, %v4797
        %v4812 = vmul.f32 %v4773, %v4797
        %v4813 = vmul.f32 %v4774, %v4797
        %v4814 = vmul.f32 %v4775, %v4797
        %v4815 = vmul.f32 %v4776, %v4797
        %v4816 = vmul.f32 %v4777, %v4797
        %v4817 = vmul.f32 %v4778, %v4797
        %v4818 = vmul.f32 %v4779, %v4797
        %v4819 = vmul.f32 %v4780, %v4797
        %v4820 = vmul.f32 %v4781, %v4797
        %v4821 = vmul.f32 %v4782, %v4797
        %v4822 = vmul.f32 %v4783, %v4797
        %v4823 = vmul.f32 %v4784, %v4797
        %v4824 = vmul.f32 %v4785, %v4797
        %v4825 = vmul.f32 %v4786, %v4797
        %v4826 = vmul.f32 %v4787, %v4797
        %v4827 = vmul.f32 %v4788, %v4797
        %v4828 = vmul.f32 %v4789, %v4797
        %v4829 = vmul.f32 %v4790, %v4797
        %v4830 = vmul.f32 %v4791, %v4797
        %v4831 = vld [vmem:[%s5] sm:$0x1]
        %v4833 = vlaneseq
        %v4834 = vshrl.u32 %v4833, 7
        %v4835 = vsub.s32 0, %v4834
        %v4836 = vrot.slane %v4831, %v4835
        %v4838 = vadd.f32 %v4799, %v4836
        %v4839 = vadd.f32 %v4800, %v4836
        %v4840 = vadd.f32 %v4801, %v4836
        %v4841 = vadd.f32 %v4802, %v4836
        %v4842 = vadd.f32 %v4803, %v4836
        %v4843 = vadd.f32 %v4804, %v4836
        %v4844 = vadd.f32 %v4805, %v4836
        %v4845 = vadd.f32 %v4806, %v4836
        %v4846 = vadd.f32 %v4807, %v4836
        %v4847 = vadd.f32 %v4808, %v4836
        %v4848 = vadd.f32 %v4809, %v4836
        %v4849 = vadd.f32 %v4810, %v4836
        %v4850 = vadd.f32 %v4811, %v4836
        %v4851 = vadd.f32 %v4812, %v4836
        %v4852 = vadd.f32 %v4813, %v4836
        %v4853 = vadd.f32 %v4814, %v4836
        %v4854 = vadd.f32 %v4815, %v4836
        %v4855 = vadd.f32 %v4816, %v4836
        %v4856 = vadd.f32 %v4817, %v4836
        %v4857 = vadd.f32 %v4818, %v4836
        %v4858 = vadd.f32 %v4819, %v4836
        %v4859 = vadd.f32 %v4820, %v4836
        %v4860 = vadd.f32 %v4821, %v4836
        %v4861 = vadd.f32 %v4822, %v4836
        %v4862 = vadd.f32 %v4823, %v4836
        %v4863 = vadd.f32 %v4824, %v4836
        %v4864 = vadd.f32 %v4825, %v4836
        %v4865 = vadd.f32 %v4826, %v4836
        %v4866 = vadd.f32 %v4827, %v4836
        %v4867 = vadd.f32 %v4828, %v4836
        %v4868 = vadd.f32 %v4829, %v4836
        %v4869 = vadd.f32 %v4830, %v4836
        %v4870 = vmax.f32 %v4838, 0.0
        %v4871 = vmax.f32 %v4839, 0.0
        %v4872 = vmax.f32 %v4840, 0.0
        %v4873 = vmax.f32 %v4841, 0.0
        %v4874 = vmax.f32 %v4842, 0.0
        %v4875 = vmax.f32 %v4843, 0.0
        %v4876 = vmax.f32 %v4844, 0.0
        %v4877 = vmax.f32 %v4845, 0.0
        %v4878 = vmax.f32 %v4846, 0.0
        %v4879 = vmax.f32 %v4847, 0.0
        %v4880 = vmax.f32 %v4848, 0.0
        %v4881 = vmax.f32 %v4849, 0.0
        %v4882 = vmax.f32 %v4850, 0.0
        %v4883 = vmax.f32 %v4851, 0.0
        %v4884 = vmax.f32 %v4852, 0.0
        %v4885 = vmax.f32 %v4853, 0.0
        %v4886 = vmax.f32 %v4854, 0.0
        %v4887 = vmax.f32 %v4855, 0.0
        %v4888 = vmax.f32 %v4856, 0.0
        %v4889 = vmax.f32 %v4857, 0.0
        %v4890 = vmax.f32 %v4858, 0.0
        %v4891 = vmax.f32 %v4859, 0.0
        %v4892 = vmax.f32 %v4860, 0.0
        %v4893 = vmax.f32 %v4861, 0.0
        %v4894 = vmax.f32 %v4862, 0.0
        %v4895 = vmax.f32 %v4863, 0.0
        %v4896 = vmax.f32 %v4864, 0.0
        %v4897 = vmax.f32 %v4865, 0.0
        %v4898 = vmax.f32 %v4866, 0.0
        %v4899 = vmax.f32 %v4867, 0.0
        %v4900 = vmax.f32 %v4868, 0.0
        %v4901 = vmax.f32 %v4869, 0.0
        %4902 = vst [vmem:[%s361] sm:$0xff] %v4870
        %4903 = vst [vmem:[%s361 + $0x8] sm:$0xff] %v4871
        %4904 = vst [vmem:[%s361 + $0x10] sm:$0xff] %v4872
        %4905 = vst [vmem:[%s361 + $0x18] sm:$0xff] %v4873
        %4906 = vst [vmem:[%s361 + $0x20] sm:$0xff] %v4874
        %4907 = vst [vmem:[%s361 + $0x28] sm:$0xff] %v4875
        %4908 = vst [vmem:[%s361 + $0x30] sm:$0xff] %v4876
        %4909 = vst [vmem:[%s361 + $0x38] sm:$0xff] %v4877
        %4910 = vst [vmem:[%s361 + $0x40] sm:$0xff] %v4878
        %4911 = vst [vmem:[%s361 + $0x48] sm:$0xff] %v4879
        %4912 = vst [vmem:[%s361 + $0x50] sm:$0xff] %v4880
        %4913 = vst [vmem:[%s361 + $0x58] sm:$0xff] %v4881
        %4914 = vst [vmem:[%s361 + $0x60] sm:$0xff] %v4882
        %4915 = vst [vmem:[%s361 + $0x68] sm:$0xff] %v4883
        %4916 = vst [vmem:[%s361 + $0x70] sm:$0xff] %v4884
        %4917 = vst [vmem:[%s361 + $0x78] sm:$0xff] %v4885
        %4918 = vst [vmem:[%s361 + $0x80] sm:$0xff] %v4886
        %4919 = vst [vmem:[%s361 + $0x88] sm:$0xff] %v4887
        %4920 = vst [vmem:[%s361 + $0x90] sm:$0xff] %v4888
        %4921 = vst [vmem:[%s361 + $0x98] sm:$0xff] %v4889
        %4922 = vst [vmem:[%s361 + $0xa0] sm:$0xff] %v4890
        %4923 = vst [vmem:[%s361 + $0xa8] sm:$0xff] %v4891
        %4924 = vst [vmem:[%s361 + $0xb0] sm:$0xff] %v4892
        %4925 = vst [vmem:[%s361 + $0xb8] sm:$0xff] %v4893
        %4926 = vst [vmem:[%s361 + $0xc0] sm:$0xff] %v4894
        %4927 = vst [vmem:[%s361 + $0xc8] sm:$0xff] %v4895
        %4928 = vst [vmem:[%s361 + $0xd0] sm:$0xff] %v4896
        %4929 = vst [vmem:[%s361 + $0xd8] sm:$0xff] %v4897
        %4930 = vst [vmem:[%s361 + $0xe0] sm:$0xff] %v4898
        %4931 = vst [vmem:[%s361 + $0xe8] sm:$0xff] %v4899
        %4932 = vst [vmem:[%s361 + $0xf0] sm:$0xff] %v4900
        %4933 = vst [vmem:[%s361 + $0xf8] sm:$0xff] %v4901
        %s4934 = sand.u32 %s205, 1
        %s4935 = scalar_lea.sflag [#allocation4], %s4934
        %s4936 = sand.u32 %s205, 1
        %s4937 = smul.addr %s4936, 256
        %s4938 = scalar_lea.vmem [#allocation3], %s4937
        // Predicated region
        $region45: #{tpu_custom_call.1} parent=43 // pred_check
          %p4939 = pneg %p215
        $region46: #{tpu_custom_call.1} parent=43 // pred_check_branch
          %4941 = sbr.rel (%p4939) target = $region48
        $region47: #{tpu_custom_call.1} parent=43 // pred_region
          %s4942 = smul.u32 4, %s25
          %s4944 = ssub.s32 4096, 4096
          %4945 = vsyncadd %s4935, %s4944
          %s4946 = smul.addr %s4942, 8
          %s4947 = smul.addr %s24, 64
          %s4948 = sadd.s32 %s4946, %s4947
          %s4949 = smul.addr %s4948, 128
          %s4950 = scalar_lea.hbm %s6, %s4949
          %s4951 = sshll.u32 %s4938, 4
          %s4952 = int_to_ptr.vmem [resolvable:$true] %s4951
          %4957 = dma.vmem_to_hbm [thread:$0]  %s4952, 4096, %s4950, %s4935, 128, 128, 8
        $region48: #{tpu_custom_call.1} parent=43 // pred_fallthru
          _
      $region44: #{tpu_custom_call.1} parent=5 // pred_fallthru
        _
      %p4958 = scmp.le.s32.totalorder 2, %s15
      // Predicated region
      $region49: #{tpu_custom_call.1} parent=5 // pred_check
        %p4959 = pneg %p4958
      $region50: #{tpu_custom_call.1} parent=5 // pred_check_branch
        %4961 = sbr.rel (%p4959) target = $region52
      $region51: #{tpu_custom_call.1} parent=5 // pred_region
        %s4962 = ssub.s32 %s15, 2
        // Predicated region
        $region53: #{tpu_custom_call.1} parent=51 // pred_check
          %p4963 = pneg %p221
        $region54: #{tpu_custom_call.1} parent=51 // pred_check_branch
          %4965 = sbr.rel (%p4963) target = $region56
        $region55: #{tpu_custom_call.1} parent=51 // pred_region
          %s4966 = sand.u32 %s206, 1
          %s4967 = scalar_lea.sflag [#allocation4], %s4966
          %s4968 = sand.u32 %s206, 1
          %s4969 = smul.addr %s4968, 256
          %s4970 = scalar_lea.vmem [#allocation3], %s4969
          %4971 = dma.done %s4967, 4096
        $region56: #{tpu_custom_call.1} parent=51 // pred_fallthru
          _
      $region52: #{tpu_custom_call.1} parent=5 // pred_fallthru
        _
    $region6: #{tpu_custom_call.1} parent=1 // loop_footer
      %s19 = sadd.s32 1, %s15
    $region7: #{tpu_custom_call.1} parent=1 // loop_footer_branch
      %14 = sbr.rel target = $region3
    $region8: #{tpu_custom_call.1} parent=1 // loop_exit
      _
    %4972 = vsyncpa [#allocation4], 1
    %s4973 = scalar_lea.sflag [#allocation4], 1
    %4974 = vsyncpa %s4973, 1

</llo_original>
